<compile_context>
chip_gen: v6e
topology: v6e:2x2x1
jax: 0.10.0
libtpu: 0.0.40
codegen_flags: <defaults>
</compile_context>

<pallas_src>
import functools

import jax
import jax.numpy as jnp
import numpy as np
from jax import lax
from jax.experimental import pallas as pl
from jax.experimental.pallas import tpu as pltpu

EPS = 1e-5
_LANES = 128
# Scoped-VMEM limit: below v7x's 64 MiB physical VMEM, above the 16/32 MiB
# defaults of v5e/v6e.  (v6e could go higher; re-derive if tiles are enlarged.)
_VMEM_LIMIT = 48 * 1024 * 1024


def _round_up(v, m):
    return (v + m - 1) // m * m


def _compiler_params():
    return pltpu.CompilerParams(
        dimension_semantics=("parallel", "parallel"),   # (image, R-tile): independent
        vmem_limit_bytes=_VMEM_LIMIT)


def _pick_tile_rows(h, w, c_pad):
    """Image rows per grid step: large-but-bounded R tiles (VMEM + pipelining)."""
    # Keep the folded (tile, 9*Cp) f32 + bf16 temporaries comfortably inside VMEM.
    budget_rows = max(64, (12 * 1024 * 1024) // (9 * c_pad * 6))
    target = min(512, budget_rows)
    th_max = max(1, target // w)
    cands = [t for t in range(1, h + 1) if h % t == 0 and t <= th_max]
    multi = [t for t in cands if t <= h // 2] if h > 1 else cands   # prefer >= 2 tiles/image
    pool = multi or cands or [1]
    return max(pool)


# ---------------------------------------------------------------------------
# Shared helper: 3x3 'same' conv on a flattened (rows, Cp) activation tile.
# The nine taps are folded onto the lane axis and consumed by ONE wide-K dot.
# ---------------------------------------------------------------------------
def _conv3x3_folded(h_main, h_prev, h_next, w9, *, width, acc0=None):
    """h_main: (tile, Cp) f32, h_prev/h_next: (W, Cp) f32 halo rows (zeros at the
    image border), w9: (9*Cp, Coutp) bf16 with rows ordered (ky, kx, channel)."""
    tile, cp = h_main.shape
    span = tile + 2 * width
    zpad = jnp.zeros((8, cp), jnp.float32)
    # Segments (8, W, tile, W, 8) are all multiples of 8 rows -> aligned concat.
    hp = jnp.concatenate([zpad, h_prev, h_main, h_next, zpad], axis=0)

    # Column-of-image per buffer-local row (R tiles start on image-row boundaries).
    col = lax.broadcasted_iota(jnp.int32, (span, 1), 0) % width
    cb = hp[8:8 + span, :]                        # kx = 1           (8-aligned view)
    lb = hp[7:7 + span, :]                        # kx = 0  (x - 1)  single -1 row shift
    rb = hp[9:9 + span, :]                        # kx = 2  (x + 1)  single +1 row shift
    lb = jnp.where(col == 0, 0.0, lb)             # x-1 taps invalid in column 0
    rb = jnp.where(col == width - 1, 0.0, rb)     # x+1 taps invalid in column W-1

    # kx taps onto lanes (each segment is Cp, a multiple of 128 -> aligned concat) ...
    g3 = jnp.concatenate([lb, cb, rb], axis=1)                       # (span, 3*Cp)
    # ... then ky taps onto lanes through 8-aligned row slices: one folded operand.
    gw = jnp.concatenate(
        [g3[dy * width:dy * width + tile, :] for dy in range(3)], axis=1)  # (tile, 9*Cp)

    acc = jnp.dot(gw.astype(jnp.bfloat16), w9, preferred_element_type=jnp.float32)
    if acc0 is not None:
        acc = acc + acc0
    return acc


# ---------------------------------------------------------------------------
# Stage 1: y1 = Conv3x3(ReLU(BN1(x)))   (+ per-tile BN2 stats partials)
# ---------------------------------------------------------------------------
def _stage1_kernel(xm_ref, xp_ref, xn_ref, sc_ref, sh_ref, w_ref,
                   y_ref, s_ref, q_ref, *, width):
    r = pl.program_id(1)
    last = pl.num_programs(1) - 1
    sc = sc_ref[...]
    sh = sh_ref[...]

    def bn_relu(v):                        # element-wise math stays f32 (v5e VPU)
        return jnp.maximum(v.astype(jnp.float32) * sc + sh, 0.0)

    h_main = bn_relu(xm_ref[...])
    h_prev = bn_relu(xp_ref[...]) * jnp.where(r == 0, 0.0, 1.0)     # zero pad above image
    h_next = bn_relu(xn_ref[...]) * jnp.where(r == last, 0.0, 1.0)  # zero pad below image

    acc = _conv3x3_folded(h_main, h_prev, h_next, w_ref[...], width=width)
    y_ref[...] = acc.astype(y_ref.dtype)           # bf16 inter-stage tensor in HBM
    # BN2 statistics partials from the f32 accumulator (no extra pass over y1).
    s_ref[...] = jnp.sum(acc, axis=0, keepdims=True)
    q_ref[...] = jnp.sum(acc * acc, axis=0, keepdims=True)


# ---------------------------------------------------------------------------
# Stage 2: out = Conv3x3(ReLU(BN2(y1))) + Conv1x1_skip(x)
# ---------------------------------------------------------------------------
def _stage2_kernel(ym_ref, yp_ref, yn_ref, xm_ref, sc_ref, sh_ref,
                   w_ref, wsk_ref, o_ref, *, width):
    r = pl.program_id(1)
    last = pl.num_programs(1) - 1
    sc = sc_ref[...]
    sh = sh_ref[...]

    def bn_relu(v):
        return jnp.maximum(v.astype(jnp.float32) * sc + sh, 0.0)

    h_main = bn_relu(ym_ref[...])
    h_prev = bn_relu(yp_ref[...]) * jnp.where(r == 0, 0.0, 1.0)
    h_next = bn_relu(yn_ref[...]) * jnp.where(r == last, 0.0, 1.0)

    # 1x1 skip conv (bf16 operands, f32 accumulation) seeds the accumulator.
    acc0 = jnp.dot(xm_ref[...], wsk_ref[...], preferred_element_type=jnp.float32)
    o_ref[...] = _conv3x3_folded(h_main, h_prev, h_next, w_ref[...],
                                 width=width, acc0=acc0)


# ---------------------------------------------------------------------------
# Host-side weight preparation
# ---------------------------------------------------------------------------
def _prep_conv3x3_weight(w_oihw, cin_p, cout_p):
    co, ci = w_oihw.shape[0], w_oihw.shape[1]
    w = jnp.transpose(w_oihw, (2, 3, 1, 0))                       # (ky, kx, Cin, Cout)
    w = jnp.pad(w, ((0, 0), (0, 0), (0, cin_p - ci), (0, cout_p - co)))
    return w.reshape(9 * cin_p, cout_p).astype(jnp.bfloat16)      # rows: (ky, kx, channel)


def _prep_skip_weight(wsk_oihw, cin, cin_p, cout_p):
    if wsk_oihw is None:                                          # identity skip (Cin == Cout)
        w = jnp.eye(cin, dtype=jnp.float32)
    else:
        w = jnp.transpose(wsk_oihw[:, :, 0, 0], (1, 0))           # (Cin, Cout)
    return jnp.pad(w, ((0, cin_p - w.shape[0]),
                       (0, cout_p - w.shape[1]))).astype(jnp.bfloat16)


# ---------------------------------------------------------------------------
# Public wrapper: NCHW in -> NCHW out
# ---------------------------------------------------------------------------
def basic_block_forward(x_nchw, params):
    """BasicBlock forward (training-mode BN).  x: (N, Cin, H, W) -> (N, Cout, H, W)."""
    g1, b1, w1_oihw, g2, b2, w2_oihw, wsk_oihw = params
    N, Cin, H, W = x_nchw.shape
    Cout = w1_oihw.shape[0]
    if W % 8 != 0:
        raise NotImplementedError("kernel assumes the image width is a multiple of 8")
    R = H * W
    Cinp = _round_up(Cin, _LANES)
    Coutp = _round_up(Cout, _LANES)
    TH = _pick_tile_rows(H, W, max(Cinp, Coutp))
    n_tiles = H // TH
    TILE_R = TH * W
    cnt = float(N * R)

    x_f32 = x_nchw.astype(jnp.float32)

    # ---- BN1 batch statistics: plain jnp so XLA fuses the reduction with the
    #      layout change below (no separate stats kernel / extra HBM pass). ----
    mean1 = jnp.mean(x_f32, axis=(0, 2, 3))
    var1 = jnp.var(x_f32, axis=(0, 2, 3))                 # biased (training-mode BN)
    inv1 = lax.rsqrt(var1 + EPS)
    sc1 = jnp.pad(g1 * inv1, (0, Cinp - Cin)).reshape(1, Cinp)
    sh1 = jnp.pad(b1 - mean1 * g1 * inv1, (0, Cinp - Cin)).reshape(1, Cinp)

    # NCHW -> flat (N, R, Cp): channels on lanes, flattened spatial on sublanes.
    # Stored once as bf16 (stage-1 conv input and stage-2 skip input).
    xt = jnp.transpose(x_f32, (0, 2, 3, 1)).reshape(N, R, Cin)
    xt = jnp.pad(xt, ((0, 0), (0, 0), (0, Cinp - Cin))).astype(jnp.bfloat16)

    w9_1 = _prep_conv3x3_weight(w1_oihw, Cinp, Coutp)
    w9_2 = _prep_conv3x3_weight(w2_oihw, Coutp, Coutp)
    wskip = _prep_skip_weight(wsk_oihw, Cin, Cinp, Coutp)

    main_x = pl.BlockSpec((None, TILE_R, Cinp), lambda n, r: (n, r, 0))
    main_y = pl.BlockSpec((None, TILE_R, Coutp), lambda n, r: (n, r, 0))
    stat = pl.BlockSpec((None, None, 1, Coutp), lambda n, r: (n, r, 0, 0))

    def halo(c):   # one image row above / below the tile (block-index units of W rows)
        prev = pl.BlockSpec((None, W, c), lambda n, r: (n, jnp.maximum(r * TH - 1, 0), 0))
        nxt = pl.BlockSpec((None, W, c), lambda n, r: (n, jnp.minimum((r + 1) * TH, H - 1), 0))
        return prev, nxt

    def bcast(a):  # resident operands (weights / BN scales): constant block index
        return pl.BlockSpec(a.shape, lambda n, r: (0, 0))

    xp_spec, xn_spec = halo(Cinp)
    yp_spec, yn_spec = halo(Coutp)
    grid = (N, n_tiles)

    # ---- stage 1 ----
    y1, ysum, ysq = pl.pallas_call(
        functools.partial(_stage1_kernel, width=W),
        grid=grid,
        in_specs=[main_x, xp_spec, xn_spec, bcast(sc1), bcast(sh1), bcast(w9_1)],
        out_specs=[main_y, stat, stat],
        out_shape=[jax.ShapeDtypeStruct((N, R, Coutp), jnp.bfloat16),
                   jax.ShapeDtypeStruct((N, n_tiles, 1, Coutp), jnp.float32),
                   jax.ShapeDtypeStruct((N, n_tiles, 1, Coutp), jnp.float32)],
        compiler_params=_compiler_params(),
    )(xt, xt, xt, sc1, sh1, w9_1)

    mean2 = jnp.sum(ysum, axis=(0, 1, 2)) / cnt
    var2 = jnp.maximum(jnp.sum(ysq, axis=(0, 1, 2)) / cnt - mean2 * mean2, 0.0)
    inv2 = lax.rsqrt(var2 + EPS)
    g2p = jnp.pad(g2, (0, Coutp - Cout))
    b2p = jnp.pad(b2, (0, Coutp - Cout))
    sc2 = (g2p * inv2).reshape(1, Coutp)
    sh2 = (b2p - mean2 * g2p * inv2).reshape(1, Coutp)

    # ---- stage 2 (conv + fused 1x1 skip) ----
    out_p = pl.pallas_call(
        functools.partial(_stage2_kernel, width=W),
        grid=grid,
        in_specs=[main_y, yp_spec, yn_spec, main_x,
                  bcast(sc2), bcast(sh2), bcast(w9_2), bcast(wskip)],
        out_specs=main_y,
        out_shape=jax.ShapeDtypeStruct((N, R, Coutp), jnp.float32),
        compiler_params=_compiler_params(),
    )(y1, y1, y1, xt, sc2, sh2, w9_2, wskip)

    out = out_p[:, :, :Cout].reshape(N, H, W, Cout)
    return jnp.transpose(out, (0, 3, 1, 2))


# ---------------------------------------------------------------------------
# Deterministic parameter init (shapes follow the PyTorch module)
# ---------------------------------------------------------------------------
def init_params(key, cin, cout):
    k1, k2, k3, k4, k5, k6, k7 = jax.random.split(key, 7)
    w1 = 0.2 * jax.random.normal(k1, (cout, cin, 3, 3), jnp.float32)
    w2 = 0.2 * jax.random.normal(k2, (cout, cout, 3, 3), jnp.float32)
    wsk = (0.2 * jax.random.normal(k3, (cout, cin, 1, 1), jnp.float32)
           if cin != cout else None)                      # nn.Identity when Cin == Cout
    g1 = 1.0 + 0.1 * jax.random.normal(k4, (cin,), jnp.float32)
    b1 = 0.1 * jax.random.normal(k5, (cin,), jnp.float32)
    g2 = 1.0 + 0.1 * jax.random.normal(k6, (cout,), jnp.float32)
    b2 = 0.1 * jax.random.normal(k7, (cout,), jnp.float32)
    return (g1, b1, w1, g2, b2, w2, wsk)


# ---------------------------------------------------------------------------
# Pure-JAX reference (mirrors the PyTorch forward) for verification
# ---------------------------------------------------------------------------
def reference_forward(x, params):
    g1, b1, w1, g2, b2, w2, wsk = params

    def bn_relu(h, g, b):
        mean = jnp.mean(h, axis=(0, 2, 3), keepdims=True)
        var = jnp.mean((h - mean) ** 2, axis=(0, 2, 3), keepdims=True)
        hh = (h - mean) * lax.rsqrt(var + EPS)
        hh = hh * g[None, :, None, None] + b[None, :, None, None]
        return jnp.maximum(hh, 0.0)

    def conv(h, w, pad):
        return lax.conv_general_dilated(
            h, w, window_strides=(1, 1), padding=[(pad, pad), (pad, pad)],
            dimension_numbers=('NCHW', 'OIHW', 'NCHW'))

    y = conv(bn_relu(x, g1, b1), w1, 1)
    y = conv(bn_relu(y, g2, b2), w2, 1)
    skip = x if wsk is None else conv(x, wsk, 0)
    return y + skip


if __name__ == "__main__":
    key = jax.random.PRNGKey(0)
    kx, kp = jax.random.split(key)
    N, Cin, H, W, Cout = 2, 4, 16, 16, 8

    x = jax.random.normal(kx, (N, Cin, H, W), jnp.float32)
    params = init_params(kp, Cin, Cout)

    fwd = jax.jit(basic_block_forward)
    out = jax.block_until_ready(fwd(x, params))
    ref = reference_forward(x, params)

    assert out.shape == (N, Cout, H, W), out.shape
    # Only deviation from the f32 reference is bf16 rounding of the MXU operands
    # (x, y1 and the folded taps); accumulation stays in f32, hence the loose
    # few-percent tolerance.
    np.testing.assert_allclose(np.asarray(out), np.asarray(ref),
                               atol=5e-2, rtol=5e-2)
    print("KERNEL_OK")
</pallas_src>

<mosaic_0001>
module attributes {stable_mosaic.version = 11 : i64} {
  func.func @_stage1_kernel(%arg0: i32, %arg1: i32, %arg2: memref<1x128x128xbf16, #tpu.memory_space<vmem>>, %arg3: memref<1x16x128xbf16, #tpu.memory_space<vmem>>, %arg4: memref<1x16x128xbf16, #tpu.memory_space<vmem>>, %arg5: memref<1x128xf32, #tpu.memory_space<vmem>>, %arg6: memref<1x128xf32, #tpu.memory_space<vmem>>, %arg7: memref<1152x128xbf16, #tpu.memory_space<vmem>>, %arg8: memref<1x128x128xbf16, #tpu.memory_space<vmem>>, %arg9: memref<1x1x1x128xf32, #tpu.memory_space<vmem>>, %arg10: memref<1x1x1x128xf32, #tpu.memory_space<vmem>>) attributes {dimension_semantics = [#tpu.dimension_semantics<parallel>, #tpu.dimension_semantics<parallel>], iteration_bounds = array<i64: 2, 2>, scalar_prefetch = 0 : i64, scratch_operands = 0 : i64, tpu.core_type = #tpu.core_type<tc>, window_params = [{transform_indices = @transform_0, window_bounds = array<i64: 1, 128, 128>}, {transform_indices = @transform_1, window_bounds = array<i64: 1, 16, 128>}, {transform_indices = @transform_2, window_bounds = array<i64: 1, 16, 128>}, {pipeline_mode = #tpu.pipeline_mode<synchronous>, transform_indices = @transform_3, window_bounds = array<i64: 1, 128>}, {pipeline_mode = #tpu.pipeline_mode<synchronous>, transform_indices = @transform_4, window_bounds = array<i64: 1, 128>}, {pipeline_mode = #tpu.pipeline_mode<synchronous>, transform_indices = @transform_5, window_bounds = array<i64: 1152, 128>}, {transform_indices = @transform_6, window_bounds = array<i64: 1, 128, 128>}, {transform_indices = @transform_7, window_bounds = array<i64: 1, 1, 1, 128>}, {transform_indices = @transform_8, window_bounds = array<i64: 1, 1, 1, 128>}]} {
    %c0 = arith.constant 0 : index
    %c0_0 = arith.constant 0 : index
    %0 = vector.load %arg5[%c0, %c0_0] : memref<1x128xf32, #tpu.memory_space<vmem>>, vector<1x128xf32>
    %c0_1 = arith.constant 0 : index
    %c0_2 = arith.constant 0 : index
    %1 = vector.load %arg6[%c0_1, %c0_2] : memref<1x128xf32, #tpu.memory_space<vmem>>, vector<1x128xf32>
    %c0_3 = arith.constant 0 : index
    %c0_4 = arith.constant 0 : index
    %c0_5 = arith.constant 0 : index
    %2 = vector.load %arg2[%c0_3, %c0_4, %c0_5] : memref<1x128x128xbf16, #tpu.memory_space<vmem>>, vector<1x128x128xbf16>
    %3 = vector.shape_cast %2 : vector<1x128x128xbf16> to vector<128x128xbf16>
    %4 = arith.extf %3 : vector<128x128xbf16> to vector<128x128xf32>
    %5 = vector.broadcast %0 : vector<1x128xf32> to vector<128x128xf32>
    %6 = arith.mulf %4, %5 : vector<128x128xf32>
    %7 = vector.broadcast %1 : vector<1x128xf32> to vector<128x128xf32>
    %8 = arith.addf %6, %7 : vector<128x128xf32>
    %cst = arith.constant 0.000000e+00 : f32
    %9 = vector.broadcast %cst : f32 to vector<128x128xf32>
    %10 = arith.maximumf %8, %9 : vector<128x128xf32>
    %c0_6 = arith.constant 0 : index
    %c0_7 = arith.constant 0 : index
    %c0_8 = arith.constant 0 : index
    %11 = vector.load %arg3[%c0_6, %c0_7, %c0_8] : memref<1x16x128xbf16, #tpu.memory_space<vmem>>, vector<1x16x128xbf16>
    %12 = vector.shape_cast %11 : vector<1x16x128xbf16> to vector<16x128xbf16>
    %13 = arith.extf %12 : vector<16x128xbf16> to vector<16x128xf32>
    %14 = vector.broadcast %0 : vector<1x128xf32> to vector<16x128xf32>
    %15 = arith.mulf %13, %14 : vector<16x128xf32>
    %16 = vector.broadcast %1 : vector<1x128xf32> to vector<16x128xf32>
    %17 = arith.addf %15, %16 : vector<16x128xf32>
    %cst_9 = arith.constant 0.000000e+00 : f32
    %18 = vector.broadcast %cst_9 : f32 to vector<16x128xf32>
    %19 = arith.maximumf %17, %18 : vector<16x128xf32>
    %c0_i32 = arith.constant 0 : i32
    %20 = arith.cmpi eq, %arg1, %c0_i32 : i32
    %cst_10 = arith.constant 0.000000e+00 : f32
    %cst_11 = arith.constant 1.000000e+00 : f32
    %21 = arith.select %20, %cst_10, %cst_11 : f32
    %22 = vector.broadcast %21 : f32 to vector<16x128xf32>
    %23 = arith.mulf %19, %22 : vector<16x128xf32>
    %c0_12 = arith.constant 0 : index
    %c0_13 = arith.constant 0 : index
    %c0_14 = arith.constant 0 : index
    %24 = vector.load %arg4[%c0_12, %c0_13, %c0_14] : memref<1x16x128xbf16, #tpu.memory_space<vmem>>, vector<1x16x128xbf16>
    %25 = vector.shape_cast %24 : vector<1x16x128xbf16> to vector<16x128xbf16>
    %26 = arith.extf %25 : vector<16x128xbf16> to vector<16x128xf32>
    %27 = vector.broadcast %0 : vector<1x128xf32> to vector<16x128xf32>
    %28 = arith.mulf %26, %27 : vector<16x128xf32>
    %29 = vector.broadcast %1 : vector<1x128xf32> to vector<16x128xf32>
    %30 = arith.addf %28, %29 : vector<16x128xf32>
    %cst_15 = arith.constant 0.000000e+00 : f32
    %31 = vector.broadcast %cst_15 : f32 to vector<16x128xf32>
    %32 = arith.maximumf %30, %31 : vector<16x128xf32>
    %c1_i32 = arith.constant 1 : i32
    %33 = arith.cmpi eq, %arg1, %c1_i32 : i32
    %cst_16 = arith.constant 0.000000e+00 : f32
    %cst_17 = arith.constant 1.000000e+00 : f32
    %34 = arith.select %33, %cst_16, %cst_17 : f32
    %35 = vector.broadcast %34 : f32 to vector<16x128xf32>
    %36 = arith.mulf %32, %35 : vector<16x128xf32>
    %c0_18 = arith.constant 0 : index
    %c0_19 = arith.constant 0 : index
    %37 = vector.load %arg7[%c0_18, %c0_19] : memref<1152x128xbf16, #tpu.memory_space<vmem>>, vector<1152x128xbf16>
    %cst_20 = arith.constant 0.000000e+00 : f32
    %38 = vector.broadcast %cst_20 : f32 to vector<8x128xf32>
    %39 = tpu.concatenate %38, %23, %10, %36, %38 in 0 : vector<8x128xf32>, vector<16x128xf32>, vector<128x128xf32>, vector<16x128xf32>, vector<8x128xf32> -> vector<176x128xf32>
    %40 = tpu.iota {dimensions = array<i32: 0>} : vector<160x1xi32>
    %c16_i32 = arith.constant 16 : i32
    %c0_i32_21 = arith.constant 0 : i32
    %41 = arith.cmpi eq, %c16_i32, %c0_i32_21 : i32
    %c1_i32_22 = arith.constant 1 : i32
    %42 = arith.select %41, %c1_i32_22, %c16_i32 : i32
    %43 = vector.broadcast %42 : i32 to vector<160x1xi32>
    %44 = arith.remsi %40, %43 : vector<160x1xi32>
    %c0_i32_23 = arith.constant 0 : i32
    %45 = vector.broadcast %c0_i32_23 : i32 to vector<160x1xi32>
    %46 = arith.cmpi ne, %44, %45 : vector<160x1xi32>
    %c0_i32_24 = arith.constant 0 : i32
    %47 = vector.broadcast %c0_i32_24 : i32 to vector<160x1xi32>
    %48 = arith.cmpi slt, %44, %47 : vector<160x1xi32>
    %c0_i32_25 = arith.constant 0 : i32
    %49 = arith.cmpi slt, %42, %c0_i32_25 : i32
    %50 = vector.broadcast %49 : i1 to vector<160x1xi1>
    %51 = vector.broadcast %50 : vector<160x1xi1> to vector<160x1xi1>
    %52 = arith.xori %48, %51 : vector<160x1xi1>
    %53 = arith.andi %52, %46 : vector<160x1xi1>
    %54 = vector.broadcast %42 : i32 to vector<160x1xi32>
    %55 = arith.addi %44, %54 : vector<160x1xi32>
    %56 = arith.select %53, %55, %44 : vector<160x1xi1>, vector<160x1xi32>
    %57 = vector.extract_strided_slice %39 {offsets = [8, 0], sizes = [160, 128], strides = [1, 1]} : vector<176x128xf32> to vector<160x128xf32>
    %58 = vector.extract_strided_slice %39 {offsets = [7, 0], sizes = [160, 128], strides = [1, 1]} : vector<176x128xf32> to vector<160x128xf32>
    %59 = vector.extract_strided_slice %39 {offsets = [9, 0], sizes = [160, 128], strides = [1, 1]} : vector<176x128xf32> to vector<160x128xf32>
    %c0_i32_26 = arith.constant 0 : i32
    %60 = vector.broadcast %c0_i32_26 : i32 to vector<160x1xi32>
    %61 = arith.cmpi eq, %56, %60 : vector<160x1xi32>
    %cst_27 = arith.constant 0.000000e+00 : f32
    %62 = vector.shape_cast %61 : vector<160x1xi1> to vector<160x1xi1>
    %63 = vector.broadcast %62 : vector<160x1xi1> to vector<160x128xi1>
    %64 = vector.broadcast %cst_27 : f32 to vector<160x128xf32>
    %65 = arith.select %63, %64, %58 : vector<160x128xi1>, vector<160x128xf32>
    %c15_i32 = arith.constant 15 : i32
    %66 = vector.broadcast %c15_i32 : i32 to vector<160x1xi32>
    %67 = arith.cmpi eq, %56, %66 : vector<160x1xi32>
    %cst_28 = arith.constant 0.000000e+00 : f32
    %68 = vector.shape_cast %67 : vector<160x1xi1> to vector<160x1xi1>
    %69 = vector.broadcast %68 : vector<160x1xi1> to vector<160x128xi1>
    %70 = vector.broadcast %cst_28 : f32 to vector<160x128xf32>
    %71 = arith.select %69, %70, %59 : vector<160x128xi1>, vector<160x128xf32>
    %72 = tpu.concatenate %65, %57, %71 in 1 : vector<160x128xf32>, vector<160x128xf32>, vector<160x128xf32> -> vector<160x384xf32>
    %73 = vector.extract_strided_slice %72 {offsets = [0, 0], sizes = [128, 384], strides = [1, 1]} : vector<160x384xf32> to vector<128x384xf32>
    %74 = vector.extract_strided_slice %72 {offsets = [16, 0], sizes = [128, 384], strides = [1, 1]} : vector<160x384xf32> to vector<128x384xf32>
    %75 = vector.extract_strided_slice %72 {offsets = [32, 0], sizes = [128, 384], strides = [1, 1]} : vector<160x384xf32> to vector<128x384xf32>
    %76 = tpu.concatenate %73, %74, %75 in 1 : vector<128x384xf32>, vector<128x384xf32>, vector<128x384xf32> -> vector<128x1152xf32>
    %77 = arith.truncf %76 : vector<128x1152xf32> to vector<128x1152xbf16>
    %cst_29 = arith.constant dense<0.000000e+00> : vector<128x128xf32>
    %78 = tpu.matmul %77, %37, %cst_29 {dimension_numbers = #tpu.dot_dimension_numbers<[1], [0], [0], [1], [0, 0, 1, 1], [], []>} : vector<128x1152xbf16>, vector<1152x128xbf16>, vector<128x128xf32> -> vector<128x128xf32>
    %79 = arith.truncf %78 : vector<128x128xf32> to vector<128x128xbf16>
    %c0_30 = arith.constant 0 : index
    %c0_31 = arith.constant 0 : index
    %c0_32 = arith.constant 0 : index
    %80 = vector.load %arg8[%c0_30, %c0_31, %c0_32] : memref<1x128x128xbf16, #tpu.memory_space<vmem>>, vector<1x128x128xbf16>
    %81 = vector.shape_cast %80 : vector<1x128x128xbf16> to vector<128x128xbf16>
    %82 = vector.shape_cast %79 : vector<128x128xbf16> to vector<1x128x128xbf16>
    tpu.vector_store %arg8[%c0_30, %c0_31, %c0_32], %82 {strides = array<i32>} : memref<1x128x128xbf16, #tpu.memory_space<vmem>>, vector<1x128x128xbf16>,
    %cst_33 = arith.constant dense<0.000000e+00> : vector<128xf32>
    %83 = vector.multi_reduction <add>, %78, %cst_33 [0] : vector<128x128xf32> to vector<128xf32>
    %84 = vector.shape_cast %83 : vector<128xf32> to vector<1x128xf32>
    %c0_34 = arith.constant 0 : index
    %c0_35 = arith.constant 0 : index
    %c0_36 = arith.constant 0 : index
    %c0_37 = arith.constant 0 : index
    %85 = vector.load %arg9[%c0_34, %c0_35, %c0_36, %c0_37] : memref<1x1x1x128xf32, #tpu.memory_space<vmem>>, vector<1x1x1x128xf32>
    %86 = vector.shape_cast %85 : vector<1x1x1x128xf32> to vector<1x128xf32>
    %87 = vector.shape_cast %84 : vector<1x128xf32> to vector<1x1x1x128xf32>
    tpu.vector_store %arg9[%c0_34, %c0_35, %c0_36, %c0_37], %87 {strides = array<i32>} : memref<1x1x1x128xf32, #tpu.memory_space<vmem>>, vector<1x1x1x128xf32>,
    %88 = arith.mulf %78, %78 : vector<128x128xf32>
    %cst_38 = arith.constant dense<0.000000e+00> : vector<128xf32>
    %89 = vector.multi_reduction <add>, %88, %cst_38 [0] : vector<128x128xf32> to vector<128xf32>
    %90 = vector.shape_cast %89 : vector<128xf32> to vector<1x128xf32>
    %c0_39 = arith.constant 0 : index
    %c0_40 = arith.constant 0 : index
    %c0_41 = arith.constant 0 : index
    %c0_42 = arith.constant 0 : index
    %91 = vector.load %arg10[%c0_39, %c0_40, %c0_41, %c0_42] : memref<1x1x1x128xf32, #tpu.memory_space<vmem>>, vector<1x1x1x128xf32>
    %92 = vector.shape_cast %91 : vector<1x1x1x128xf32> to vector<1x128xf32>
    %93 = vector.shape_cast %90 : vector<1x128xf32> to vector<1x1x1x128xf32>
    tpu.vector_store %arg10[%c0_39, %c0_40, %c0_41, %c0_42], %93 {strides = array<i32>} : memref<1x1x1x128xf32, #tpu.memory_space<vmem>>, vector<1x1x1x128xf32>,
    return
  }
  func.func @transform_0(%arg0: i32, %arg1: i32) -> (i32, i32, i32) {
    %c0_i32 = arith.constant 0 : i32
    %c0_i32_0 = arith.constant 0 : i32
    return %arg0, %arg1, %c0_i32 : i32, i32, i32
  }
  func.func @transform_1(%arg0: i32, %arg1: i32) -> (i32, i32, i32) {
    %c8_i32 = arith.constant 8 : i32
    %0 = arith.muli %arg1, %c8_i32 : i32
    %c1_i32 = arith.constant 1 : i32
    %1 = arith.subi %0, %c1_i32 : i32
    %c0_i32 = arith.constant 0 : i32
    %2 = arith.maxsi %1, %c0_i32 : i32
    %c0_i32_0 = arith.constant 0 : i32
    %c0_i32_1 = arith.constant 0 : i32
    return %arg0, %2, %c0_i32_0 : i32, i32, i32
  }
  func.func @transform_2(%arg0: i32, %arg1: i32) -> (i32, i32, i32) {
    %c1_i32 = arith.constant 1 : i32
    %0 = arith.addi %arg1, %c1_i32 : i32
    %c8_i32 = arith.constant 8 : i32
    %1 = arith.muli %0, %c8_i32 : i32
    %c15_i32 = arith.constant 15 : i32
    %2 = arith.minsi %1, %c15_i32 : i32
    %c0_i32 = arith.constant 0 : i32
    %c0_i32_0 = arith.constant 0 : i32
    return %arg0, %2, %c0_i32 : i32, i32, i32
  }
  func.func @transform_3(%arg0: i32, %arg1: i32) -> (i32, i32) {
    %c0_i32 = arith.constant 0 : i32
    %c0_i32_0 = arith.constant 0 : i32
    %c0_i32_1 = arith.constant 0 : i32
    return %c0_i32, %c0_i32_0 : i32, i32
  }
  func.func @transform_4(%arg0: i32, %arg1: i32) -> (i32, i32) {
    %c0_i32 = arith.constant 0 : i32
    %c0_i32_0 = arith.constant 0 : i32
    %c0_i32_1 = arith.constant 0 : i32
    return %c0_i32, %c0_i32_0 : i32, i32
  }
  func.func @transform_5(%arg0: i32, %arg1: i32) -> (i32, i32) {
    %c0_i32 = arith.constant 0 : i32
    %c0_i32_0 = arith.constant 0 : i32
    %c0_i32_1 = arith.constant 0 : i32
    return %c0_i32, %c0_i32_0 : i32, i32
  }
  func.func @transform_6(%arg0: i32, %arg1: i32) -> (i32, i32, i32) {
    %c0_i32 = arith.constant 0 : i32
    %c0_i32_0 = arith.constant 0 : i32
    return %arg0, %arg1, %c0_i32 : i32, i32, i32
  }
  func.func @transform_7(%arg0: i32, %arg1: i32) -> (i32, i32, i32, i32) {
    %c0_i32 = arith.constant 0 : i32
    %c0_i32_0 = arith.constant 0 : i32
    %c0_i32_1 = arith.constant 0 : i32
    return %arg0, %arg1, %c0_i32, %c0_i32_0 : i32, i32, i32, i32
  }
  func.func @transform_8(%arg0: i32, %arg1: i32) -> (i32, i32, i32, i32) {
    %c0_i32 = arith.constant 0 : i32
    %c0_i32_0 = arith.constant 0 : i32
    %c0_i32_1 = arith.constant 0 : i32
    return %arg0, %arg1, %c0_i32, %c0_i32_0 : i32, i32, i32, i32
  }
}

module attributes {stable_mosaic.version = 11 : i64} {
  func.func @_stage2_kernel(%arg0: i32, %arg1: i32, %arg2: memref<1x128x128xbf16, #tpu.memory_space<vmem>>, %arg3: memref<1x16x128xbf16, #tpu.memory_space<vmem>>, %arg4: memref<1x16x128xbf16, #tpu.memory_space<vmem>>, %arg5: memref<1x128x128xbf16, #tpu.memory_space<vmem>>, %arg6: memref<1x128xf32, #tpu.memory_space<vmem>>, %arg7: memref<1x128xf32, #tpu.memory_space<vmem>>, %arg8: memref<1152x128xbf16, #tpu.memory_space<vmem>>, %arg9: memref<128x128xbf16, #tpu.memory_space<vmem>>, %arg10: memref<1x128x128xf32, #tpu.memory_space<vmem>>) attributes {dimension_semantics = [#tpu.dimension_semantics<parallel>, #tpu.dimension_semantics<parallel>], iteration_bounds = array<i64: 2, 2>, scalar_prefetch = 0 : i64, scratch_operands = 0 : i64, tpu.core_type = #tpu.core_type<tc>, window_params = [{transform_indices = @transform_0, window_bounds = array<i64: 1, 128, 128>}, {transform_indices = @transform_1, window_bounds = array<i64: 1, 16, 128>}, {transform_indices = @transform_2, window_bounds = array<i64: 1, 16, 128>}, {transform_indices = @transform_3, window_bounds = array<i64: 1, 128, 128>}, {pipeline_mode = #tpu.pipeline_mode<synchronous>, transform_indices = @transform_4, window_bounds = array<i64: 1, 128>}, {pipeline_mode = #tpu.pipeline_mode<synchronous>, transform_indices = @transform_5, window_bounds = array<i64: 1, 128>}, {pipeline_mode = #tpu.pipeline_mode<synchronous>, transform_indices = @transform_6, window_bounds = array<i64: 1152, 128>}, {pipeline_mode = #tpu.pipeline_mode<synchronous>, transform_indices = @transform_7, window_bounds = array<i64: 128, 128>}, {transform_indices = @transform_8, window_bounds = array<i64: 1, 128, 128>}]} {
    %c0 = arith.constant 0 : index
    %c0_0 = arith.constant 0 : index
    %0 = vector.load %arg6[%c0, %c0_0] : memref<1x128xf32, #tpu.memory_space<vmem>>, vector<1x128xf32>
    %c0_1 = arith.constant 0 : index
    %c0_2 = arith.constant 0 : index
    %1 = vector.load %arg7[%c0_1, %c0_2] : memref<1x128xf32, #tpu.memory_space<vmem>>, vector<1x128xf32>
    %c0_3 = arith.constant 0 : index
    %c0_4 = arith.constant 0 : index
    %c0_5 = arith.constant 0 : index
    %2 = vector.load %arg2[%c0_3, %c0_4, %c0_5] : memref<1x128x128xbf16, #tpu.memory_space<vmem>>, vector<1x128x128xbf16>
    %3 = vector.shape_cast %2 : vector<1x128x128xbf16> to vector<128x128xbf16>
    %4 = arith.extf %3 : vector<128x128xbf16> to vector<128x128xf32>
    %5 = vector.broadcast %0 : vector<1x128xf32> to vector<128x128xf32>
    %6 = arith.mulf %4, %5 : vector<128x128xf32>
    %7 = vector.broadcast %1 : vector<1x128xf32> to vector<128x128xf32>
    %8 = arith.addf %6, %7 : vector<128x128xf32>
    %cst = arith.constant 0.000000e+00 : f32
    %9 = vector.broadcast %cst : f32 to vector<128x128xf32>
    %10 = arith.maximumf %8, %9 : vector<128x128xf32>
    %c0_6 = arith.constant 0 : index
    %c0_7 = arith.constant 0 : index
    %c0_8 = arith.constant 0 : index
    %11 = vector.load %arg3[%c0_6, %c0_7, %c0_8] : memref<1x16x128xbf16, #tpu.memory_space<vmem>>, vector<1x16x128xbf16>
    %12 = vector.shape_cast %11 : vector<1x16x128xbf16> to vector<16x128xbf16>
    %13 = arith.extf %12 : vector<16x128xbf16> to vector<16x128xf32>
    %14 = vector.broadcast %0 : vector<1x128xf32> to vector<16x128xf32>
    %15 = arith.mulf %13, %14 : vector<16x128xf32>
    %16 = vector.broadcast %1 : vector<1x128xf32> to vector<16x128xf32>
    %17 = arith.addf %15, %16 : vector<16x128xf32>
    %cst_9 = arith.constant 0.000000e+00 : f32
    %18 = vector.broadcast %cst_9 : f32 to vector<16x128xf32>
    %19 = arith.maximumf %17, %18 : vector<16x128xf32>
    %c0_i32 = arith.constant 0 : i32
    %20 = arith.cmpi eq, %arg1, %c0_i32 : i32
    %cst_10 = arith.constant 0.000000e+00 : f32
    %cst_11 = arith.constant 1.000000e+00 : f32
    %21 = arith.select %20, %cst_10, %cst_11 : f32
    %22 = vector.broadcast %21 : f32 to vector<16x128xf32>
    %23 = arith.mulf %19, %22 : vector<16x128xf32>
    %c0_12 = arith.constant 0 : index
    %c0_13 = arith.constant 0 : index
    %c0_14 = arith.constant 0 : index
    %24 = vector.load %arg4[%c0_12, %c0_13, %c0_14] : memref<1x16x128xbf16, #tpu.memory_space<vmem>>, vector<1x16x128xbf16>
    %25 = vector.shape_cast %24 : vector<1x16x128xbf16> to vector<16x128xbf16>
    %26 = arith.extf %25 : vector<16x128xbf16> to vector<16x128xf32>
    %27 = vector.broadcast %0 : vector<1x128xf32> to vector<16x128xf32>
    %28 = arith.mulf %26, %27 : vector<16x128xf32>
    %29 = vector.broadcast %1 : vector<1x128xf32> to vector<16x128xf32>
    %30 = arith.addf %28, %29 : vector<16x128xf32>
    %cst_15 = arith.constant 0.000000e+00 : f32
    %31 = vector.broadcast %cst_15 : f32 to vector<16x128xf32>
    %32 = arith.maximumf %30, %31 : vector<16x128xf32>
    %c1_i32 = arith.constant 1 : i32
    %33 = arith.cmpi eq, %arg1, %c1_i32 : i32
    %cst_16 = arith.constant 0.000000e+00 : f32
    %cst_17 = arith.constant 1.000000e+00 : f32
    %34 = arith.select %33, %cst_16, %cst_17 : f32
    %35 = vector.broadcast %34 : f32 to vector<16x128xf32>
    %36 = arith.mulf %32, %35 : vector<16x128xf32>
    %c0_18 = arith.constant 0 : index
    %c0_19 = arith.constant 0 : index
    %c0_20 = arith.constant 0 : index
    %37 = vector.load %arg5[%c0_18, %c0_19, %c0_20] : memref<1x128x128xbf16, #tpu.memory_space<vmem>>, vector<1x128x128xbf16>
    %38 = vector.shape_cast %37 : vector<1x128x128xbf16> to vector<128x128xbf16>
    %c0_21 = arith.constant 0 : index
    %c0_22 = arith.constant 0 : index
    %39 = vector.load %arg9[%c0_21, %c0_22] : memref<128x128xbf16, #tpu.memory_space<vmem>>, vector<128x128xbf16>
    %cst_23 = arith.constant dense<0.000000e+00> : vector<128x128xf32>
    %40 = tpu.matmul %38, %39, %cst_23 {dimension_numbers = #tpu.dot_dimension_numbers<[1], [0], [0], [1], [0, 0, 1, 1], [], []>} : vector<128x128xbf16>, vector<128x128xbf16>, vector<128x128xf32> -> vector<128x128xf32>
    %c0_24 = arith.constant 0 : index
    %c0_25 = arith.constant 0 : index
    %41 = vector.load %arg8[%c0_24, %c0_25] : memref<1152x128xbf16, #tpu.memory_space<vmem>>, vector<1152x128xbf16>
    %cst_26 = arith.constant 0.000000e+00 : f32
    %42 = vector.broadcast %cst_26 : f32 to vector<8x128xf32>
    %43 = tpu.concatenate %42, %23, %10, %36, %42 in 0 : vector<8x128xf32>, vector<16x128xf32>, vector<128x128xf32>, vector<16x128xf32>, vector<8x128xf32> -> vector<176x128xf32>
    %44 = tpu.iota {dimensions = array<i32: 0>} : vector<160x1xi32>
    %c16_i32 = arith.constant 16 : i32
    %c0_i32_27 = arith.constant 0 : i32
    %45 = arith.cmpi eq, %c16_i32, %c0_i32_27 : i32
    %c1_i32_28 = arith.constant 1 : i32
    %46 = arith.select %45, %c1_i32_28, %c16_i32 : i32
    %47 = vector.broadcast %46 : i32 to vector<160x1xi32>
    %48 = arith.remsi %44, %47 : vector<160x1xi32>
    %c0_i32_29 = arith.constant 0 : i32
    %49 = vector.broadcast %c0_i32_29 : i32 to vector<160x1xi32>
    %50 = arith.cmpi ne, %48, %49 : vector<160x1xi32>
    %c0_i32_30 = arith.constant 0 : i32
    %51 = vector.broadcast %c0_i32_30 : i32 to vector<160x1xi32>
    %52 = arith.cmpi slt, %48, %51 : vector<160x1xi32>
    %c0_i32_31 = arith.constant 0 : i32
    %53 = arith.cmpi slt, %46, %c0_i32_31 : i32
    %54 = vector.broadcast %53 : i1 to vector<160x1xi1>
    %55 = vector.broadcast %54 : vector<160x1xi1> to vector<160x1xi1>
    %56 = arith.xori %52, %55 : vector<160x1xi1>
    %57 = arith.andi %56, %50 : vector<160x1xi1>
    %58 = vector.broadcast %46 : i32 to vector<160x1xi32>
    %59 = arith.addi %48, %58 : vector<160x1xi32>
    %60 = arith.select %57, %59, %48 : vector<160x1xi1>, vector<160x1xi32>
    %61 = vector.extract_strided_slice %43 {offsets = [8, 0], sizes = [160, 128], strides = [1, 1]} : vector<176x128xf32> to vector<160x128xf32>
    %62 = vector.extract_strided_slice %43 {offsets = [7, 0], sizes = [160, 128], strides = [1, 1]} : vector<176x128xf32> to vector<160x128xf32>
    %63 = vector.extract_strided_slice %43 {offsets = [9, 0], sizes = [160, 128], strides = [1, 1]} : vector<176x128xf32> to vector<160x128xf32>
    %c0_i32_32 = arith.constant 0 : i32
    %64 = vector.broadcast %c0_i32_32 : i32 to vector<160x1xi32>
    %65 = arith.cmpi eq, %60, %64 : vector<160x1xi32>
    %cst_33 = arith.constant 0.000000e+00 : f32
    %66 = vector.shape_cast %65 : vector<160x1xi1> to vector<160x1xi1>
    %67 = vector.broadcast %66 : vector<160x1xi1> to vector<160x128xi1>
    %68 = vector.broadcast %cst_33 : f32 to vector<160x128xf32>
    %69 = arith.select %67, %68, %62 : vector<160x128xi1>, vector<160x128xf32>
    %c15_i32 = arith.constant 15 : i32
    %70 = vector.broadcast %c15_i32 : i32 to vector<160x1xi32>
    %71 = arith.cmpi eq, %60, %70 : vector<160x1xi32>
    %cst_34 = arith.constant 0.000000e+00 : f32
    %72 = vector.shape_cast %71 : vector<160x1xi1> to vector<160x1xi1>
    %73 = vector.broadcast %72 : vector<160x1xi1> to vector<160x128xi1>
    %74 = vector.broadcast %cst_34 : f32 to vector<160x128xf32>
    %75 = arith.select %73, %74, %63 : vector<160x128xi1>, vector<160x128xf32>
    %76 = tpu.concatenate %69, %61, %75 in 1 : vector<160x128xf32>, vector<160x128xf32>, vector<160x128xf32> -> vector<160x384xf32>
    %77 = vector.extract_strided_slice %76 {offsets = [0, 0], sizes = [128, 384], strides = [1, 1]} : vector<160x384xf32> to vector<128x384xf32>
    %78 = vector.extract_strided_slice %76 {offsets = [16, 0], sizes = [128, 384], strides = [1, 1]} : vector<160x384xf32> to vector<128x384xf32>
    %79 = vector.extract_strided_slice %76 {offsets = [32, 0], sizes = [128, 384], strides = [1, 1]} : vector<160x384xf32> to vector<128x384xf32>
    %80 = tpu.concatenate %77, %78, %79 in 1 : vector<128x384xf32>, vector<128x384xf32>, vector<128x384xf32> -> vector<128x1152xf32>
    %81 = arith.truncf %80 : vector<128x1152xf32> to vector<128x1152xbf16>
    %cst_35 = arith.constant dense<0.000000e+00> : vector<128x128xf32>
    %82 = tpu.matmul %81, %41, %cst_35 {dimension_numbers = #tpu.dot_dimension_numbers<[1], [0], [0], [1], [0, 0, 1, 1], [], []>} : vector<128x1152xbf16>, vector<1152x128xbf16>, vector<128x128xf32> -> vector<128x128xf32>
    %83 = arith.addf %82, %40 : vector<128x128xf32>
    %c0_36 = arith.constant 0 : index
    %c0_37 = arith.constant 0 : index
    %c0_38 = arith.constant 0 : index
    %84 = vector.load %arg10[%c0_36, %c0_37, %c0_38] : memref<1x128x128xf32, #tpu.memory_space<vmem>>, vector<1x128x128xf32>
    %85 = vector.shape_cast %84 : vector<1x128x128xf32> to vector<128x128xf32>
    %86 = vector.shape_cast %83 : vector<128x128xf32> to vector<1x128x128xf32>
    tpu.vector_store %arg10[%c0_36, %c0_37, %c0_38], %86 {strides = array<i32>} : memref<1x128x128xf32, #tpu.memory_space<vmem>>, vector<1x128x128xf32>,
    return
  }
  func.func @transform_0(%arg0: i32, %arg1: i32) -> (i32, i32, i32) {
    %c0_i32 = arith.constant 0 : i32
    %c0_i32_0 = arith.constant 0 : i32
    return %arg0, %arg1, %c0_i32 : i32, i32, i32
  }
  func.func @transform_1(%arg0: i32, %arg1: i32) -> (i32, i32, i32) {
    %c8_i32 = arith.constant 8 : i32
    %0 = arith.muli %arg1, %c8_i32 : i32
    %c1_i32 = arith.constant 1 : i32
    %1 = arith.subi %0, %c1_i32 : i32
    %c0_i32 = arith.constant 0 : i32
    %2 = arith.maxsi %1, %c0_i32 : i32
    %c0_i32_0 = arith.constant 0 : i32
    %c0_i32_1 = arith.constant 0 : i32
    return %arg0, %2, %c0_i32_0 : i32, i32, i32
  }
  func.func @transform_2(%arg0: i32, %arg1: i32) -> (i32, i32, i32) {
    %c1_i32 = arith.constant 1 : i32
    %0 = arith.addi %arg1, %c1_i32 : i32
    %c8_i32 = arith.constant 8 : i32
    %1 = arith.muli %0, %c8_i32 : i32
    %c15_i32 = arith.constant 15 : i32
    %2 = arith.minsi %1, %c15_i32 : i32
    %c0_i32 = arith.constant 0 : i32
    %c0_i32_0 = arith.constant 0 : i32
    return %arg0, %2, %c0_i32 : i32, i32, i32
  }
  func.func @transform_3(%arg0: i32, %arg1: i32) -> (i32, i32, i32) {
    %c0_i32 = arith.constant 0 : i32
    %c0_i32_0 = arith.constant 0 : i32
    return %arg0, %arg1, %c0_i32 : i32, i32, i32
  }
  func.func @transform_4(%arg0: i32, %arg1: i32) -> (i32, i32) {
    %c0_i32 = arith.constant 0 : i32
    %c0_i32_0 = arith.constant 0 : i32
    %c0_i32_1 = arith.constant 0 : i32
    return %c0_i32, %c0_i32_0 : i32, i32
  }
  func.func @transform_5(%arg0: i32, %arg1: i32) -> (i32, i32) {
    %c0_i32 = arith.constant 0 : i32
    %c0_i32_0 = arith.constant 0 : i32
    %c0_i32_1 = arith.constant 0 : i32
    return %c0_i32, %c0_i32_0 : i32, i32
  }
  func.func @transform_6(%arg0: i32, %arg1: i32) -> (i32, i32) {
    %c0_i32 = arith.constant 0 : i32
    %c0_i32_0 = arith.constant 0 : i32
    %c0_i32_1 = arith.constant 0 : i32
    return %c0_i32, %c0_i32_0 : i32, i32
  }
  func.func @transform_7(%arg0: i32, %arg1: i32) -> (i32, i32) {
    %c0_i32 = arith.constant 0 : i32
    %c0_i32_0 = arith.constant 0 : i32
    %c0_i32_1 = arith.constant 0 : i32
    return %c0_i32, %c0_i32_0 : i32, i32
  }
  func.func @transform_8(%arg0: i32, %arg1: i32) -> (i32, i32, i32) {
    %c0_i32 = arith.constant 0 : i32
    %c0_i32_0 = arith.constant 0 : i32
    return %arg0, %arg1, %c0_i32 : i32, i32, i32
  }
}

</mosaic_0001>

<llo_original>
// kernel: basic_block_forward.2
$region0: #{basic_block_forward.2}
  #allocation0 [shape = 'u32[]', space=smem, size = 0x4, offset = 0x4, fixed_abs, tag = 'smem constant byte address 0x4 - core index']
  #allocation1 [shape = 'u32[144,128]{1,0:T(1,128)}', space=vmem, size = 0x12000, scoped, tag = 'internal scratch']
  %s0 = inlined_call_operand.vmem [shape: bf16[2,256,128], index: 0, kind: input, shape index: {}, may-alias: {0,1,2}]
  %s1 = inlined_call_operand.vmem [shape: bf16[2,256,128], index: 1, kind: input, shape index: {}, may-alias: {0,1,2}]
  %s2 = inlined_call_operand.vmem [shape: bf16[2,256,128], index: 2, kind: input, shape index: {}, may-alias: {0,1,2}]
  %s3 = inlined_call_operand.vmem [shape: f32[1,128], index: 3, kind: input, shape index: {}]
  %s4 = inlined_call_operand.vmem [shape: f32[1,128], index: 4, kind: input, shape index: {}]
  %s5 = inlined_call_operand.vmem [shape: bf16[1152,128], index: 5, kind: input, shape index: {}]
  %s6 = inlined_call_operand.vmem [shape: bf16[2,256,128], index: 6, kind: output, shape index: {0}]
  %s7 = inlined_call_operand.vmem [shape: f32[2,2,1,128], index: 7, kind: output, shape index: {1}]
  %s8 = inlined_call_operand.vmem [shape: f32[2,2,1,128], index: 8, kind: output, shape index: {2}]
  %9 = xla_tuple %s6, %s7, %s8
  %s10 = sld [smem:[#allocation0]]
  $region73: #{basic_block_forward.2} parent=0
    _
  %s12 = ssub.s32 1, %s10
  %s13 = scalar_select 0, %s12, %s10
  loop: start=0, step=1, limit=6
  $region2: #{basic_block_forward.2} parent=0 // loop_pre_header
    _
  $region3: #{basic_block_forward.2} parent=0 // loop_header
    %s15 = sphi 0, %s19
    %p16 = scmp.ge.s32.totalorder %s15, 6
    %s22 = sphi 0, %s34
    %s23 = sphi 0, %s30
    %s24 = sphi 0, %s22
    %s25 = sphi 0, %s23
    %s26 = sphi 0, %s24
    %s27 = sphi 0, %s25
    %s39 = sphi 0, %s41
    %s42 = sphi 0, %s39
    %s43 = sphi 0, %s42
    %s59 = sphi 0, %s43
    %s75 = sphi 0, %s77
    %s78 = sphi 0, %s75
    %s79 = sphi 0, %s78
    %s95 = sphi 0, %s79
    %s111 = sphi 0, %s113
    %s114 = sphi 0, %s111
    %s115 = sphi 0, %s114
    %s131 = sphi 0, %s115
    %s135 = sphi 0, %s135
    %s137 = sphi 0, %s135
    %s138 = sphi 0, %s137
    %s152 = sphi 0, %s138
    %s156 = sphi 0, %s156
    %s158 = sphi 0, %s156
    %s159 = sphi 0, %s158
    %s173 = sphi 0, %s159
    %s177 = sphi 0, %s177
    %s179 = sphi 0, %s177
    %s180 = sphi 0, %s179
    %s194 = sphi 0, %s180
    %s202 = sphi 0, %s204
    %s205 = sphi 0, %s202
    %s206 = sphi 0, %s205
    %s222 = sphi 0, %s206
    %s230 = sphi 0, %s232
    %s233 = sphi 0, %s230
    %s234 = sphi 0, %s233
    %s250 = sphi 0, %s234
    %s258 = sphi 0, %s260
    %s261 = sphi 0, %s258
    %s262 = sphi 0, %s261
    %s278 = sphi 0, %s262
  $region4: #{basic_block_forward.2} parent=0 // loop_header_branch
    %18 = sbr.rel (%p16) target = $region8
  $region5: #{basic_block_forward.2} parent=0 // loop_body
    %s20 = ssub.s32 %s15, 1
    %s21 = ssub.s32 %s15, 2
    %s28 = sadd.s32 1, %s23
    %p29 = scmp.ge.s32.totalorder %s28, 2
    %s30 = scalar_select %p29, 0, %s28
    %s31 = sadd.s32 1, %s22
    %s32 = scalar_select %p29, %s31, %s22
    %p33 = scmp.ge.s32.totalorder %s32, 2
    %s34 = scalar_select %p33, 0, %s32
    %s35 = ssub.s32 %s22, %s34
    %s36 = ssub.s32 %s23, %s30
    %s37 = sor.u32 %s35, %s36
    %p38 = scmp.eq.s32.totalorder %s37, 0
    %s40 = sadd.s32 %s39, 1
    %s41 = scalar_select %p38, %s39, %s40
    %p44 = pneg %p38
    %p45 = scmp.eq.s32.totalorder %s15, 3
    %p46 = por %p44, %p45
    %p47 = scmp.ne.s32.totalorder %s39, %s42
    %p48 = scmp.eq.s32.totalorder %s15, 0
    %p49 = por %p47, %p48
    %p50 = scmp.ne.s32.totalorder %s39, %s42
    %p51 = scmp.eq.s32.totalorder %s20, 3
    %p52 = por %p50, %p51
    %p53 = scmp.ne.s32.totalorder %s42, %s43
    %p54 = scmp.eq.s32.totalorder %s20, 0
    %p55 = por %p53, %p54
    %p56 = scmp.ne.s32.totalorder %s42, %s43
    %p57 = scmp.eq.s32.totalorder %s21, 3
    %p58 = por %p56, %p57
    %p60 = scmp.ne.s32.totalorder %s43, %s59
    %p61 = scmp.eq.s32.totalorder %s21, 0
    %p62 = por %p60, %p61
    %s63 = smul.u32 %s23, 8
    %s64 = ssub.s32 %s63, 1
    %p65 = scmp.gt.s32.totalorder %s64, 0
    %s66 = scalar_select %p65, %s64, 0
    %s67 = smul.u32 %s30, 8
    %s68 = ssub.s32 %s67, 1
    %p69 = scmp.gt.s32.totalorder %s68, 0
    %s70 = scalar_select %p69, %s68, 0
    %s71 = ssub.s32 %s22, %s34
    %s72 = ssub.s32 %s66, %s70
    %s73 = sor.u32 %s71, %s72
    %p74 = scmp.eq.s32.totalorder %s73, 0
    %s76 = sadd.s32 %s75, 1
    %s77 = scalar_select %p74, %s75, %s76
    %p80 = pneg %p74
    %p81 = scmp.eq.s32.totalorder %s15, 3
    %p82 = por %p80, %p81
    %p83 = scmp.ne.s32.totalorder %s75, %s78
    %p84 = scmp.eq.s32.totalorder %s15, 0
    %p85 = por %p83, %p84
    %p86 = scmp.ne.s32.totalorder %s75, %s78
    %p87 = scmp.eq.s32.totalorder %s20, 3
    %p88 = por %p86, %p87
    %p89 = scmp.ne.s32.totalorder %s78, %s79
    %p90 = scmp.eq.s32.totalorder %s20, 0
    %p91 = por %p89, %p90
    %p92 = scmp.ne.s32.totalorder %s78, %s79
    %p93 = scmp.eq.s32.totalorder %s21, 3
    %p94 = por %p92, %p93
    %p96 = scmp.ne.s32.totalorder %s79, %s95
    %p97 = scmp.eq.s32.totalorder %s21, 0
    %p98 = por %p96, %p97
    %s99 = sadd.s32 %s23, 1
    %s100 = smul.u32 %s99, 8
    %p101 = scmp.lt.s32.totalorder %s100, 15
    %s102 = scalar_select %p101, %s100, 15
    %s103 = sadd.s32 %s30, 1
    %s104 = smul.u32 %s103, 8
    %p105 = scmp.lt.s32.totalorder %s104, 15
    %s106 = scalar_select %p105, %s104, 15
    %s107 = ssub.s32 %s22, %s34
    %s108 = ssub.s32 %s102, %s106
    %s109 = sor.u32 %s107, %s108
    %p110 = scmp.eq.s32.totalorder %s109, 0
    %s112 = sadd.s32 %s111, 1
    %s113 = scalar_select %p110, %s111, %s112
    %p116 = pneg %p110
    %p117 = scmp.eq.s32.totalorder %s15, 3
    %p118 = por %p116, %p117
    %p119 = scmp.ne.s32.totalorder %s111, %s114
    %p120 = scmp.eq.s32.totalorder %s15, 0
    %p121 = por %p119, %p120
    %p122 = scmp.ne.s32.totalorder %s111, %s114
    %p123 = scmp.eq.s32.totalorder %s20, 3
    %p124 = por %p122, %p123
    %p125 = scmp.ne.s32.totalorder %s114, %s115
    %p126 = scmp.eq.s32.totalorder %s20, 0
    %p127 = por %p125, %p126
    %p128 = scmp.ne.s32.totalorder %s114, %s115
    %p129 = scmp.eq.s32.totalorder %s21, 3
    %p130 = por %p128, %p129
    %p132 = scmp.ne.s32.totalorder %s115, %s131
    %p133 = scmp.eq.s32.totalorder %s21, 0
    %p134 = por %p132, %p133
    %s136 = sadd.s32 %s135, 1
    %p139 = scmp.eq.s32.totalorder %s15, 3
    %p140 = scmp.ne.s32.totalorder %s135, %s137
    %p141 = scmp.eq.s32.totalorder %s15, 0
    %p142 = por %p140, %p141
    %p143 = scmp.ne.s32.totalorder %s135, %s137
    %p144 = scmp.eq.s32.totalorder %s20, 3
    %p145 = por %p143, %p144
    %p146 = scmp.ne.s32.totalorder %s137, %s138
    %p147 = scmp.eq.s32.totalorder %s20, 0
    %p148 = por %p146, %p147
    %p149 = scmp.ne.s32.totalorder %s137, %s138
    %p150 = scmp.eq.s32.totalorder %s21, 3
    %p151 = por %p149, %p150
    %p153 = scmp.ne.s32.totalorder %s138, %s152
    %p154 = scmp.eq.s32.totalorder %s21, 0
    %p155 = por %p153, %p154
    %s157 = sadd.s32 %s156, 1
    %p160 = scmp.eq.s32.totalorder %s15, 3
    %p161 = scmp.ne.s32.totalorder %s156, %s158
    %p162 = scmp.eq.s32.totalorder %s15, 0
    %p163 = por %p161, %p162
    %p164 = scmp.ne.s32.totalorder %s156, %s158
    %p165 = scmp.eq.s32.totalorder %s20, 3
    %p166 = por %p164, %p165
    %p167 = scmp.ne.s32.totalorder %s158, %s159
    %p168 = scmp.eq.s32.totalorder %s20, 0
    %p169 = por %p167, %p168
    %p170 = scmp.ne.s32.totalorder %s158, %s159
    %p171 = scmp.eq.s32.totalorder %s21, 3
    %p172 = por %p170, %p171
    %p174 = scmp.ne.s32.totalorder %s159, %s173
    %p175 = scmp.eq.s32.totalorder %s21, 0
    %p176 = por %p174, %p175
    %s178 = sadd.s32 %s177, 1
    %p181 = scmp.eq.s32.totalorder %s15, 3
    %p182 = scmp.ne.s32.totalorder %s177, %s179
    %p183 = scmp.eq.s32.totalorder %s15, 0
    %p184 = por %p182, %p183
    %p185 = scmp.ne.s32.totalorder %s177, %s179
    %p186 = scmp.eq.s32.totalorder %s20, 3
    %p187 = por %p185, %p186
    %p188 = scmp.ne.s32.totalorder %s179, %s180
    %p189 = scmp.eq.s32.totalorder %s20, 0
    %p190 = por %p188, %p189
    %p191 = scmp.ne.s32.totalorder %s179, %s180
    %p192 = scmp.eq.s32.totalorder %s21, 3
    %p193 = por %p191, %p192
    %p195 = scmp.ne.s32.totalorder %s180, %s194
    %p196 = scmp.eq.s32.totalorder %s21, 0
    %p197 = por %p195, %p196
    %s198 = ssub.s32 %s22, %s34
    %s199 = ssub.s32 %s23, %s30
    %s200 = sor.u32 %s198, %s199
    %p201 = scmp.eq.s32.totalorder %s200, 0
    %s203 = sadd.s32 %s202, 1
    %s204 = scalar_select %p201, %s202, %s203
    %p207 = pneg %p201
    %p208 = scmp.eq.s32.totalorder %s15, 3
    %p209 = por %p207, %p208
    %p210 = scmp.ne.s32.totalorder %s202, %s205
    %p211 = scmp.eq.s32.totalorder %s15, 0
    %p212 = por %p210, %p211
    %p213 = scmp.ne.s32.totalorder %s202, %s205
    %p214 = scmp.eq.s32.totalorder %s20, 3
    %p215 = por %p213, %p214
    %p216 = scmp.ne.s32.totalorder %s205, %s206
    %p217 = scmp.eq.s32.totalorder %s20, 0
    %p218 = por %p216, %p217
    %p219 = scmp.ne.s32.totalorder %s205, %s206
    %p220 = scmp.eq.s32.totalorder %s21, 3
    %p221 = por %p219, %p220
    %p223 = scmp.ne.s32.totalorder %s206, %s222
    %p224 = scmp.eq.s32.totalorder %s21, 0
    %p225 = por %p223, %p224
    %s226 = ssub.s32 %s22, %s34
    %s227 = ssub.s32 %s23, %s30
    %s228 = sor.u32 %s226, %s227
    %p229 = scmp.eq.s32.totalorder %s228, 0
    %s231 = sadd.s32 %s230, 1
    %s232 = scalar_select %p229, %s230, %s231
    %p235 = pneg %p229
    %p236 = scmp.eq.s32.totalorder %s15, 3
    %p237 = por %p235, %p236
    %p238 = scmp.ne.s32.totalorder %s230, %s233
    %p239 = scmp.eq.s32.totalorder %s15, 0
    %p240 = por %p238, %p239
    %p241 = scmp.ne.s32.totalorder %s230, %s233
    %p242 = scmp.eq.s32.totalorder %s20, 3
    %p243 = por %p241, %p242
    %p244 = scmp.ne.s32.totalorder %s233, %s234
    %p245 = scmp.eq.s32.totalorder %s20, 0
    %p246 = por %p244, %p245
    %p247 = scmp.ne.s32.totalorder %s233, %s234
    %p248 = scmp.eq.s32.totalorder %s21, 3
    %p249 = por %p247, %p248
    %p251 = scmp.ne.s32.totalorder %s234, %s250
    %p252 = scmp.eq.s32.totalorder %s21, 0
    %p253 = por %p251, %p252
    %s254 = ssub.s32 %s22, %s34
    %s255 = ssub.s32 %s23, %s30
    %s256 = sor.u32 %s254, %s255
    %p257 = scmp.eq.s32.totalorder %s256, 0
    %s259 = sadd.s32 %s258, 1
    %s260 = scalar_select %p257, %s258, %s259
    %p263 = pneg %p257
    %p264 = scmp.eq.s32.totalorder %s15, 3
    %p265 = por %p263, %p264
    %p266 = scmp.ne.s32.totalorder %s258, %s261
    %p267 = scmp.eq.s32.totalorder %s15, 0
    %p268 = por %p266, %p267
    %p269 = scmp.ne.s32.totalorder %s258, %s261
    %p270 = scmp.eq.s32.totalorder %s20, 3
    %p271 = por %p269, %p270
    %p272 = scmp.ne.s32.totalorder %s261, %s262
    %p273 = scmp.eq.s32.totalorder %s20, 0
    %p274 = por %p272, %p273
    %p275 = scmp.ne.s32.totalorder %s261, %s262
    %p276 = scmp.eq.s32.totalorder %s21, 3
    %p277 = por %p275, %p276
    %p279 = scmp.ne.s32.totalorder %s262, %s278
    %p280 = scmp.eq.s32.totalorder %s21, 0
    %p281 = por %p279, %p280
    %p282 = scmp.le.s32.totalorder 1, %s15
    %p283 = scmp.lt.s32.totalorder %s15, 5
    %p284 = pnand %p282, %p283
    %p285 = pneg %p284
    // Predicated region
    $region9: #{basic_block_forward.2} parent=5 // pred_check
      _
    $region10: #{basic_block_forward.2} parent=5 // pred_check_branch
      %287 = sbr.rel (%p284) target = $region12
    $region11: #{basic_block_forward.2} parent=5 // pred_region
      %s288 = ssub.s32 %s15, 1
      // Predicated region
      $region13: #{basic_block_forward.2} parent=11 // pred_check
        %p289 = pneg %p148
      $region14: #{basic_block_forward.2} parent=11 // pred_check_branch
        %291 = sbr.rel (%p289) target = $region16
      $region15: #{basic_block_forward.2} parent=11 // pred_region
        _
      $region16: #{basic_block_forward.2} parent=11 // pred_fallthru
        _
      // Predicated region
      $region17: #{basic_block_forward.2} parent=11 // pred_check
        %p292 = pneg %p169
      $region18: #{basic_block_forward.2} parent=11 // pred_check_branch
        %294 = sbr.rel (%p292) target = $region20
      $region19: #{basic_block_forward.2} parent=11 // pred_region
        _
      $region20: #{basic_block_forward.2} parent=11 // pred_fallthru
        _
      // Predicated region
      $region21: #{basic_block_forward.2} parent=11 // pred_check
        %p295 = pneg %p190
      $region22: #{basic_block_forward.2} parent=11 // pred_check_branch
        %297 = sbr.rel (%p295) target = $region24
      $region23: #{basic_block_forward.2} parent=11 // pred_region
        _
      $region24: #{basic_block_forward.2} parent=11 // pred_fallthru
        _
    $region12: #{basic_block_forward.2} parent=5 // pred_fallthru
      _
    %p298 = scmp.lt.s32.totalorder %s15, 4
    // Predicated region
    $region25: #{basic_block_forward.2} parent=5 // pred_check
      %p299 = pneg %p298
    $region26: #{basic_block_forward.2} parent=5 // pred_check_branch
      %301 = sbr.rel (%p299) target = $region28
    $region27: #{basic_block_forward.2} parent=5 // pred_region
      // Predicated region
      $region29: #{basic_block_forward.2} parent=27 // pred_check
        %p302 = pneg %p49
      $region30: #{basic_block_forward.2} parent=27 // pred_check_branch
        %304 = sbr.rel (%p302) target = $region32
      $region31: #{basic_block_forward.2} parent=27 // pred_region
        %s305 = smul.u32 16, %s23
        %p306 = scmp.lt.s32.totalorder %s22, 1
        %s307 = scalar_select %p306, %s22, 1
        %p308 = scmp.lt.s32.totalorder %s305, 31
        %s309 = scalar_select %p308, %s305, 31
        %s310 = smul.addr %s307, 32
        %s311 = sadd.s32 %s309, %s310
        %s312 = smul.addr %s311, 4
        %s313 = scalar_lea.vmem %s0, %s312
        %s314 = smul.u32 16, %s23
      $region32: #{basic_block_forward.2} parent=27 // pred_fallthru
        _
      // Predicated region
      $region33: #{basic_block_forward.2} parent=27 // pred_check
        %p315 = pneg %p85
      $region34: #{basic_block_forward.2} parent=27 // pred_check_branch
        %317 = sbr.rel (%p315) target = $region36
      $region35: #{basic_block_forward.2} parent=27 // pred_region
        %s318 = smul.u32 %s23, 8
        %s319 = ssub.s32 %s318, 1
        %p320 = scmp.gt.s32.totalorder %s319, 0
        %s321 = scalar_select %p320, %s319, 0
        %s322 = smul.u32 2, %s321
        %p323 = scmp.lt.s32.totalorder %s22, 1
        %s324 = scalar_select %p323, %s22, 1
        %p325 = scmp.lt.s32.totalorder %s322, 31
        %s326 = scalar_select %p325, %s322, 31
        %s327 = smul.addr %s324, 32
        %s328 = sadd.s32 %s326, %s327
        %s329 = smul.addr %s328, 4
        %s330 = scalar_lea.vmem %s1, %s329
        %s331 = smul.u32 %s23, 8
        %s332 = ssub.s32 %s331, 1
        %p333 = scmp.gt.s32.totalorder %s332, 0
        %s334 = scalar_select %p333, %s332, 0
        %s335 = smul.u32 2, %s334
      $region36: #{basic_block_forward.2} parent=27 // pred_fallthru
        _
      // Predicated region
      $region37: #{basic_block_forward.2} parent=27 // pred_check
        %p336 = pneg %p121
      $region38: #{basic_block_forward.2} parent=27 // pred_check_branch
        %338 = sbr.rel (%p336) target = $region40
      $region39: #{basic_block_forward.2} parent=27 // pred_region
        %s339 = sadd.s32 %s23, 1
        %s340 = smul.u32 %s339, 8
        %p341 = scmp.lt.s32.totalorder %s340, 15
        %s342 = scalar_select %p341, %s340, 15
        %s343 = smul.u32 2, %s342
        %p344 = scmp.lt.s32.totalorder %s22, 1
        %s345 = scalar_select %p344, %s22, 1
        %p346 = scmp.lt.s32.totalorder %s343, 31
        %s347 = scalar_select %p346, %s343, 31
        %s348 = smul.addr %s345, 32
        %s349 = sadd.s32 %s347, %s348
        %s350 = smul.addr %s349, 4
        %s351 = scalar_lea.vmem %s2, %s350
        %s352 = sadd.s32 %s23, 1
        %s353 = smul.u32 %s352, 8
        %p354 = scmp.lt.s32.totalorder %s353, 15
        %s355 = scalar_select %p354, %s353, 15
        %s356 = smul.u32 2, %s355
      $region40: #{basic_block_forward.2} parent=27 // pred_fallthru
        _
    $region28: #{basic_block_forward.2} parent=5 // pred_fallthru
      _
    %p357 = scmp.le.s32.totalorder 1, %s15
    %p358 = scmp.lt.s32.totalorder %s15, 5
    %p359 = pnand %p357, %p358
    %p360 = pneg %p359
    // Predicated region
    $region41: #{basic_block_forward.2} parent=5 // pred_check
      _
    $region42: #{basic_block_forward.2} parent=5 // pred_check_branch
      %362 = sbr.rel (%p359) target = $region44
    $region43: #{basic_block_forward.2} parent=5 // pred_region
      %s363 = ssub.s32 %s15, 1
      %s364 = smul.u32 16, %s25
      %p365 = scmp.lt.s32.totalorder %s24, 1
      %s366 = scalar_select %p365, %s24, 1
      %p367 = scmp.lt.s32.totalorder %s364, 31
      %s368 = scalar_select %p367, %s364, 31
      %s369 = smul.addr %s366, 32
      %s370 = sadd.s32 %s368, %s369
      %s371 = smul.addr %s370, 4
      %s372 = scalar_lea.vmem %s0, %s371
      %p373 = pneg %p55
      %p374 = pneg %p52
      %s375 = smul.u32 %s25, 8
      %s376 = ssub.s32 %s375, 1
      %p377 = scmp.gt.s32.totalorder %s376, 0
      %s378 = scalar_select %p377, %s376, 0
      %s379 = smul.u32 2, %s378
      %p380 = scmp.lt.s32.totalorder %s24, 1
      %s381 = scalar_select %p380, %s24, 1
      %p382 = scmp.lt.s32.totalorder %s379, 31
      %s383 = scalar_select %p382, %s379, 31
      %s384 = smul.addr %s381, 32
      %s385 = sadd.s32 %s383, %s384
      %s386 = smul.addr %s385, 4
      %s387 = scalar_lea.vmem %s1, %s386
      %p388 = pneg %p91
      %p389 = pneg %p88
      %s390 = sadd.s32 %s25, 1
      %s391 = smul.u32 %s390, 8
      %p392 = scmp.lt.s32.totalorder %s391, 15
      %s393 = scalar_select %p392, %s391, 15
      %s394 = smul.u32 2, %s393
      %p395 = scmp.lt.s32.totalorder %s24, 1
      %s396 = scalar_select %p395, %s24, 1
      %p397 = scmp.lt.s32.totalorder %s394, 31
      %s398 = scalar_select %p397, %s394, 31
      %s399 = smul.addr %s396, 32
      %s400 = sadd.s32 %s398, %s399
      %s401 = smul.addr %s400, 4
      %s402 = scalar_lea.vmem %s2, %s401
      %p403 = pneg %p127
      %p404 = pneg %p124
      %p405 = pneg %p148
      %p406 = pneg %p145
      %p407 = pneg %p169
      %p408 = pneg %p166
      %p409 = pneg %p190
      %p410 = pneg %p187
      %p411 = pneg %p218
      %p412 = pneg %p215
      %s413 = smul.u32 16, %s25
      %p414 = scmp.lt.s32.totalorder %s24, 1
      %s415 = scalar_select %p414, %s24, 1
      %p416 = scmp.lt.s32.totalorder %s413, 31
      %s417 = scalar_select %p416, %s413, 31
      %s418 = smul.addr %s415, 32
      %s419 = sadd.s32 %s417, %s418
      %s420 = smul.addr %s419, 4
      %s421 = scalar_lea.vmem %s6, %s420
      %p422 = pneg %p246
      %p423 = pneg %p243
      %p424 = scmp.lt.s32.totalorder %s24, 1
      %s425 = scalar_select %p424, %s24, 1
      %p426 = scmp.lt.s32.totalorder %s25, 1
      %s427 = scalar_select %p426, %s25, 1
      %s428 = smul.addr %s425, 2
      %s429 = sadd.s32 %s427, %s428
      %s430 = scalar_lea.vmem %s7, %s429
      %p431 = pneg %p274
      %p432 = pneg %p271
      %p433 = scmp.lt.s32.totalorder %s24, 1
      %s434 = scalar_select %p433, %s24, 1
      %p435 = scmp.lt.s32.totalorder %s25, 1
      %s436 = scalar_select %p435, %s25, 1
      %s437 = smul.addr %s434, 2
      %s438 = sadd.s32 %s436, %s437
      %s439 = scalar_lea.vmem %s8, %s438
      %s440 = smul.u32 16, %s25
      %p441 = scmp.lt.s32.totalorder %s24, 1
      %s442 = scalar_select %p441, %s24, 1
      %p443 = scmp.lt.s32.totalorder %s440, 31
      %s444 = scalar_select %p443, %s440, 31
      %s445 = smul.addr %s442, 32
      %s446 = sadd.s32 %s444, %s445
      %s447 = smul.addr %s446, 4
      %s448 = scalar_lea.vmem %s0, %s447
      %s449 = smul.u32 16, %s25
      %s450 = smul.u32 %s25, 8
      %s451 = ssub.s32 %s450, 1
      %p452 = scmp.gt.s32.totalorder %s451, 0
      %s453 = scalar_select %p452, %s451, 0
      %s454 = smul.u32 2, %s453
      %p455 = scmp.lt.s32.totalorder %s24, 1
      %s456 = scalar_select %p455, %s24, 1
      %p457 = scmp.lt.s32.totalorder %s454, 31
      %s458 = scalar_select %p457, %s454, 31
      %s459 = smul.addr %s456, 32
      %s460 = sadd.s32 %s458, %s459
      %s461 = smul.addr %s460, 4
      %s462 = scalar_lea.vmem %s1, %s461
      %s463 = smul.u32 %s25, 8
      %s464 = ssub.s32 %s463, 1
      %p465 = scmp.gt.s32.totalorder %s464, 0
      %s466 = scalar_select %p465, %s464, 0
      %s467 = smul.u32 2, %s466
      %s468 = sadd.s32 %s25, 1
      %s469 = smul.u32 %s468, 8
      %p470 = scmp.lt.s32.totalorder %s469, 15
      %s471 = scalar_select %p470, %s469, 15
      %s472 = smul.u32 2, %s471
      %p473 = scmp.lt.s32.totalorder %s24, 1
      %s474 = scalar_select %p473, %s24, 1
      %p475 = scmp.lt.s32.totalorder %s472, 31
      %s476 = scalar_select %p475, %s472, 31
      %s477 = smul.addr %s474, 32
      %s478 = sadd.s32 %s476, %s477
      %s479 = smul.addr %s478, 4
      %s480 = scalar_lea.vmem %s2, %s479
      %s481 = sadd.s32 %s25, 1
      %s482 = smul.u32 %s481, 8
      %p483 = scmp.lt.s32.totalorder %s482, 15
      %s484 = scalar_select %p483, %s482, 15
      %s485 = smul.u32 2, %s484
      %s486 = smul.u32 16, %s25
      %p487 = scmp.lt.s32.totalorder %s24, 1
      %s488 = scalar_select %p487, %s24, 1
      %p489 = scmp.lt.s32.totalorder %s486, 31
      %s490 = scalar_select %p489, %s486, 31
      %s491 = smul.addr %s488, 32
      %s492 = sadd.s32 %s490, %s491
      %s493 = smul.addr %s492, 4
      %s494 = scalar_lea.vmem %s6, %s493
      %s495 = smul.u32 16, %s25
      %p496 = scmp.lt.s32.totalorder %s24, 1
      %s497 = scalar_select %p496, %s24, 1
      %p498 = scmp.lt.s32.totalorder %s25, 1
      %s499 = scalar_select %p498, %s25, 1
      %s500 = smul.addr %s497, 2
      %s501 = sadd.s32 %s499, %s500
      %s502 = scalar_lea.vmem %s7, %s501
      %p503 = scmp.lt.s32.totalorder %s24, 1
      %s504 = scalar_select %p503, %s24, 1
      %p505 = scmp.lt.s32.totalorder %s25, 1
      %s506 = scalar_select %p505, %s25, 1
      %s507 = smul.addr %s504, 2
      %s508 = sadd.s32 %s506, %s507
      %s509 = scalar_lea.vmem %s8, %s508
      %v511 = vld [vmem:[%s3] sm:$0x1]
      %v512 = vld [vmem:[%s4] sm:$0x1]
      %v513 = vld [vmem:[%s448] sm:$0xf]
      %v514 = vld [vmem:[%s448 + $0x4] sm:$0xf]
      %v515 = vld [vmem:[%s448 + $0x8] sm:$0xf]
      %v516 = vld [vmem:[%s448 + $0xc] sm:$0xf]
      %v517 = vld [vmem:[%s448 + $0x10] sm:$0xf]
      %v518 = vld [vmem:[%s448 + $0x14] sm:$0xf]
      %v519 = vld [vmem:[%s448 + $0x18] sm:$0xf]
      %v520 = vld [vmem:[%s448 + $0x1c] sm:$0xf]
      %v521 = vld [vmem:[%s448 + $0x20] sm:$0xf]
      %v522 = vld [vmem:[%s448 + $0x24] sm:$0xf]
      %v523 = vld [vmem:[%s448 + $0x28] sm:$0xf]
      %v524 = vld [vmem:[%s448 + $0x2c] sm:$0xf]
      %v525 = vld [vmem:[%s448 + $0x30] sm:$0xf]
      %v526 = vld [vmem:[%s448 + $0x34] sm:$0xf]
      %v527 = vld [vmem:[%s448 + $0x38] sm:$0xf]
      %v528 = vld [vmem:[%s448 + $0x3c] sm:$0xf]
      %v529 = vunpack.c.l.bf16 %v513
      %v530 = vunpack.c.l.bf16 %v514
      %v531 = vunpack.c.l.bf16 %v515
      %v532 = vunpack.c.l.bf16 %v516
      %v533 = vunpack.c.l.bf16 %v517
      %v534 = vunpack.c.l.bf16 %v518
      %v535 = vunpack.c.l.bf16 %v519
      %v536 = vunpack.c.l.bf16 %v520
      %v537 = vunpack.c.l.bf16 %v521
      %v538 = vunpack.c.l.bf16 %v522
      %v539 = vunpack.c.l.bf16 %v523
      %v540 = vunpack.c.l.bf16 %v524
      %v541 = vunpack.c.l.bf16 %v525
      %v542 = vunpack.c.l.bf16 %v526
      %v543 = vunpack.c.l.bf16 %v527
      %v544 = vunpack.c.l.bf16 %v528
      %v546 = vlaneseq
      %v547 = vshrl.u32 %v546, 7
      %v548 = vsub.s32 0, %v547
      %v549 = vrot.slane %v511, %v548
      %v551 = vmul.f32 %v529, %v549
      %v552 = vmul.f32 %v530, %v549
      %v553 = vmul.f32 %v531, %v549
      %v554 = vmul.f32 %v532, %v549
      %v555 = vmul.f32 %v533, %v549
      %v556 = vmul.f32 %v534, %v549
      %v557 = vmul.f32 %v535, %v549
      %v558 = vmul.f32 %v536, %v549
      %v559 = vmul.f32 %v537, %v549
      %v560 = vmul.f32 %v538, %v549
      %v561 = vmul.f32 %v539, %v549
      %v562 = vmul.f32 %v540, %v549
      %v563 = vmul.f32 %v541, %v549
      %v564 = vmul.f32 %v542, %v549
      %v565 = vmul.f32 %v543, %v549
      %v566 = vmul.f32 %v544, %v549
      %v568 = vlaneseq
      %v569 = vshrl.u32 %v568, 7
      %v570 = vsub.s32 0, %v569
      %v571 = vrot.slane %v512, %v570
      %v573 = vadd.f32 %v551, %v571
      %v574 = vadd.f32 %v552, %v571
      %v575 = vadd.f32 %v553, %v571
      %v576 = vadd.f32 %v554, %v571
      %v577 = vadd.f32 %v555, %v571
      %v578 = vadd.f32 %v556, %v571
      %v579 = vadd.f32 %v557, %v571
      %v580 = vadd.f32 %v558, %v571
      %v581 = vadd.f32 %v559, %v571
      %v582 = vadd.f32 %v560, %v571
      %v583 = vadd.f32 %v561, %v571
      %v584 = vadd.f32 %v562, %v571
      %v585 = vadd.f32 %v563, %v571
      %v586 = vadd.f32 %v564, %v571
      %v587 = vadd.f32 %v565, %v571
      %v588 = vadd.f32 %v566, %v571
      %v589 = vmax.f32 %v573, 0.0
      %v590 = vmax.f32 %v574, 0.0
      %v591 = vmax.f32 %v575, 0.0
      %v592 = vmax.f32 %v576, 0.0
      %v593 = vmax.f32 %v577, 0.0
      %v594 = vmax.f32 %v578, 0.0
      %v595 = vmax.f32 %v579, 0.0
      %v596 = vmax.f32 %v580, 0.0
      %v597 = vmax.f32 %v581, 0.0
      %v598 = vmax.f32 %v582, 0.0
      %v599 = vmax.f32 %v583, 0.0
      %v600 = vmax.f32 %v584, 0.0
      %v601 = vmax.f32 %v585, 0.0
      %v602 = vmax.f32 %v586, 0.0
      %v603 = vmax.f32 %v587, 0.0
      %v604 = vmax.f32 %v588, 0.0
      %v605 = vld [vmem:[%s462] sm:$0xf]
      %v606 = vld [vmem:[%s462 + $0x4] sm:$0xf]
      %v607 = vunpack.c.l.bf16 %v605
      %v608 = vunpack.c.l.bf16 %v606
      %v609 = vmul.f32 %v607, %v549
      %v610 = vmul.f32 %v608, %v549
      %v611 = vadd.f32 %v609, %v571
      %v612 = vadd.f32 %v610, %v571
      %v613 = vmax.f32 %v611, 0.0
      %v614 = vmax.f32 %v612, 0.0
      %p615 = scmp.eq.s32.totalorder %s25, 0
      %s616 = scalar_select %p615, 0.0, 1.0
      %v617 = vstv %s616
      %v618 = vmul.f32 %v613, %v617
      %v619 = vmul.f32 %v614, %v617
      %v620 = vld [vmem:[%s480] sm:$0xf]
      %v621 = vld [vmem:[%s480 + $0x4] sm:$0xf]
      %v622 = vunpack.c.l.bf16 %v620
      %v623 = vunpack.c.l.bf16 %v621
      %v624 = vmul.f32 %v622, %v549
      %v625 = vmul.f32 %v623, %v549
      %v626 = vadd.f32 %v624, %v571
      %v627 = vadd.f32 %v625, %v571
      %v628 = vmax.f32 %v626, 0.0
      %v629 = vmax.f32 %v627, 0.0
      %p630 = scmp.eq.s32.totalorder %s25, 1
      %s631 = scalar_select %p630, 0.0, 1.0
      %v632 = vstv %s631
      %v633 = vmul.f32 %v628, %v632
      %v634 = vmul.f32 %v629, %v632
      %v635 = vld [vmem:[%s5] sm:$0xf]
      %v636 = vld [vmem:[%s5 + $0x4] sm:$0xf]
      %v637 = vld [vmem:[%s5 + $0x8] sm:$0xf]
      %v638 = vld [vmem:[%s5 + $0xc] sm:$0xf]
      %v639 = vld [vmem:[%s5 + $0x10] sm:$0xf]
      %v640 = vld [vmem:[%s5 + $0x14] sm:$0xf]
      %v641 = vld [vmem:[%s5 + $0x18] sm:$0xf]
      %v642 = vld [vmem:[%s5 + $0x1c] sm:$0xf]
      %v643 = vld [vmem:[%s5 + $0x20] sm:$0xf]
      %v644 = vld [vmem:[%s5 + $0x24] sm:$0xf]
      %v645 = vld [vmem:[%s5 + $0x28] sm:$0xf]
      %v646 = vld [vmem:[%s5 + $0x2c] sm:$0xf]
      %v647 = vld [vmem:[%s5 + $0x30] sm:$0xf]
      %v648 = vld [vmem:[%s5 + $0x34] sm:$0xf]
      %v649 = vld [vmem:[%s5 + $0x38] sm:$0xf]
      %v650 = vld [vmem:[%s5 + $0x3c] sm:$0xf]
      %v651 = vld [vmem:[%s5 + $0x40] sm:$0xf]
      %v652 = vld [vmem:[%s5 + $0x44] sm:$0xf]
      %v653 = vld [vmem:[%s5 + $0x48] sm:$0xf]
      %v654 = vld [vmem:[%s5 + $0x4c] sm:$0xf]
      %v655 = vld [vmem:[%s5 + $0x50] sm:$0xf]
      %v656 = vld [vmem:[%s5 + $0x54] sm:$0xf]
      %v657 = vld [vmem:[%s5 + $0x58] sm:$0xf]
      %v658 = vld [vmem:[%s5 + $0x5c] sm:$0xf]
      %v659 = vld [vmem:[%s5 + $0x60] sm:$0xf]
      %v660 = vld [vmem:[%s5 + $0x64] sm:$0xf]
      %v661 = vld [vmem:[%s5 + $0x68] sm:$0xf]
      %v662 = vld [vmem:[%s5 + $0x6c] sm:$0xf]
      %v663 = vld [vmem:[%s5 + $0x70] sm:$0xf]
      %v664 = vld [vmem:[%s5 + $0x74] sm:$0xf]
      %v665 = vld [vmem:[%s5 + $0x78] sm:$0xf]
      %v666 = vld [vmem:[%s5 + $0x7c] sm:$0xf]
      %v667 = vld [vmem:[%s5 + $0x80] sm:$0xf]
      %v668 = vld [vmem:[%s5 + $0x84] sm:$0xf]
      %v669 = vld [vmem:[%s5 + $0x88] sm:$0xf]
      %v670 = vld [vmem:[%s5 + $0x8c] sm:$0xf]
      %v671 = vld [vmem:[%s5 + $0x90] sm:$0xf]
      %v672 = vld [vmem:[%s5 + $0x94] sm:$0xf]
      %v673 = vld [vmem:[%s5 + $0x98] sm:$0xf]
      %v674 = vld [vmem:[%s5 + $0x9c] sm:$0xf]
      %v675 = vld [vmem:[%s5 + $0xa0] sm:$0xf]
      %v676 = vld [vmem:[%s5 + $0xa4] sm:$0xf]
      %v677 = vld [vmem:[%s5 + $0xa8] sm:$0xf]
      %v678 = vld [vmem:[%s5 + $0xac] sm:$0xf]
      %v679 = vld [vmem:[%s5 + $0xb0] sm:$0xf]
      %v680 = vld [vmem:[%s5 + $0xb4] sm:$0xf]
      %v681 = vld [vmem:[%s5 + $0xb8] sm:$0xf]
      %v682 = vld [vmem:[%s5 + $0xbc] sm:$0xf]
      %v683 = vld [vmem:[%s5 + $0xc0] sm:$0xf]
      %v684 = vld [vmem:[%s5 + $0xc4] sm:$0xf]
      %v685 = vld [vmem:[%s5 + $0xc8] sm:$0xf]
      %v686 = vld [vmem:[%s5 + $0xcc] sm:$0xf]
      %v687 = vld [vmem:[%s5 + $0xd0] sm:$0xf]
      %v688 = vld [vmem:[%s5 + $0xd4] sm:$0xf]
      %v689 = vld [vmem:[%s5 + $0xd8] sm:$0xf]
      %v690 = vld [vmem:[%s5 + $0xdc] sm:$0xf]
      %v691 = vld [vmem:[%s5 + $0xe0] sm:$0xf]
      %v692 = vld [vmem:[%s5 + $0xe4] sm:$0xf]
      %v693 = vld [vmem:[%s5 + $0xe8] sm:$0xf]
      %v694 = vld [vmem:[%s5 + $0xec] sm:$0xf]
      %v695 = vld [vmem:[%s5 + $0xf0] sm:$0xf]
      %v696 = vld [vmem:[%s5 + $0xf4] sm:$0xf]
      %v697 = vld [vmem:[%s5 + $0xf8] sm:$0xf]
      %v698 = vld [vmem:[%s5 + $0xfc] sm:$0xf]
      %v699 = vld [vmem:[%s5 + $0x100] sm:$0xf]
      %v700 = vld [vmem:[%s5 + $0x104] sm:$0xf]
      %v701 = vld [vmem:[%s5 + $0x108] sm:$0xf]
      %v702 = vld [vmem:[%s5 + $0x10c] sm:$0xf]
      %v703 = vld [vmem:[%s5 + $0x110] sm:$0xf]
      %v704 = vld [vmem:[%s5 + $0x114] sm:$0xf]
      %v705 = vld [vmem:[%s5 + $0x118] sm:$0xf]
      %v706 = vld [vmem:[%s5 + $0x11c] sm:$0xf]
      %v707 = vld [vmem:[%s5 + $0x120] sm:$0xf]
      %v708 = vld [vmem:[%s5 + $0x124] sm:$0xf]
      %v709 = vld [vmem:[%s5 + $0x128] sm:$0xf]
      %v710 = vld [vmem:[%s5 + $0x12c] sm:$0xf]
      %v711 = vld [vmem:[%s5 + $0x130] sm:$0xf]
      %v712 = vld [vmem:[%s5 + $0x134] sm:$0xf]
      %v713 = vld [vmem:[%s5 + $0x138] sm:$0xf]
      %v714 = vld [vmem:[%s5 + $0x13c] sm:$0xf]
      %v715 = vld [vmem:[%s5 + $0x140] sm:$0xf]
      %v716 = vld [vmem:[%s5 + $0x144] sm:$0xf]
      %v717 = vld [vmem:[%s5 + $0x148] sm:$0xf]
      %v718 = vld [vmem:[%s5 + $0x14c] sm:$0xf]
      %v719 = vld [vmem:[%s5 + $0x150] sm:$0xf]
      %v720 = vld [vmem:[%s5 + $0x154] sm:$0xf]
      %v721 = vld [vmem:[%s5 + $0x158] sm:$0xf]
      %v722 = vld [vmem:[%s5 + $0x15c] sm:$0xf]
      %v723 = vld [vmem:[%s5 + $0x160] sm:$0xf]
      %v724 = vld [vmem:[%s5 + $0x164] sm:$0xf]
      %v725 = vld [vmem:[%s5 + $0x168] sm:$0xf]
      %v726 = vld [vmem:[%s5 + $0x16c] sm:$0xf]
      %v727 = vld [vmem:[%s5 + $0x170] sm:$0xf]
      %v728 = vld [vmem:[%s5 + $0x174] sm:$0xf]
      %v729 = vld [vmem:[%s5 + $0x178] sm:$0xf]
      %v730 = vld [vmem:[%s5 + $0x17c] sm:$0xf]
      %v731 = vld [vmem:[%s5 + $0x180] sm:$0xf]
      %v732 = vld [vmem:[%s5 + $0x184] sm:$0xf]
      %v733 = vld [vmem:[%s5 + $0x188] sm:$0xf]
      %v734 = vld [vmem:[%s5 + $0x18c] sm:$0xf]
      %v735 = vld [vmem:[%s5 + $0x190] sm:$0xf]
      %v736 = vld [vmem:[%s5 + $0x194] sm:$0xf]
      %v737 = vld [vmem:[%s5 + $0x198] sm:$0xf]
      %v738 = vld [vmem:[%s5 + $0x19c] sm:$0xf]
      %v739 = vld [vmem:[%s5 + $0x1a0] sm:$0xf]
      %v740 = vld [vmem:[%s5 + $0x1a4] sm:$0xf]
      %v741 = vld [vmem:[%s5 + $0x1a8] sm:$0xf]
      %v742 = vld [vmem:[%s5 + $0x1ac] sm:$0xf]
      %v743 = vld [vmem:[%s5 + $0x1b0] sm:$0xf]
      %v744 = vld [vmem:[%s5 + $0x1b4] sm:$0xf]
      %v745 = vld [vmem:[%s5 + $0x1b8] sm:$0xf]
      %v746 = vld [vmem:[%s5 + $0x1bc] sm:$0xf]
      %v747 = vld [vmem:[%s5 + $0x1c0] sm:$0xf]
      %v748 = vld [vmem:[%s5 + $0x1c4] sm:$0xf]
      %v749 = vld [vmem:[%s5 + $0x1c8] sm:$0xf]
      %v750 = vld [vmem:[%s5 + $0x1cc] sm:$0xf]
      %v751 = vld [vmem:[%s5 + $0x1d0] sm:$0xf]
      %v752 = vld [vmem:[%s5 + $0x1d4] sm:$0xf]
      %v753 = vld [vmem:[%s5 + $0x1d8] sm:$0xf]
      %v754 = vld [vmem:[%s5 + $0x1dc] sm:$0xf]
      %v755 = vld [vmem:[%s5 + $0x1e0] sm:$0xf]
      %v756 = vld [vmem:[%s5 + $0x1e4] sm:$0xf]
      %v757 = vld [vmem:[%s5 + $0x1e8] sm:$0xf]
      %v758 = vld [vmem:[%s5 + $0x1ec] sm:$0xf]
      %v759 = vld [vmem:[%s5 + $0x1f0] sm:$0xf]
      %v760 = vld [vmem:[%s5 + $0x1f4] sm:$0xf]
      %v761 = vld [vmem:[%s5 + $0x1f8] sm:$0xf]
      %v762 = vld [vmem:[%s5 + $0x1fc] sm:$0xf]
      %v763 = vld [vmem:[%s5 + $0x200] sm:$0xf]
      %v764 = vld [vmem:[%s5 + $0x204] sm:$0xf]
      %v765 = vld [vmem:[%s5 + $0x208] sm:$0xf]
      %v766 = vld [vmem:[%s5 + $0x20c] sm:$0xf]
      %v767 = vld [vmem:[%s5 + $0x210] sm:$0xf]
      %v768 = vld [vmem:[%s5 + $0x214] sm:$0xf]
      %v769 = vld [vmem:[%s5 + $0x218] sm:$0xf]
      %v770 = vld [vmem:[%s5 + $0x21c] sm:$0xf]
      %v771 = vld [vmem:[%s5 + $0x220] sm:$0xf]
      %v772 = vld [vmem:[%s5 + $0x224] sm:$0xf]
      %v773 = vld [vmem:[%s5 + $0x228] sm:$0xf]
      %v774 = vld [vmem:[%s5 + $0x22c] sm:$0xf]
      %v775 = vld [vmem:[%s5 + $0x230] sm:$0xf]
      %v776 = vld [vmem:[%s5 + $0x234] sm:$0xf]
      %v777 = vld [vmem:[%s5 + $0x238] sm:$0xf]
      %v778 = vld [vmem:[%s5 + $0x23c] sm:$0xf]
      %v779 = vlaneseq
      %v780 = vshrl.u32 %v779, 7
      %v781 = vadd.s32 %v780, 8
      %v782 = vadd.s32 %v780, 16
      %v783 = vadd.s32 %v780, 24
      %v784 = vadd.s32 %v780, 32
      %v785 = vadd.s32 %v780, 40
      %v786 = vadd.s32 %v780, 48
      %v787 = vadd.s32 %v780, 56
      %v788 = vadd.s32 %v780, 64
      %v789 = vadd.s32 %v780, 72
      %v790 = vadd.s32 %v780, 80
      %v791 = vadd.s32 %v780, 88
      %v792 = vadd.s32 %v780, 96
      %v793 = vadd.s32 %v780, 104
      %v794 = vadd.s32 %v780, 112
      %v795 = vadd.s32 %v780, 120
      %v796 = vadd.s32 %v780, 128
      %v797 = vadd.s32 %v780, 136
      %v798 = vadd.s32 %v780, 144
      %v799 = vadd.s32 %v780, 152
      %vm800 = vcmp.lt.s32.totalorder %v780, 0
      %v801 = vsub.s32 0, %v780
      %v802 = vsel %vm800, %v801, %v780
      %v803 = vshrl.u32 %v802, 4
      %v804 = vand.u32 %v802, 15
      %v805 = vsub.s32 0, %v804
      %v806 = vsel %vm800, %v805, %v804
      %vm807 = vcmp.lt.s32.totalorder %v781, 0
      %v808 = vsub.s32 0, %v781
      %v809 = vsel %vm807, %v808, %v781
      %v810 = vshrl.u32 %v809, 4
      %v811 = vand.u32 %v809, 15
      %v812 = vsub.s32 0, %v811
      %v813 = vsel %vm807, %v812, %v811
      %vm814 = vcmp.lt.s32.totalorder %v782, 0
      %v815 = vsub.s32 0, %v782
      %v816 = vsel %vm814, %v815, %v782
      %v817 = vshrl.u32 %v816, 4
      %v818 = vand.u32 %v816, 15
      %v819 = vsub.s32 0, %v818
      %v820 = vsel %vm814, %v819, %v818
      %vm821 = vcmp.lt.s32.totalorder %v783, 0
      %v822 = vsub.s32 0, %v783
      %v823 = vsel %vm821, %v822, %v783
      %v824 = vshrl.u32 %v823, 4
      %v825 = vand.u32 %v823, 15
      %v826 = vsub.s32 0, %v825
      %v827 = vsel %vm821, %v826, %v825
      %vm828 = vcmp.lt.s32.totalorder %v784, 0
      %v829 = vsub.s32 0, %v784
      %v830 = vsel %vm828, %v829, %v784
      %v831 = vshrl.u32 %v830, 4
      %v832 = vand.u32 %v830, 15
      %v833 = vsub.s32 0, %v832
      %v834 = vsel %vm828, %v833, %v832
      %vm835 = vcmp.lt.s32.totalorder %v785, 0
      %v836 = vsub.s32 0, %v785
      %v837 = vsel %vm835, %v836, %v785
      %v838 = vshrl.u32 %v837, 4
      %v839 = vand.u32 %v837, 15
      %v840 = vsub.s32 0, %v839
      %v841 = vsel %vm835, %v840, %v839
      %vm842 = vcmp.lt.s32.totalorder %v786, 0
      %v843 = vsub.s32 0, %v786
      %v844 = vsel %vm842, %v843, %v786
      %v845 = vshrl.u32 %v844, 4
      %v846 = vand.u32 %v844, 15
      %v847 = vsub.s32 0, %v846
      %v848 = vsel %vm842, %v847, %v846
      %vm849 = vcmp.lt.s32.totalorder %v787, 0
      %v850 = vsub.s32 0, %v787
      %v851 = vsel %vm849, %v850, %v787
      %v852 = vshrl.u32 %v851, 4
      %v853 = vand.u32 %v851, 15
      %v854 = vsub.s32 0, %v853
      %v855 = vsel %vm849, %v854, %v853
      %vm856 = vcmp.lt.s32.totalorder %v788, 0
      %v857 = vsub.s32 0, %v788
      %v858 = vsel %vm856, %v857, %v788
      %v859 = vshrl.u32 %v858, 4
      %v860 = vand.u32 %v858, 15
      %v861 = vsub.s32 0, %v860
      %v862 = vsel %vm856, %v861, %v860
      %vm863 = vcmp.lt.s32.totalorder %v789, 0
      %v864 = vsub.s32 0, %v789
      %v865 = vsel %vm863, %v864, %v789
      %v866 = vshrl.u32 %v865, 4
      %v867 = vand.u32 %v865, 15
      %v868 = vsub.s32 0, %v867
      %v869 = vsel %vm863, %v868, %v867
      %vm870 = vcmp.lt.s32.totalorder %v790, 0
      %v871 = vsub.s32 0, %v790
      %v872 = vsel %vm870, %v871, %v790
      %v873 = vshrl.u32 %v872, 4
      %v874 = vand.u32 %v872, 15
      %v875 = vsub.s32 0, %v874
      %v876 = vsel %vm870, %v875, %v874
      %vm877 = vcmp.lt.s32.totalorder %v791, 0
      %v878 = vsub.s32 0, %v791
      %v879 = vsel %vm877, %v878, %v791
      %v880 = vshrl.u32 %v879, 4
      %v881 = vand.u32 %v879, 15
      %v882 = vsub.s32 0, %v881
      %v883 = vsel %vm877, %v882, %v881
      %vm884 = vcmp.lt.s32.totalorder %v792, 0
      %v885 = vsub.s32 0, %v792
      %v886 = vsel %vm884, %v885, %v792
      %v887 = vshrl.u32 %v886, 4
      %v888 = vand.u32 %v886, 15
      %v889 = vsub.s32 0, %v888
      %v890 = vsel %vm884, %v889, %v888
      %vm891 = vcmp.lt.s32.totalorder %v793, 0
      %v892 = vsub.s32 0, %v793
      %v893 = vsel %vm891, %v892, %v793
      %v894 = vshrl.u32 %v893, 4
      %v895 = vand.u32 %v893, 15
      %v896 = vsub.s32 0, %v895
      %v897 = vsel %vm891, %v896, %v895
      %vm898 = vcmp.lt.s32.totalorder %v794, 0
      %v899 = vsub.s32 0, %v794
      %v900 = vsel %vm898, %v899, %v794
      %v901 = vshrl.u32 %v900, 4
      %v902 = vand.u32 %v900, 15
      %v903 = vsub.s32 0, %v902
      %v904 = vsel %vm898, %v903, %v902
      %vm905 = vcmp.lt.s32.totalorder %v795, 0
      %v906 = vsub.s32 0, %v795
      %v907 = vsel %vm905, %v906, %v795
      %v908 = vshrl.u32 %v907, 4
      %v909 = vand.u32 %v907, 15
      %v910 = vsub.s32 0, %v909
      %v911 = vsel %vm905, %v910, %v909
      %vm912 = vcmp.lt.s32.totalorder %v796, 0
      %v913 = vsub.s32 0, %v796
      %v914 = vsel %vm912, %v913, %v796
      %v915 = vshrl.u32 %v914, 4
      %v916 = vand.u32 %v914, 15
      %v917 = vsub.s32 0, %v916
      %v918 = vsel %vm912, %v917, %v916
      %vm919 = vcmp.lt.s32.totalorder %v797, 0
      %v920 = vsub.s32 0, %v797
      %v921 = vsel %vm919, %v920, %v797
      %v922 = vshrl.u32 %v921, 4
      %v923 = vand.u32 %v921, 15
      %v924 = vsub.s32 0, %v923
      %v925 = vsel %vm919, %v924, %v923
      %vm926 = vcmp.lt.s32.totalorder %v798, 0
      %v927 = vsub.s32 0, %v798
      %v928 = vsel %vm926, %v927, %v798
      %v929 = vshrl.u32 %v928, 4
      %v930 = vand.u32 %v928, 15
      %v931 = vsub.s32 0, %v930
      %v932 = vsel %vm926, %v931, %v930
      %vm933 = vcmp.lt.s32.totalorder %v799, 0
      %v934 = vsub.s32 0, %v799
      %v935 = vsel %vm933, %v934, %v799
      %v936 = vshrl.u32 %v935, 4
      %v937 = vand.u32 %v935, 15
      %v938 = vsub.s32 0, %v937
      %v939 = vsel %vm933, %v938, %v937
      %vm940 = vcmp.ne.s32.totalorder %v806, 0
      %vm941 = vcmp.ne.s32.totalorder %v813, 0
      %vm942 = vcmp.ne.s32.totalorder %v820, 0
      %vm943 = vcmp.ne.s32.totalorder %v827, 0
      %vm944 = vcmp.ne.s32.totalorder %v834, 0
      %vm945 = vcmp.ne.s32.totalorder %v841, 0
      %vm946 = vcmp.ne.s32.totalorder %v848, 0
      %vm947 = vcmp.ne.s32.totalorder %v855, 0
      %vm948 = vcmp.ne.s32.totalorder %v862, 0
      %vm949 = vcmp.ne.s32.totalorder %v869, 0
      %vm950 = vcmp.ne.s32.totalorder %v876, 0
      %vm951 = vcmp.ne.s32.totalorder %v883, 0
      %vm952 = vcmp.ne.s32.totalorder %v890, 0
      %vm953 = vcmp.ne.s32.totalorder %v897, 0
      %vm954 = vcmp.ne.s32.totalorder %v904, 0
      %vm955 = vcmp.ne.s32.totalorder %v911, 0
      %vm956 = vcmp.ne.s32.totalorder %v918, 0
      %vm957 = vcmp.ne.s32.totalorder %v925, 0
      %vm958 = vcmp.ne.s32.totalorder %v932, 0
      %vm959 = vcmp.ne.s32.totalorder %v939, 0
      %vm960 = vcmp.lt.s32.totalorder %v806, 0
      %vm961 = vcmp.lt.s32.totalorder %v813, 0
      %vm962 = vcmp.lt.s32.totalorder %v820, 0
      %vm963 = vcmp.lt.s32.totalorder %v827, 0
      %vm964 = vcmp.lt.s32.totalorder %v834, 0
      %vm965 = vcmp.lt.s32.totalorder %v841, 0
      %vm966 = vcmp.lt.s32.totalorder %v848, 0
      %vm967 = vcmp.lt.s32.totalorder %v855, 0
      %vm968 = vcmp.lt.s32.totalorder %v862, 0
      %vm969 = vcmp.lt.s32.totalorder %v869, 0
      %vm970 = vcmp.lt.s32.totalorder %v876, 0
      %vm971 = vcmp.lt.s32.totalorder %v883, 0
      %vm972 = vcmp.lt.s32.totalorder %v890, 0
      %vm973 = vcmp.lt.s32.totalorder %v897, 0
      %vm974 = vcmp.lt.s32.totalorder %v904, 0
      %vm975 = vcmp.lt.s32.totalorder %v911, 0
      %vm976 = vcmp.lt.s32.totalorder %v918, 0
      %vm977 = vcmp.lt.s32.totalorder %v925, 0
      %vm978 = vcmp.lt.s32.totalorder %v932, 0
      %vm979 = vcmp.lt.s32.totalorder %v939, 0
      %vm980 = vmand %vm960, %vm940
      %vm981 = vmand %vm961, %vm941
      %vm982 = vmand %vm962, %vm942
      %vm983 = vmand %vm963, %vm943
      %vm984 = vmand %vm964, %vm944
      %vm985 = vmand %vm965, %vm945
      %vm986 = vmand %vm966, %vm946
      %vm987 = vmand %vm967, %vm947
      %vm988 = vmand %vm968, %vm948
      %vm989 = vmand %vm969, %vm949
      %vm990 = vmand %vm970, %vm950
      %vm991 = vmand %vm971, %vm951
      %vm992 = vmand %vm972, %vm952
      %vm993 = vmand %vm973, %vm953
      %vm994 = vmand %vm974, %vm954
      %vm995 = vmand %vm975, %vm955
      %vm996 = vmand %vm976, %vm956
      %vm997 = vmand %vm977, %vm957
      %vm998 = vmand %vm978, %vm958
      %vm999 = vmand %vm979, %vm959
      %v1000 = vadd.s32 %v806, 16
      %v1001 = vadd.s32 %v813, 16
      %v1002 = vadd.s32 %v820, 16
      %v1003 = vadd.s32 %v827, 16
      %v1004 = vadd.s32 %v834, 16
      %v1005 = vadd.s32 %v841, 16
      %v1006 = vadd.s32 %v848, 16
      %v1007 = vadd.s32 %v855, 16
      %v1008 = vadd.s32 %v862, 16
      %v1009 = vadd.s32 %v869, 16
      %v1010 = vadd.s32 %v876, 16
      %v1011 = vadd.s32 %v883, 16
      %v1012 = vadd.s32 %v890, 16
      %v1013 = vadd.s32 %v897, 16
      %v1014 = vadd.s32 %v904, 16
      %v1015 = vadd.s32 %v911, 16
      %v1016 = vadd.s32 %v918, 16
      %v1017 = vadd.s32 %v925, 16
      %v1018 = vadd.s32 %v932, 16
      %v1019 = vadd.s32 %v939, 16
      %v1020 = vsel %vm980, %v1000, %v806
      %v1021 = vsel %vm981, %v1001, %v813
      %v1022 = vsel %vm982, %v1002, %v820
      %v1023 = vsel %vm983, %v1003, %v827
      %v1024 = vsel %vm984, %v1004, %v834
      %v1025 = vsel %vm985, %v1005, %v841
      %v1026 = vsel %vm986, %v1006, %v848
      %v1027 = vsel %vm987, %v1007, %v855
      %v1028 = vsel %vm988, %v1008, %v862
      %v1029 = vsel %vm989, %v1009, %v869
      %v1030 = vsel %vm990, %v1010, %v876
      %v1031 = vsel %vm991, %v1011, %v883
      %v1032 = vsel %vm992, %v1012, %v890
      %v1033 = vsel %vm993, %v1013, %v897
      %v1034 = vsel %vm994, %v1014, %v904
      %v1035 = vsel %vm995, %v1015, %v911
      %v1036 = vsel %vm996, %v1016, %v918
      %v1037 = vsel %vm997, %v1017, %v925
      %v1038 = vsel %vm998, %v1018, %v932
      %v1039 = vsel %vm999, %v1019, %v939
      %vm1040 = vcmp.eq.s32.totalorder %v1020, 0
      %vm1041 = vcmp.eq.s32.totalorder %v1021, 0
      %vm1042 = vcmp.eq.s32.totalorder %v1022, 0
      %vm1043 = vcmp.eq.s32.totalorder %v1023, 0
      %vm1044 = vcmp.eq.s32.totalorder %v1024, 0
      %vm1045 = vcmp.eq.s32.totalorder %v1025, 0
      %vm1046 = vcmp.eq.s32.totalorder %v1026, 0
      %vm1047 = vcmp.eq.s32.totalorder %v1027, 0
      %vm1048 = vcmp.eq.s32.totalorder %v1028, 0
      %vm1049 = vcmp.eq.s32.totalorder %v1029, 0
      %vm1050 = vcmp.eq.s32.totalorder %v1030, 0
      %vm1051 = vcmp.eq.s32.totalorder %v1031, 0
      %vm1052 = vcmp.eq.s32.totalorder %v1032, 0
      %vm1053 = vcmp.eq.s32.totalorder %v1033, 0
      %vm1054 = vcmp.eq.s32.totalorder %v1034, 0
      %vm1055 = vcmp.eq.s32.totalorder %v1035, 0
      %vm1056 = vcmp.eq.s32.totalorder %v1036, 0
      %vm1057 = vcmp.eq.s32.totalorder %v1037, 0
      %vm1058 = vcmp.eq.s32.totalorder %v1038, 0
      %vm1059 = vcmp.eq.s32.totalorder %v1039, 0
      %v1060 = vsel %vm1040, 1, 0
      %v1061 = vsel %vm1041, 1, 0
      %v1062 = vsel %vm1042, 1, 0
      %v1063 = vsel %vm1043, 1, 0
      %v1064 = vsel %vm1044, 1, 0
      %v1065 = vsel %vm1045, 1, 0
      %v1066 = vsel %vm1046, 1, 0
      %v1067 = vsel %vm1047, 1, 0
      %v1068 = vsel %vm1048, 1, 0
      %v1069 = vsel %vm1049, 1, 0
      %v1070 = vsel %vm1050, 1, 0
      %v1071 = vsel %vm1051, 1, 0
      %v1072 = vsel %vm1052, 1, 0
      %v1073 = vsel %vm1053, 1, 0
      %v1074 = vsel %vm1054, 1, 0
      %v1075 = vsel %vm1055, 1, 0
      %v1076 = vsel %vm1056, 1, 0
      %v1077 = vsel %vm1057, 1, 0
      %v1078 = vsel %vm1058, 1, 0
      %v1079 = vsel %vm1059, 1, 0
      %vm1080 = vcmp.eq.s32.totalorder %v1060, 1
      %vm1081 = vcmp.eq.s32.totalorder %v1061, 1
      %vm1082 = vcmp.eq.s32.totalorder %v1062, 1
      %vm1083 = vcmp.eq.s32.totalorder %v1063, 1
      %vm1084 = vcmp.eq.s32.totalorder %v1064, 1
      %vm1085 = vcmp.eq.s32.totalorder %v1065, 1
      %vm1086 = vcmp.eq.s32.totalorder %v1066, 1
      %vm1087 = vcmp.eq.s32.totalorder %v1067, 1
      %vm1088 = vcmp.eq.s32.totalorder %v1068, 1
      %vm1089 = vcmp.eq.s32.totalorder %v1069, 1
      %vm1090 = vcmp.eq.s32.totalorder %v1070, 1
      %vm1091 = vcmp.eq.s32.totalorder %v1071, 1
      %vm1092 = vcmp.eq.s32.totalorder %v1072, 1
      %vm1093 = vcmp.eq.s32.totalorder %v1073, 1
      %vm1094 = vcmp.eq.s32.totalorder %v1074, 1
      %vm1095 = vcmp.eq.s32.totalorder %v1075, 1
      %vm1096 = vcmp.eq.s32.totalorder %v1076, 1
      %vm1097 = vcmp.eq.s32.totalorder %v1077, 1
      %vm1098 = vcmp.eq.s32.totalorder %v1078, 1
      %vm1099 = vcmp.eq.s32.totalorder %v1079, 1
      %vm1121 = vcmask 1040384
      %v1122 = vrot.slane 0.0, 7
      %v1123 = vrot.slane %v618, 7
      %v1124 = vsel %vm1121, %v1122, %v1123
      %v1125 = vrot.slane %v619, 7
      %v1126 = vsel %vm1121, %v1123, %v1125
      %v1127 = vrot.slane %v589, 7
      %v1128 = vsel %vm1121, %v1125, %v1127
      %v1129 = vrot.slane %v590, 7
      %v1130 = vsel %vm1121, %v1127, %v1129
      %v1131 = vrot.slane %v591, 7
      %v1132 = vsel %vm1121, %v1129, %v1131
      %v1133 = vrot.slane %v592, 7
      %v1134 = vsel %vm1121, %v1131, %v1133
      %v1135 = vrot.slane %v593, 7
      %v1136 = vsel %vm1121, %v1133, %v1135
      %v1137 = vrot.slane %v594, 7
      %v1138 = vsel %vm1121, %v1135, %v1137
      %v1139 = vrot.slane %v595, 7
      %v1140 = vsel %vm1121, %v1137, %v1139
      %v1141 = vrot.slane %v596, 7
      %v1142 = vsel %vm1121, %v1139, %v1141
      %v1143 = vrot.slane %v597, 7
      %v1144 = vsel %vm1121, %v1141, %v1143
      %v1145 = vrot.slane %v598, 7
      %v1146 = vsel %vm1121, %v1143, %v1145
      %v1147 = vrot.slane %v599, 7
      %v1148 = vsel %vm1121, %v1145, %v1147
      %v1149 = vrot.slane %v600, 7
      %v1150 = vsel %vm1121, %v1147, %v1149
      %v1151 = vrot.slane %v601, 7
      %v1152 = vsel %vm1121, %v1149, %v1151
      %v1153 = vrot.slane %v602, 7
      %v1154 = vsel %vm1121, %v1151, %v1153
      %v1155 = vrot.slane %v603, 7
      %v1156 = vsel %vm1121, %v1153, %v1155
      %v1157 = vrot.slane %v604, 7
      %v1158 = vsel %vm1121, %v1155, %v1157
      %v1159 = vrot.slane %v633, 7
      %v1160 = vsel %vm1121, %v1157, %v1159
      %v1161 = vrot.slane %v634, 7
      %v1162 = vsel %vm1121, %v1159, %v1161
      %v1183 = vsel %vm1080, 0.0, %v1124
      %v1184 = vsel %vm1081, 0.0, %v1126
      %v1185 = vsel %vm1082, 0.0, %v1128
      %v1186 = vsel %vm1083, 0.0, %v1130
      %v1187 = vsel %vm1084, 0.0, %v1132
      %v1188 = vsel %vm1085, 0.0, %v1134
      %v1189 = vsel %vm1086, 0.0, %v1136
      %v1190 = vsel %vm1087, 0.0, %v1138
      %v1191 = vsel %vm1088, 0.0, %v1140
      %v1192 = vsel %vm1089, 0.0, %v1142
      %v1193 = vsel %vm1090, 0.0, %v1144
      %v1194 = vsel %vm1091, 0.0, %v1146
      %v1195 = vsel %vm1092, 0.0, %v1148
      %v1196 = vsel %vm1093, 0.0, %v1150
      %v1197 = vsel %vm1094, 0.0, %v1152
      %v1198 = vsel %vm1095, 0.0, %v1154
      %v1199 = vsel %vm1096, 0.0, %v1156
      %v1200 = vsel %vm1097, 0.0, %v1158
      %v1201 = vsel %vm1098, 0.0, %v1160
      %v1202 = vsel %vm1099, 0.0, %v1162
      %vm1203 = vcmp.eq.s32.totalorder %v1020, 15
      %vm1204 = vcmp.eq.s32.totalorder %v1021, 15
      %vm1205 = vcmp.eq.s32.totalorder %v1022, 15
      %vm1206 = vcmp.eq.s32.totalorder %v1023, 15
      %vm1207 = vcmp.eq.s32.totalorder %v1024, 15
      %vm1208 = vcmp.eq.s32.totalorder %v1025, 15
      %vm1209 = vcmp.eq.s32.totalorder %v1026, 15
      %vm1210 = vcmp.eq.s32.totalorder %v1027, 15
      %vm1211 = vcmp.eq.s32.totalorder %v1028, 15
      %vm1212 = vcmp.eq.s32.totalorder %v1029, 15
      %vm1213 = vcmp.eq.s32.totalorder %v1030, 15
      %vm1214 = vcmp.eq.s32.totalorder %v1031, 15
      %vm1215 = vcmp.eq.s32.totalorder %v1032, 15
      %vm1216 = vcmp.eq.s32.totalorder %v1033, 15
      %vm1217 = vcmp.eq.s32.totalorder %v1034, 15
      %vm1218 = vcmp.eq.s32.totalorder %v1035, 15
      %vm1219 = vcmp.eq.s32.totalorder %v1036, 15
      %vm1220 = vcmp.eq.s32.totalorder %v1037, 15
      %vm1221 = vcmp.eq.s32.totalorder %v1038, 15
      %vm1222 = vcmp.eq.s32.totalorder %v1039, 15
      %v1223 = vsel %vm1203, 1, 0
      %v1224 = vsel %vm1204, 1, 0
      %v1225 = vsel %vm1205, 1, 0
      %v1226 = vsel %vm1206, 1, 0
      %v1227 = vsel %vm1207, 1, 0
      %v1228 = vsel %vm1208, 1, 0
      %v1229 = vsel %vm1209, 1, 0
      %v1230 = vsel %vm1210, 1, 0
      %v1231 = vsel %vm1211, 1, 0
      %v1232 = vsel %vm1212, 1, 0
      %v1233 = vsel %vm1213, 1, 0
      %v1234 = vsel %vm1214, 1, 0
      %v1235 = vsel %vm1215, 1, 0
      %v1236 = vsel %vm1216, 1, 0
      %v1237 = vsel %vm1217, 1, 0
      %v1238 = vsel %vm1218, 1, 0
      %v1239 = vsel %vm1219, 1, 0
      %v1240 = vsel %vm1220, 1, 0
      %v1241 = vsel %vm1221, 1, 0
      %v1242 = vsel %vm1222, 1, 0
      %vm1243 = vcmp.eq.s32.totalorder %v1223, 1
      %vm1244 = vcmp.eq.s32.totalorder %v1224, 1
      %vm1245 = vcmp.eq.s32.totalorder %v1225, 1
      %vm1246 = vcmp.eq.s32.totalorder %v1226, 1
      %vm1247 = vcmp.eq.s32.totalorder %v1227, 1
      %vm1248 = vcmp.eq.s32.totalorder %v1228, 1
      %vm1249 = vcmp.eq.s32.totalorder %v1229, 1
      %vm1250 = vcmp.eq.s32.totalorder %v1230, 1
      %vm1251 = vcmp.eq.s32.totalorder %v1231, 1
      %vm1252 = vcmp.eq.s32.totalorder %v1232, 1
      %vm1253 = vcmp.eq.s32.totalorder %v1233, 1
      %vm1254 = vcmp.eq.s32.totalorder %v1234, 1
      %vm1255 = vcmp.eq.s32.totalorder %v1235, 1
      %vm1256 = vcmp.eq.s32.totalorder %v1236, 1
      %vm1257 = vcmp.eq.s32.totalorder %v1237, 1
      %vm1258 = vcmp.eq.s32.totalorder %v1238, 1
      %vm1259 = vcmp.eq.s32.totalorder %v1239, 1
      %vm1260 = vcmp.eq.s32.totalorder %v1240, 1
      %vm1261 = vcmp.eq.s32.totalorder %v1241, 1
      %vm1262 = vcmp.eq.s32.totalorder %v1242, 1
      %vm1263 = vcmask 1046528
      %v1264 = vrot.slane %v618, 1
      %v1265 = vrot.slane %v619, 1
      %v1266 = vsel %vm1263, %v1264, %v1265
      %v1267 = vrot.slane %v589, 1
      %v1268 = vsel %vm1263, %v1265, %v1267
      %v1269 = vrot.slane %v590, 1
      %v1270 = vsel %vm1263, %v1267, %v1269
      %v1271 = vrot.slane %v591, 1
      %v1272 = vsel %vm1263, %v1269, %v1271
      %v1273 = vrot.slane %v592, 1
      %v1274 = vsel %vm1263, %v1271, %v1273
      %v1275 = vrot.slane %v593, 1
      %v1276 = vsel %vm1263, %v1273, %v1275
      %v1277 = vrot.slane %v594, 1
      %v1278 = vsel %vm1263, %v1275, %v1277
      %v1279 = vrot.slane %v595, 1
      %v1280 = vsel %vm1263, %v1277, %v1279
      %v1281 = vrot.slane %v596, 1
      %v1282 = vsel %vm1263, %v1279, %v1281
      %v1283 = vrot.slane %v597, 1
      %v1284 = vsel %vm1263, %v1281, %v1283
      %v1285 = vrot.slane %v598, 1
      %v1286 = vsel %vm1263, %v1283, %v1285
      %v1287 = vrot.slane %v599, 1
      %v1288 = vsel %vm1263, %v1285, %v1287
      %v1289 = vrot.slane %v600, 1
      %v1290 = vsel %vm1263, %v1287, %v1289
      %v1291 = vrot.slane %v601, 1
      %v1292 = vsel %vm1263, %v1289, %v1291
      %v1293 = vrot.slane %v602, 1
      %v1294 = vsel %vm1263, %v1291, %v1293
      %v1295 = vrot.slane %v603, 1
      %v1296 = vsel %vm1263, %v1293, %v1295
      %v1297 = vrot.slane %v604, 1
      %v1298 = vsel %vm1263, %v1295, %v1297
      %v1299 = vrot.slane %v633, 1
      %v1300 = vsel %vm1263, %v1297, %v1299
      %v1301 = vrot.slane %v634, 1
      %v1302 = vsel %vm1263, %v1299, %v1301
      %v1303 = vrot.slane 0.0, 1
      %v1304 = vsel %vm1263, %v1301, %v1303
      %v1325 = vsel %vm1243, 0.0, %v1266
      %v1326 = vsel %vm1244, 0.0, %v1268
      %v1327 = vsel %vm1245, 0.0, %v1270
      %v1328 = vsel %vm1246, 0.0, %v1272
      %v1329 = vsel %vm1247, 0.0, %v1274
      %v1330 = vsel %vm1248, 0.0, %v1276
      %v1331 = vsel %vm1249, 0.0, %v1278
      %v1332 = vsel %vm1250, 0.0, %v1280
      %v1333 = vsel %vm1251, 0.0, %v1282
      %v1334 = vsel %vm1252, 0.0, %v1284
      %v1335 = vsel %vm1253, 0.0, %v1286
      %v1336 = vsel %vm1254, 0.0, %v1288
      %v1337 = vsel %vm1255, 0.0, %v1290
      %v1338 = vsel %vm1256, 0.0, %v1292
      %v1339 = vsel %vm1257, 0.0, %v1294
      %v1340 = vsel %vm1258, 0.0, %v1296
      %v1341 = vsel %vm1259, 0.0, %v1298
      %v1342 = vsel %vm1260, 0.0, %v1300
      %v1343 = vsel %vm1261, 0.0, %v1302
      %v1344 = vsel %vm1262, 0.0, %v1304
      %v1345 = vpack.c.bf16 %v1184, %v1183
      %v1346 = vpack.c.bf16 %v619, %v618
      %v1347 = vpack.c.bf16 %v1326, %v1325
      %v1348 = vpack.c.bf16 %v1186, %v1185
      %v1349 = vpack.c.bf16 %v590, %v589
      %v1350 = vpack.c.bf16 %v1328, %v1327
      %v1351 = vpack.c.bf16 %v1188, %v1187
      %v1352 = vpack.c.bf16 %v592, %v591
      %v1353 = vpack.c.bf16 %v1330, %v1329
      %v1354 = vpack.c.bf16 %v1190, %v1189
      %v1355 = vpack.c.bf16 %v594, %v593
      %v1356 = vpack.c.bf16 %v1332, %v1331
      %v1357 = vpack.c.bf16 %v1192, %v1191
      %v1358 = vpack.c.bf16 %v596, %v595
      %v1359 = vpack.c.bf16 %v1334, %v1333
      %v1360 = vpack.c.bf16 %v1194, %v1193
      %v1361 = vpack.c.bf16 %v598, %v597
      %v1362 = vpack.c.bf16 %v1336, %v1335
      %v1363 = vpack.c.bf16 %v1196, %v1195
      %v1364 = vpack.c.bf16 %v600, %v599
      %v1365 = vpack.c.bf16 %v1338, %v1337
      %v1366 = vpack.c.bf16 %v1198, %v1197
      %v1367 = vpack.c.bf16 %v602, %v601
      %v1368 = vpack.c.bf16 %v1340, %v1339
      %v1369 = vpack.c.bf16 %v1200, %v1199
      %v1370 = vpack.c.bf16 %v604, %v603
      %v1371 = vpack.c.bf16 %v1342, %v1341
      %v1372 = vpack.c.bf16 %v1202, %v1201
      %v1373 = vpack.c.bf16 %v634, %v633
      %v1374 = vpack.c.bf16 %v1344, %v1343
      %v1519 = vunpack.c.l.b16 %v635
      %v1520 = vunpack.c.l.b16 %v636
      %v1521 = vunpack.c.l.b16 %v637
      %v1522 = vunpack.c.l.b16 %v638
      %v1523 = vunpack.c.l.b16 %v639
      %v1524 = vunpack.c.l.b16 %v640
      %v1525 = vunpack.c.l.b16 %v641
      %v1526 = vunpack.c.l.b16 %v642
      %v1527 = vunpack.c.l.b16 %v643
      %v1528 = vunpack.c.l.b16 %v644
      %v1529 = vunpack.c.l.b16 %v645
      %v1530 = vunpack.c.l.b16 %v646
      %v1531 = vunpack.c.l.b16 %v647
      %v1532 = vunpack.c.l.b16 %v648
      %v1533 = vunpack.c.l.b16 %v649
      %v1534 = vunpack.c.l.b16 %v650
      %v1535 = vunpack.c.l.b16 %v651
      %v1536 = vunpack.c.l.b16 %v652
      %v1537 = vunpack.c.l.b16 %v653
      %v1538 = vunpack.c.l.b16 %v654
      %v1539 = vunpack.c.l.b16 %v655
      %v1540 = vunpack.c.l.b16 %v656
      %v1541 = vunpack.c.l.b16 %v657
      %v1542 = vunpack.c.l.b16 %v658
      %v1543 = vunpack.c.l.b16 %v659
      %v1544 = vunpack.c.l.b16 %v660
      %v1545 = vunpack.c.l.b16 %v661
      %v1546 = vunpack.c.l.b16 %v662
      %v1547 = vunpack.c.l.b16 %v663
      %v1548 = vunpack.c.l.b16 %v664
      %v1549 = vunpack.c.l.b16 %v665
      %v1550 = vunpack.c.l.b16 %v666
      %v1551 = vunpack.c.l.b16 %v667
      %v1552 = vunpack.c.l.b16 %v668
      %v1553 = vunpack.c.l.b16 %v669
      %v1554 = vunpack.c.l.b16 %v670
      %v1555 = vunpack.c.l.b16 %v671
      %v1556 = vunpack.c.l.b16 %v672
      %v1557 = vunpack.c.l.b16 %v673
      %v1558 = vunpack.c.l.b16 %v674
      %v1559 = vunpack.c.l.b16 %v675
      %v1560 = vunpack.c.l.b16 %v676
      %v1561 = vunpack.c.l.b16 %v677
      %v1562 = vunpack.c.l.b16 %v678
      %v1563 = vunpack.c.l.b16 %v679
      %v1564 = vunpack.c.l.b16 %v680
      %v1565 = vunpack.c.l.b16 %v681
      %v1566 = vunpack.c.l.b16 %v682
      %v1567 = vunpack.c.l.b16 %v683
      %v1568 = vunpack.c.l.b16 %v684
      %v1569 = vunpack.c.l.b16 %v685
      %v1570 = vunpack.c.l.b16 %v686
      %v1571 = vunpack.c.l.b16 %v687
      %v1572 = vunpack.c.l.b16 %v688
      %v1573 = vunpack.c.l.b16 %v689
      %v1574 = vunpack.c.l.b16 %v690
      %v1575 = vunpack.c.l.b16 %v691
      %v1576 = vunpack.c.l.b16 %v692
      %v1577 = vunpack.c.l.b16 %v693
      %v1578 = vunpack.c.l.b16 %v694
      %v1579 = vunpack.c.l.b16 %v695
      %v1580 = vunpack.c.l.b16 %v696
      %v1581 = vunpack.c.l.b16 %v697
      %v1582 = vunpack.c.l.b16 %v698
      %v1583 = vunpack.c.l.b16 %v699
      %v1584 = vunpack.c.l.b16 %v700
      %v1585 = vunpack.c.l.b16 %v701
      %v1586 = vunpack.c.l.b16 %v702
      %v1587 = vunpack.c.l.b16 %v703
      %v1588 = vunpack.c.l.b16 %v704
      %v1589 = vunpack.c.l.b16 %v705
      %v1590 = vunpack.c.l.b16 %v706
      %v1591 = vunpack.c.l.b16 %v707
      %v1592 = vunpack.c.l.b16 %v708
      %v1593 = vunpack.c.l.b16 %v709
      %v1594 = vunpack.c.l.b16 %v710
      %v1595 = vunpack.c.l.b16 %v711
      %v1596 = vunpack.c.l.b16 %v712
      %v1597 = vunpack.c.l.b16 %v713
      %v1598 = vunpack.c.l.b16 %v714
      %v1599 = vunpack.c.l.b16 %v715
      %v1600 = vunpack.c.l.b16 %v716
      %v1601 = vunpack.c.l.b16 %v717
      %v1602 = vunpack.c.l.b16 %v718
      %v1603 = vunpack.c.l.b16 %v719
      %v1604 = vunpack.c.l.b16 %v720
      %v1605 = vunpack.c.l.b16 %v721
      %v1606 = vunpack.c.l.b16 %v722
      %v1607 = vunpack.c.l.b16 %v723
      %v1608 = vunpack.c.l.b16 %v724
      %v1609 = vunpack.c.l.b16 %v725
      %v1610 = vunpack.c.l.b16 %v726
      %v1611 = vunpack.c.l.b16 %v727
      %v1612 = vunpack.c.l.b16 %v728
      %v1613 = vunpack.c.l.b16 %v729
      %v1614 = vunpack.c.l.b16 %v730
      %v1615 = vunpack.c.l.b16 %v731
      %v1616 = vunpack.c.l.b16 %v732
      %v1617 = vunpack.c.l.b16 %v733
      %v1618 = vunpack.c.l.b16 %v734
      %v1619 = vunpack.c.l.b16 %v735
      %v1620 = vunpack.c.l.b16 %v736
      %v1621 = vunpack.c.l.b16 %v737
      %v1622 = vunpack.c.l.b16 %v738
      %v1623 = vunpack.c.l.b16 %v739
      %v1624 = vunpack.c.l.b16 %v740
      %v1625 = vunpack.c.l.b16 %v741
      %v1626 = vunpack.c.l.b16 %v742
      %v1627 = vunpack.c.l.b16 %v743
      %v1628 = vunpack.c.l.b16 %v744
      %v1629 = vunpack.c.l.b16 %v745
      %v1630 = vunpack.c.l.b16 %v746
      %v1631 = vunpack.c.l.b16 %v747
      %v1632 = vunpack.c.l.b16 %v748
      %v1633 = vunpack.c.l.b16 %v749
      %v1634 = vunpack.c.l.b16 %v750
      %v1635 = vunpack.c.l.b16 %v751
      %v1636 = vunpack.c.l.b16 %v752
      %v1637 = vunpack.c.l.b16 %v753
      %v1638 = vunpack.c.l.b16 %v754
      %v1639 = vunpack.c.l.b16 %v755
      %v1640 = vunpack.c.l.b16 %v756
      %v1641 = vunpack.c.l.b16 %v757
      %v1642 = vunpack.c.l.b16 %v758
      %v1643 = vunpack.c.l.b16 %v759
      %v1644 = vunpack.c.l.b16 %v760
      %v1645 = vunpack.c.l.b16 %v761
      %v1646 = vunpack.c.l.b16 %v762
      %v1647 = vunpack.c.l.b16 %v763
      %v1648 = vunpack.c.l.b16 %v764
      %v1649 = vunpack.c.l.b16 %v765
      %v1650 = vunpack.c.l.b16 %v766
      %v1651 = vunpack.c.l.b16 %v767
      %v1652 = vunpack.c.l.b16 %v768
      %v1653 = vunpack.c.l.b16 %v769
      %v1654 = vunpack.c.l.b16 %v770
      %v1655 = vunpack.c.l.b16 %v771
      %v1656 = vunpack.c.l.b16 %v772
      %v1657 = vunpack.c.l.b16 %v773
      %v1658 = vunpack.c.l.b16 %v774
      %v1659 = vunpack.c.l.b16 %v775
      %v1660 = vunpack.c.l.b16 %v776
      %v1661 = vunpack.c.l.b16 %v777
      %v1662 = vunpack.c.l.b16 %v778
      %v1663 = vpack.c.b16 %v1520, %v1519
      %v1664 = vpack.c.b16 %v1522, %v1521
      %v1665 = vpack.c.b16 %v1524, %v1523
      %v1666 = vpack.c.b16 %v1526, %v1525
      %v1667 = vpack.c.b16 %v1528, %v1527
      %v1668 = vpack.c.b16 %v1530, %v1529
      %v1669 = vpack.c.b16 %v1532, %v1531
      %v1670 = vpack.c.b16 %v1534, %v1533
      %v1671 = vpack.c.b16 %v1536, %v1535
      %v1672 = vpack.c.b16 %v1538, %v1537
      %v1673 = vpack.c.b16 %v1540, %v1539
      %v1674 = vpack.c.b16 %v1542, %v1541
      %v1675 = vpack.c.b16 %v1544, %v1543
      %v1676 = vpack.c.b16 %v1546, %v1545
      %v1677 = vpack.c.b16 %v1548, %v1547
      %v1678 = vpack.c.b16 %v1550, %v1549
      %v1679 = vpack.c.b16 %v1552, %v1551
      %v1680 = vpack.c.b16 %v1554, %v1553
      %v1681 = vpack.c.b16 %v1556, %v1555
      %v1682 = vpack.c.b16 %v1558, %v1557
      %v1683 = vpack.c.b16 %v1560, %v1559
      %v1684 = vpack.c.b16 %v1562, %v1561
      %v1685 = vpack.c.b16 %v1564, %v1563
      %v1686 = vpack.c.b16 %v1566, %v1565
      %v1687 = vpack.c.b16 %v1568, %v1567
      %v1688 = vpack.c.b16 %v1570, %v1569
      %v1689 = vpack.c.b16 %v1572, %v1571
      %v1690 = vpack.c.b16 %v1574, %v1573
      %v1691 = vpack.c.b16 %v1576, %v1575
      %v1692 = vpack.c.b16 %v1578, %v1577
      %v1693 = vpack.c.b16 %v1580, %v1579
      %v1694 = vpack.c.b16 %v1582, %v1581
      %v1695 = vpack.c.b16 %v1584, %v1583
      %v1696 = vpack.c.b16 %v1586, %v1585
      %v1697 = vpack.c.b16 %v1588, %v1587
      %v1698 = vpack.c.b16 %v1590, %v1589
      %v1699 = vpack.c.b16 %v1592, %v1591
      %v1700 = vpack.c.b16 %v1594, %v1593
      %v1701 = vpack.c.b16 %v1596, %v1595
      %v1702 = vpack.c.b16 %v1598, %v1597
      %v1703 = vpack.c.b16 %v1600, %v1599
      %v1704 = vpack.c.b16 %v1602, %v1601
      %v1705 = vpack.c.b16 %v1604, %v1603
      %v1706 = vpack.c.b16 %v1606, %v1605
      %v1707 = vpack.c.b16 %v1608, %v1607
      %v1708 = vpack.c.b16 %v1610, %v1609
      %v1709 = vpack.c.b16 %v1612, %v1611
      %v1710 = vpack.c.b16 %v1614, %v1613
      %v1711 = vpack.c.b16 %v1616, %v1615
      %v1712 = vpack.c.b16 %v1618, %v1617
      %v1713 = vpack.c.b16 %v1620, %v1619
      %v1714 = vpack.c.b16 %v1622, %v1621
      %v1715 = vpack.c.b16 %v1624, %v1623
      %v1716 = vpack.c.b16 %v1626, %v1625
      %v1717 = vpack.c.b16 %v1628, %v1627
      %v1718 = vpack.c.b16 %v1630, %v1629
      %v1719 = vpack.c.b16 %v1632, %v1631
      %v1720 = vpack.c.b16 %v1634, %v1633
      %v1721 = vpack.c.b16 %v1636, %v1635
      %v1722 = vpack.c.b16 %v1638, %v1637
      %v1723 = vpack.c.b16 %v1640, %v1639
      %v1724 = vpack.c.b16 %v1642, %v1641
      %v1725 = vpack.c.b16 %v1644, %v1643
      %v1726 = vpack.c.b16 %v1646, %v1645
      %v1727 = vpack.c.b16 %v1648, %v1647
      %v1728 = vpack.c.b16 %v1650, %v1649
      %v1729 = vpack.c.b16 %v1652, %v1651
      %v1730 = vpack.c.b16 %v1654, %v1653
      %v1731 = vpack.c.b16 %v1656, %v1655
      %v1732 = vpack.c.b16 %v1658, %v1657
      %v1733 = vpack.c.b16 %v1660, %v1659
      %v1734 = vpack.c.b16 %v1662, %v1661
      %1807 = vmatprep.subr.bf16.mxu0 0
      %1808 = vmatpush1.bf16.msra.mxu0 %v1670
      %1809 = vmatprep.subr.bf16.mxu0 0
      %1810 = vmatpush1.bf16.msra.mxu0 %v1669
      %1811 = vmatprep.subr.bf16.mxu0 0
      %1812 = vmatpush1.bf16.msra.mxu0 %v1668
      %1813 = vmatprep.subr.bf16.mxu0 0
      %1814 = vmatpush1.bf16.msra.mxu0 %v1667
      %1815 = vmatprep.subr.bf16.mxu0 0
      %1816 = vmatpush1.bf16.msra.mxu0 %v1666
      %1817 = vmatprep.subr.bf16.mxu0 0
      %1818 = vmatpush1.bf16.msra.mxu0 %v1665
      %1819 = vmatprep.subr.bf16.mxu0 0
      %1820 = vmatpush1.bf16.msra.mxu0 %v1664
      %1821 = vmatprep.subr.bf16.mxu0 0
      %1822 = vmatpush1.bf16.msra.mxu0 %v1663
      %1823 = vmatprep.subr.bf16.mxu0 0
      %1824 = vmatpush2.bf16.msra.mxu0 %v1678
      %1825 = vmatprep.subr.bf16.mxu0 0
      %1826 = vmatpush2.bf16.msra.mxu0 %v1677
      %1827 = vmatprep.subr.bf16.mxu0 0
      %1828 = vmatpush2.bf16.msra.mxu0 %v1676
      %1829 = vmatprep.subr.bf16.mxu0 0
      %1830 = vmatpush2.bf16.msra.mxu0 %v1675
      %1831 = vmatprep.subr.bf16.mxu0 0
      %1832 = vmatpush2.bf16.msra.mxu0 %v1674
      %1833 = vmatprep.subr.bf16.mxu0 0
      %1834 = vmatpush2.bf16.msra.mxu0 %v1673
      %1835 = vmatprep.subr.bf16.mxu0 0
      %1836 = vmatpush2.bf16.msra.mxu0 %v1672
      %1837 = vmatprep.subr.bf16.mxu0 0
      %1838 = vmatpush2.bf16.msra.mxu0 %v1671
      %1839 = vmatprep.mubr.bf16.mxu0 %v1346
      %1840 = vmatmul.mubr.bf16.gmra.mxu0 %v1345
      %v1841 = vpop.f32.mrf.mxu0
      %v1842 = vadd.f32 0.0, %v1841
      %v1843 = vpop.f32.mrf.mxu0
      %v1844 = vpop.f32.mrf.mxu0
      %v1845 = vadd.f32 0.0, %v1844
      %v1846 = vpop.f32.mrf.mxu0
      %1847 = vmatprep.mubr.bf16.mxu0 %v1349
      %1848 = vmatmul.mubr.bf16.gmra.mxu0 %v1348
      %v1849 = vpop.f32.mrf.mxu0
      %v1850 = vadd.f32 0.0, %v1849
      %v1851 = vpop.f32.mrf.mxu0
      %v1852 = vpop.f32.mrf.mxu0
      %v1853 = vadd.f32 0.0, %v1852
      %v1854 = vpop.f32.mrf.mxu0
      %1855 = vmatprep.mubr.bf16.mxu0 %v1352
      %1856 = vmatmul.mubr.bf16.gmra.mxu0 %v1351
      %v1857 = vpop.f32.mrf.mxu0
      %v1858 = vadd.f32 0.0, %v1857
      %v1859 = vpop.f32.mrf.mxu0
      %v1860 = vpop.f32.mrf.mxu0
      %v1861 = vadd.f32 0.0, %v1860
      %v1862 = vpop.f32.mrf.mxu0
      %1863 = vmatprep.mubr.bf16.mxu0 %v1355
      %1864 = vmatmul.mubr.bf16.gmra.mxu0 %v1354
      %v1865 = vpop.f32.mrf.mxu0
      %v1866 = vadd.f32 0.0, %v1865
      %v1867 = vpop.f32.mrf.mxu0
      %v1868 = vpop.f32.mrf.mxu0
      %v1869 = vadd.f32 0.0, %v1868
      %v1870 = vpop.f32.mrf.mxu0
      %1871 = vmatprep.mubr.bf16.mxu0 %v1358
      %1872 = vmatmul.mubr.bf16.gmra.mxu0 %v1357
      %v1873 = vpop.f32.mrf.mxu0
      %v1874 = vadd.f32 0.0, %v1873
      %v1875 = vpop.f32.mrf.mxu0
      %v1876 = vpop.f32.mrf.mxu0
      %v1877 = vadd.f32 0.0, %v1876
      %v1878 = vpop.f32.mrf.mxu0
      %1879 = vmatprep.mubr.bf16.mxu0 %v1361
      %1880 = vmatmul.mubr.bf16.gmra.mxu0 %v1360
      %v1881 = vpop.f32.mrf.mxu0
      %v1882 = vadd.f32 0.0, %v1881
      %v1883 = vpop.f32.mrf.mxu0
      %v1884 = vpop.f32.mrf.mxu0
      %v1885 = vadd.f32 0.0, %v1884
      %v1886 = vpop.f32.mrf.mxu0
      %1887 = vmatprep.mubr.bf16.mxu0 %v1364
      %1888 = vmatmul.mubr.bf16.gmra.mxu0 %v1363
      %v1889 = vpop.f32.mrf.mxu0
      %v1890 = vadd.f32 0.0, %v1889
      %v1891 = vpop.f32.mrf.mxu0
      %v1892 = vpop.f32.mrf.mxu0
      %v1893 = vadd.f32 0.0, %v1892
      %v1894 = vpop.f32.mrf.mxu0
      %1895 = vmatprep.mubr.bf16.mxu0 %v1367
      %1896 = vmatmul.mubr.bf16.gmra.mxu0 %v1366
      %v1897 = vpop.f32.mrf.mxu0
      %v1898 = vadd.f32 0.0, %v1897
      %v1899 = vpop.f32.mrf.mxu0
      %v1900 = vpop.f32.mrf.mxu0
      %v1901 = vadd.f32 0.0, %v1900
      %v1902 = vpop.f32.mrf.mxu0
      %1903 = vdwg.mxu0
      %1904 = vmatprep.subr.bf16.mxu0 0
      %1905 = vmatpush1.bf16.msra.mxu0 %v1686
      %1906 = vmatprep.subr.bf16.mxu0 0
      %1907 = vmatpush1.bf16.msra.mxu0 %v1685
      %1908 = vmatprep.subr.bf16.mxu0 0
      %1909 = vmatpush1.bf16.msra.mxu0 %v1684
      %1910 = vmatprep.subr.bf16.mxu0 0
      %1911 = vmatpush1.bf16.msra.mxu0 %v1683
      %1912 = vmatprep.subr.bf16.mxu0 0
      %1913 = vmatpush1.bf16.msra.mxu0 %v1682
      %1914 = vmatprep.subr.bf16.mxu0 0
      %1915 = vmatpush1.bf16.msra.mxu0 %v1681
      %1916 = vmatprep.subr.bf16.mxu0 0
      %1917 = vmatpush1.bf16.msra.mxu0 %v1680
      %1918 = vmatprep.subr.bf16.mxu0 0
      %1919 = vmatpush1.bf16.msra.mxu0 %v1679
      %1920 = vmatprep.subr.bf16.mxu0 0
      %1921 = vmatpush2.bf16.msra.mxu0 %v1694
      %1922 = vmatprep.subr.bf16.mxu0 0
      %1923 = vmatpush2.bf16.msra.mxu0 %v1693
      %1924 = vmatprep.subr.bf16.mxu0 0
      %1925 = vmatpush2.bf16.msra.mxu0 %v1692
      %1926 = vmatprep.subr.bf16.mxu0 0
      %1927 = vmatpush2.bf16.msra.mxu0 %v1691
      %1928 = vmatprep.subr.bf16.mxu0 0
      %1929 = vmatpush2.bf16.msra.mxu0 %v1690
      %1930 = vmatprep.subr.bf16.mxu0 0
      %1931 = vmatpush2.bf16.msra.mxu0 %v1689
      %1932 = vmatprep.subr.bf16.mxu0 0
      %1933 = vmatpush2.bf16.msra.mxu0 %v1688
      %1934 = vmatprep.subr.bf16.mxu0 0
      %1935 = vmatpush2.bf16.msra.mxu0 %v1687
      %1936 = vmatprep.mubr.bf16.mxu0 %v1348
      %1937 = vmatmul.mubr.bf16.gmra.mxu0 %v1347
      %v1938 = vpop.f32.mrf.mxu0
      %v1939 = vadd.f32 %v1842, %v1938
      %v1940 = vpop.f32.mrf.mxu0
      %v1941 = vpop.f32.mrf.mxu0
      %v1942 = vadd.f32 %v1845, %v1941
      %v1943 = vpop.f32.mrf.mxu0
      %1944 = vmatprep.mubr.bf16.mxu0 %v1351
      %1945 = vmatmul.mubr.bf16.gmra.mxu0 %v1350
      %v1946 = vpop.f32.mrf.mxu0
      %v1947 = vadd.f32 %v1850, %v1946
      %v1948 = vpop.f32.mrf.mxu0
      %v1949 = vpop.f32.mrf.mxu0
      %v1950 = vadd.f32 %v1853, %v1949
      %v1951 = vpop.f32.mrf.mxu0
      %1952 = vmatprep.mubr.bf16.mxu0 %v1354
      %1953 = vmatmul.mubr.bf16.gmra.mxu0 %v1353
      %v1954 = vpop.f32.mrf.mxu0
      %v1955 = vadd.f32 %v1858, %v1954
      %v1956 = vpop.f32.mrf.mxu0
      %v1957 = vpop.f32.mrf.mxu0
      %v1958 = vadd.f32 %v1861, %v1957
      %v1959 = vpop.f32.mrf.mxu0
      %1960 = vmatprep.mubr.bf16.mxu0 %v1357
      %1961 = vmatmul.mubr.bf16.gmra.mxu0 %v1356
      %v1962 = vpop.f32.mrf.mxu0
      %v1963 = vadd.f32 %v1866, %v1962
      %v1964 = vpop.f32.mrf.mxu0
      %v1965 = vpop.f32.mrf.mxu0
      %v1966 = vadd.f32 %v1869, %v1965
      %v1967 = vpop.f32.mrf.mxu0
      %1968 = vmatprep.mubr.bf16.mxu0 %v1360
      %1969 = vmatmul.mubr.bf16.gmra.mxu0 %v1359
      %v1970 = vpop.f32.mrf.mxu0
      %v1971 = vadd.f32 %v1874, %v1970
      %v1972 = vpop.f32.mrf.mxu0
      %v1973 = vpop.f32.mrf.mxu0
      %v1974 = vadd.f32 %v1877, %v1973
      %v1975 = vpop.f32.mrf.mxu0
      %1976 = vmatprep.mubr.bf16.mxu0 %v1363
      %1977 = vmatmul.mubr.bf16.gmra.mxu0 %v1362
      %v1978 = vpop.f32.mrf.mxu0
      %v1979 = vadd.f32 %v1882, %v1978
      %v1980 = vpop.f32.mrf.mxu0
      %v1981 = vpop.f32.mrf.mxu0
      %v1982 = vadd.f32 %v1885, %v1981
      %v1983 = vpop.f32.mrf.mxu0
      %1984 = vmatprep.mubr.bf16.mxu0 %v1366
      %1985 = vmatmul.mubr.bf16.gmra.mxu0 %v1365
      %v1986 = vpop.f32.mrf.mxu0
      %v1987 = vadd.f32 %v1890, %v1986
      %v1988 = vpop.f32.mrf.mxu0
      %v1989 = vpop.f32.mrf.mxu0
      %v1990 = vadd.f32 %v1893, %v1989
      %v1991 = vpop.f32.mrf.mxu0
      %1992 = vmatprep.mubr.bf16.mxu0 %v1369
      %1993 = vmatmul.mubr.bf16.gmra.mxu0 %v1368
      %v1994 = vpop.f32.mrf.mxu0
      %v1995 = vadd.f32 %v1898, %v1994
      %v1996 = vpop.f32.mrf.mxu0
      %v1997 = vpop.f32.mrf.mxu0
      %v1998 = vadd.f32 %v1901, %v1997
      %v1999 = vpop.f32.mrf.mxu0
      %2000 = vdwg.mxu0
      %2001 = vmatprep.subr.bf16.mxu0 0
      %2002 = vmatpush1.bf16.msra.mxu0 %v1702
      %2003 = vmatprep.subr.bf16.mxu0 0
      %2004 = vmatpush1.bf16.msra.mxu0 %v1701
      %2005 = vmatprep.subr.bf16.mxu0 0
      %2006 = vmatpush1.bf16.msra.mxu0 %v1700
      %2007 = vmatprep.subr.bf16.mxu0 0
      %2008 = vmatpush1.bf16.msra.mxu0 %v1699
      %2009 = vmatprep.subr.bf16.mxu0 0
      %2010 = vmatpush1.bf16.msra.mxu0 %v1698
      %2011 = vmatprep.subr.bf16.mxu0 0
      %2012 = vmatpush1.bf16.msra.mxu0 %v1697
      %2013 = vmatprep.subr.bf16.mxu0 0
      %2014 = vmatpush1.bf16.msra.mxu0 %v1696
      %2015 = vmatprep.subr.bf16.mxu0 0
      %2016 = vmatpush1.bf16.msra.mxu0 %v1695
      %2017 = vmatprep.subr.bf16.mxu0 0
      %2018 = vmatpush2.bf16.msra.mxu0 %v1710
      %2019 = vmatprep.subr.bf16.mxu0 0
      %2020 = vmatpush2.bf16.msra.mxu0 %v1709
      %2021 = vmatprep.subr.bf16.mxu0 0
      %2022 = vmatpush2.bf16.msra.mxu0 %v1708
      %2023 = vmatprep.subr.bf16.mxu0 0
      %2024 = vmatpush2.bf16.msra.mxu0 %v1707
      %2025 = vmatprep.subr.bf16.mxu0 0
      %2026 = vmatpush2.bf16.msra.mxu0 %v1706
      %2027 = vmatprep.subr.bf16.mxu0 0
      %2028 = vmatpush2.bf16.msra.mxu0 %v1705
      %2029 = vmatprep.subr.bf16.mxu0 0
      %2030 = vmatpush2.bf16.msra.mxu0 %v1704
      %2031 = vmatprep.subr.bf16.mxu0 0
      %2032 = vmatpush2.bf16.msra.mxu0 %v1703
      %2033 = vmatprep.mubr.bf16.mxu0 %v1350
      %2034 = vmatmul.mubr.bf16.gmra.mxu0 %v1349
      %v2035 = vpop.f32.mrf.mxu0
      %v2036 = vadd.f32 %v1939, %v2035
      %v2037 = vpop.f32.mrf.mxu0
      %v2038 = vpop.f32.mrf.mxu0
      %v2039 = vadd.f32 %v1942, %v2038
      %v2040 = vpop.f32.mrf.mxu0
      %2041 = vmatprep.mubr.bf16.mxu0 %v1353
      %2042 = vmatmul.mubr.bf16.gmra.mxu0 %v1352
      %v2043 = vpop.f32.mrf.mxu0
      %v2044 = vadd.f32 %v1947, %v2043
      %v2045 = vpop.f32.mrf.mxu0
      %v2046 = vpop.f32.mrf.mxu0
      %v2047 = vadd.f32 %v1950, %v2046
      %v2048 = vpop.f32.mrf.mxu0
      %2049 = vmatprep.mubr.bf16.mxu0 %v1356
      %2050 = vmatmul.mubr.bf16.gmra.mxu0 %v1355
      %v2051 = vpop.f32.mrf.mxu0
      %v2052 = vadd.f32 %v1955, %v2051
      %v2053 = vpop.f32.mrf.mxu0
      %v2054 = vpop.f32.mrf.mxu0
      %v2055 = vadd.f32 %v1958, %v2054
      %v2056 = vpop.f32.mrf.mxu0
      %2057 = vmatprep.mubr.bf16.mxu0 %v1359
      %2058 = vmatmul.mubr.bf16.gmra.mxu0 %v1358
      %v2059 = vpop.f32.mrf.mxu0
      %v2060 = vadd.f32 %v1963, %v2059
      %v2061 = vpop.f32.mrf.mxu0
      %v2062 = vpop.f32.mrf.mxu0
      %v2063 = vadd.f32 %v1966, %v2062
      %v2064 = vpop.f32.mrf.mxu0
      %2065 = vmatprep.mubr.bf16.mxu0 %v1362
      %2066 = vmatmul.mubr.bf16.gmra.mxu0 %v1361
      %v2067 = vpop.f32.mrf.mxu0
      %v2068 = vadd.f32 %v1971, %v2067
      %v2069 = vpop.f32.mrf.mxu0
      %v2070 = vpop.f32.mrf.mxu0
      %v2071 = vadd.f32 %v1974, %v2070
      %v2072 = vpop.f32.mrf.mxu0
      %2073 = vmatprep.mubr.bf16.mxu0 %v1365
      %2074 = vmatmul.mubr.bf16.gmra.mxu0 %v1364
      %v2075 = vpop.f32.mrf.mxu0
      %v2076 = vadd.f32 %v1979, %v2075
      %v2077 = vpop.f32.mrf.mxu0
      %v2078 = vpop.f32.mrf.mxu0
      %v2079 = vadd.f32 %v1982, %v2078
      %v2080 = vpop.f32.mrf.mxu0
      %2081 = vmatprep.mubr.bf16.mxu0 %v1368
      %2082 = vmatmul.mubr.bf16.gmra.mxu0 %v1367
      %v2083 = vpop.f32.mrf.mxu0
      %v2084 = vadd.f32 %v1987, %v2083
      %v2085 = vpop.f32.mrf.mxu0
      %v2086 = vpop.f32.mrf.mxu0
      %v2087 = vadd.f32 %v1990, %v2086
      %v2088 = vpop.f32.mrf.mxu0
      %2089 = vmatprep.mubr.bf16.mxu0 %v1371
      %2090 = vmatmul.mubr.bf16.gmra.mxu0 %v1370
      %v2091 = vpop.f32.mrf.mxu0
      %v2092 = vadd.f32 %v1995, %v2091
      %v2093 = vpop.f32.mrf.mxu0
      %v2094 = vpop.f32.mrf.mxu0
      %v2095 = vadd.f32 %v1998, %v2094
      %v2096 = vpop.f32.mrf.mxu0
      %2097 = vdwg.mxu0
      %2098 = vmatprep.subr.bf16.mxu0 0
      %2099 = vmatpush1.bf16.msra.mxu0 %v1718
      %2100 = vmatprep.subr.bf16.mxu0 0
      %2101 = vmatpush1.bf16.msra.mxu0 %v1717
      %2102 = vmatprep.subr.bf16.mxu0 0
      %2103 = vmatpush1.bf16.msra.mxu0 %v1716
      %2104 = vmatprep.subr.bf16.mxu0 0
      %2105 = vmatpush1.bf16.msra.mxu0 %v1715
      %2106 = vmatprep.subr.bf16.mxu0 0
      %2107 = vmatpush1.bf16.msra.mxu0 %v1714
      %2108 = vmatprep.subr.bf16.mxu0 0
      %2109 = vmatpush1.bf16.msra.mxu0 %v1713
      %2110 = vmatprep.subr.bf16.mxu0 0
      %2111 = vmatpush1.bf16.msra.mxu0 %v1712
      %2112 = vmatprep.subr.bf16.mxu0 0
      %2113 = vmatpush1.bf16.msra.mxu0 %v1711
      %2114 = vmatprep.subr.bf16.mxu0 0
      %2115 = vmatpush2.bf16.msra.mxu0 %v1726
      %2116 = vmatprep.subr.bf16.mxu0 0
      %2117 = vmatpush2.bf16.msra.mxu0 %v1725
      %2118 = vmatprep.subr.bf16.mxu0 0
      %2119 = vmatpush2.bf16.msra.mxu0 %v1724
      %2120 = vmatprep.subr.bf16.mxu0 0
      %2121 = vmatpush2.bf16.msra.mxu0 %v1723
      %2122 = vmatprep.subr.bf16.mxu0 0
      %2123 = vmatpush2.bf16.msra.mxu0 %v1722
      %2124 = vmatprep.subr.bf16.mxu0 0
      %2125 = vmatpush2.bf16.msra.mxu0 %v1721
      %2126 = vmatprep.subr.bf16.mxu0 0
      %2127 = vmatpush2.bf16.msra.mxu0 %v1720
      %2128 = vmatprep.subr.bf16.mxu0 0
      %2129 = vmatpush2.bf16.msra.mxu0 %v1719
      %2130 = vmatprep.mubr.bf16.mxu0 %v1352
      %2131 = vmatmul.mubr.bf16.gmra.mxu0 %v1351
      %v2132 = vpop.f32.mrf.mxu0
      %v2133 = vadd.f32 %v2036, %v2132
      %v2134 = vpop.f32.mrf.mxu0
      %v2135 = vpop.f32.mrf.mxu0
      %v2136 = vadd.f32 %v2039, %v2135
      %v2137 = vpop.f32.mrf.mxu0
      %2138 = vmatprep.mubr.bf16.mxu0 %v1355
      %2139 = vmatmul.mubr.bf16.gmra.mxu0 %v1354
      %v2140 = vpop.f32.mrf.mxu0
      %v2141 = vadd.f32 %v2044, %v2140
      %v2142 = vpop.f32.mrf.mxu0
      %v2143 = vpop.f32.mrf.mxu0
      %v2144 = vadd.f32 %v2047, %v2143
      %v2145 = vpop.f32.mrf.mxu0
      %2146 = vmatprep.mubr.bf16.mxu0 %v1358
      %2147 = vmatmul.mubr.bf16.gmra.mxu0 %v1357
      %v2148 = vpop.f32.mrf.mxu0
      %v2149 = vadd.f32 %v2052, %v2148
      %v2150 = vpop.f32.mrf.mxu0
      %v2151 = vpop.f32.mrf.mxu0
      %v2152 = vadd.f32 %v2055, %v2151
      %v2153 = vpop.f32.mrf.mxu0
      %2154 = vmatprep.mubr.bf16.mxu0 %v1361
      %2155 = vmatmul.mubr.bf16.gmra.mxu0 %v1360
      %v2156 = vpop.f32.mrf.mxu0
      %v2157 = vadd.f32 %v2060, %v2156
      %v2158 = vpop.f32.mrf.mxu0
      %v2159 = vpop.f32.mrf.mxu0
      %v2160 = vadd.f32 %v2063, %v2159
      %v2161 = vpop.f32.mrf.mxu0
      %2162 = vmatprep.mubr.bf16.mxu0 %v1364
      %2163 = vmatmul.mubr.bf16.gmra.mxu0 %v1363
      %v2164 = vpop.f32.mrf.mxu0
      %v2165 = vadd.f32 %v2068, %v2164
      %v2166 = vpop.f32.mrf.mxu0
      %v2167 = vpop.f32.mrf.mxu0
      %v2168 = vadd.f32 %v2071, %v2167
      %v2169 = vpop.f32.mrf.mxu0
      %2170 = vmatprep.mubr.bf16.mxu0 %v1367
      %2171 = vmatmul.mubr.bf16.gmra.mxu0 %v1366
      %v2172 = vpop.f32.mrf.mxu0
      %v2173 = vadd.f32 %v2076, %v2172
      %v2174 = vpop.f32.mrf.mxu0
      %v2175 = vpop.f32.mrf.mxu0
      %v2176 = vadd.f32 %v2079, %v2175
      %v2177 = vpop.f32.mrf.mxu0
      %2178 = vmatprep.mubr.bf16.mxu0 %v1370
      %2179 = vmatmul.mubr.bf16.gmra.mxu0 %v1369
      %v2180 = vpop.f32.mrf.mxu0
      %v2181 = vadd.f32 %v2084, %v2180
      %v2182 = vpop.f32.mrf.mxu0
      %v2183 = vpop.f32.mrf.mxu0
      %v2184 = vadd.f32 %v2087, %v2183
      %v2185 = vpop.f32.mrf.mxu0
      %2186 = vmatprep.mubr.bf16.mxu0 %v1373
      %2187 = vmatmul.mubr.bf16.gmra.mxu0 %v1372
      %v2188 = vpop.f32.mrf.mxu0
      %v2189 = vadd.f32 %v2092, %v2188
      %v2190 = vpop.f32.mrf.mxu0
      %v2191 = vpop.f32.mrf.mxu0
      %v2192 = vadd.f32 %v2095, %v2191
      %v2193 = vpop.f32.mrf.mxu0
      %2194 = vdwg.mxu0
      %2195 = vmatprep.subr.bf16.mxu0 0
      %2196 = vmatpush1.bf16.msra.mxu0 %v1734
      %2197 = vmatprep.subr.bf16.mxu0 0
      %2198 = vmatpush1.bf16.msra.mxu0 %v1733
      %2199 = vmatprep.subr.bf16.mxu0 0
      %2200 = vmatpush1.bf16.msra.mxu0 %v1732
      %2201 = vmatprep.subr.bf16.mxu0 0
      %2202 = vmatpush1.bf16.msra.mxu0 %v1731
      %2203 = vmatprep.subr.bf16.mxu0 0
      %2204 = vmatpush1.bf16.msra.mxu0 %v1730
      %2205 = vmatprep.subr.bf16.mxu0 0
      %2206 = vmatpush1.bf16.msra.mxu0 %v1729
      %2207 = vmatprep.subr.bf16.mxu0 0
      %2208 = vmatpush1.bf16.msra.mxu0 %v1728
      %2209 = vmatprep.subr.bf16.mxu0 0
      %2210 = vmatpush1.bf16.msra.mxu0 %v1727
      %2211 = vmatprep.subr.bf16.mxu0 0
      %2212 = vmatpush2.bf16.msra.mxu0 0
      %2213 = vmatprep.subr.bf16.mxu0 0
      %2214 = vmatpush2.bf16.msra.mxu0 0
      %2215 = vmatprep.subr.bf16.mxu0 0
      %2216 = vmatpush2.bf16.msra.mxu0 0
      %2217 = vmatprep.subr.bf16.mxu0 0
      %2218 = vmatpush2.bf16.msra.mxu0 0
      %2219 = vmatprep.subr.bf16.mxu0 0
      %2220 = vmatpush2.bf16.msra.mxu0 0
      %2221 = vmatprep.subr.bf16.mxu0 0
      %2222 = vmatpush2.bf16.msra.mxu0 0
      %2223 = vmatprep.subr.bf16.mxu0 0
      %2224 = vmatpush2.bf16.msra.mxu0 0
      %2225 = vmatprep.subr.bf16.mxu0 0
      %2226 = vmatpush2.bf16.msra.mxu0 0
      %2227 = vmatprep.mubr.bf16.mxu0 0
      %2228 = vmatmul.mubr.bf16.gmra.mxu0 %v1353
      %v2229 = vpop.f32.mrf.mxu0
      %v2230 = vadd.f32 %v2133, %v2229
      %v2231 = vpop.f32.mrf.mxu0
      %v2232 = vpop.f32.mrf.mxu0
      %v2233 = vadd.f32 %v2136, %v2232
      %v2234 = vpop.f32.mrf.mxu0
      %2235 = vmatprep.mubr.bf16.mxu0 0
      %2236 = vmatmul.mubr.bf16.gmra.mxu0 %v1356
      %v2237 = vpop.f32.mrf.mxu0
      %v2238 = vadd.f32 %v2141, %v2237
      %v2239 = vpop.f32.mrf.mxu0
      %v2240 = vpop.f32.mrf.mxu0
      %v2241 = vadd.f32 %v2144, %v2240
      %v2242 = vpop.f32.mrf.mxu0
      %2243 = vmatprep.mubr.bf16.mxu0 0
      %2244 = vmatmul.mubr.bf16.gmra.mxu0 %v1359
      %v2245 = vpop.f32.mrf.mxu0
      %v2246 = vadd.f32 %v2149, %v2245
      %v2247 = vpop.f32.mrf.mxu0
      %v2248 = vpop.f32.mrf.mxu0
      %v2249 = vadd.f32 %v2152, %v2248
      %v2250 = vpop.f32.mrf.mxu0
      %2251 = vmatprep.mubr.bf16.mxu0 0
      %2252 = vmatmul.mubr.bf16.gmra.mxu0 %v1362
      %v2253 = vpop.f32.mrf.mxu0
      %v2254 = vadd.f32 %v2157, %v2253
      %v2255 = vpop.f32.mrf.mxu0
      %v2256 = vpop.f32.mrf.mxu0
      %v2257 = vadd.f32 %v2160, %v2256
      %v2258 = vpop.f32.mrf.mxu0
      %2259 = vmatprep.mubr.bf16.mxu0 0
      %2260 = vmatmul.mubr.bf16.gmra.mxu0 %v1365
      %v2261 = vpop.f32.mrf.mxu0
      %v2262 = vadd.f32 %v2165, %v2261
      %v2263 = vpop.f32.mrf.mxu0
      %v2264 = vpop.f32.mrf.mxu0
      %v2265 = vadd.f32 %v2168, %v2264
      %v2266 = vpop.f32.mrf.mxu0
      %2267 = vmatprep.mubr.bf16.mxu0 0
      %2268 = vmatmul.mubr.bf16.gmra.mxu0 %v1368
      %v2269 = vpop.f32.mrf.mxu0
      %v2270 = vadd.f32 %v2173, %v2269
      %v2271 = vpop.f32.mrf.mxu0
      %v2272 = vpop.f32.mrf.mxu0
      %v2273 = vadd.f32 %v2176, %v2272
      %v2274 = vpop.f32.mrf.mxu0
      %2275 = vmatprep.mubr.bf16.mxu0 0
      %2276 = vmatmul.mubr.bf16.gmra.mxu0 %v1371
      %v2277 = vpop.f32.mrf.mxu0
      %v2278 = vadd.f32 %v2181, %v2277
      %v2279 = vpop.f32.mrf.mxu0
      %v2280 = vpop.f32.mrf.mxu0
      %v2281 = vadd.f32 %v2184, %v2280
      %v2282 = vpop.f32.mrf.mxu0
      %2283 = vmatprep.mubr.bf16.mxu0 0
      %2284 = vmatmul.mubr.bf16.gmra.mxu0 %v1374
      %v2285 = vpop.f32.mrf.mxu0
      %v2286 = vadd.f32 %v2189, %v2285
      %v2287 = vpop.f32.mrf.mxu0
      %v2288 = vpop.f32.mrf.mxu0
      %v2289 = vadd.f32 %v2192, %v2288
      %v2290 = vpop.f32.mrf.mxu0
      %2291 = vdwg.mxu0
      %v2292 = vpack.c.bf16 %v2233, %v2230
      %v2293 = vpack.c.bf16 %v2241, %v2238
      %v2294 = vpack.c.bf16 %v2249, %v2246
      %v2295 = vpack.c.bf16 %v2257, %v2254
      %v2296 = vpack.c.bf16 %v2265, %v2262
      %v2297 = vpack.c.bf16 %v2273, %v2270
      %v2298 = vpack.c.bf16 %v2281, %v2278
      %v2299 = vpack.c.bf16 %v2289, %v2286
      %v2308 = vunpack.c.l.b16 %v2292
      %v2309 = vunpack.c.h.b16 %v2292
      %v2310 = vunpack.c.l.b16 %v2293
      %v2311 = vunpack.c.h.b16 %v2293
      %v2312 = vunpack.c.l.b16 %v2294
      %v2313 = vunpack.c.h.b16 %v2294
      %v2314 = vunpack.c.l.b16 %v2295
      %v2315 = vunpack.c.h.b16 %v2295
      %v2316 = vunpack.c.l.b16 %v2296
      %v2317 = vunpack.c.h.b16 %v2296
      %v2318 = vunpack.c.l.b16 %v2297
      %v2319 = vunpack.c.h.b16 %v2297
      %v2320 = vunpack.c.l.b16 %v2298
      %v2321 = vunpack.c.h.b16 %v2298
      %v2322 = vunpack.c.l.b16 %v2299
      %v2323 = vunpack.c.h.b16 %v2299
      %v2324 = vpack.c.b16 %v2308, %v2308
      %v2325 = vpack.c.b16 %v2309, %v2309
      %v2326 = vpack.c.b16 %v2310, %v2310
      %v2327 = vpack.c.b16 %v2311, %v2311
      %v2328 = vpack.c.b16 %v2312, %v2312
      %v2329 = vpack.c.b16 %v2313, %v2313
      %v2330 = vpack.c.b16 %v2314, %v2314
      %v2331 = vpack.c.b16 %v2315, %v2315
      %v2332 = vpack.c.b16 %v2316, %v2316
      %v2333 = vpack.c.b16 %v2317, %v2317
      %v2334 = vpack.c.b16 %v2318, %v2318
      %v2335 = vpack.c.b16 %v2319, %v2319
      %v2336 = vpack.c.b16 %v2320, %v2320
      %v2337 = vpack.c.b16 %v2321, %v2321
      %v2338 = vpack.c.b16 %v2322, %v2322
      %v2339 = vpack.c.b16 %v2323, %v2323
      %2356 = vst [vmem:[%s494] sm:$0xf] %v2324
      %2357 = vst [vmem:[%s494 + $0x4] sm:$0xf] %v2325
      %2358 = vst [vmem:[%s494 + $0x8] sm:$0xf] %v2326
      %2359 = vst [vmem:[%s494 + $0xc] sm:$0xf] %v2327
      %2360 = vst [vmem:[%s494 + $0x10] sm:$0xf] %v2328
      %2361 = vst [vmem:[%s494 + $0x14] sm:$0xf] %v2329
      %2362 = vst [vmem:[%s494 + $0x18] sm:$0xf] %v2330
      %2363 = vst [vmem:[%s494 + $0x1c] sm:$0xf] %v2331
      %2364 = vst [vmem:[%s494 + $0x20] sm:$0xf] %v2332
      %2365 = vst [vmem:[%s494 + $0x24] sm:$0xf] %v2333
      %2366 = vst [vmem:[%s494 + $0x28] sm:$0xf] %v2334
      %2367 = vst [vmem:[%s494 + $0x2c] sm:$0xf] %v2335
      %2368 = vst [vmem:[%s494 + $0x30] sm:$0xf] %v2336
      %2369 = vst [vmem:[%s494 + $0x34] sm:$0xf] %v2337
      %2370 = vst [vmem:[%s494 + $0x38] sm:$0xf] %v2338
      %2371 = vst [vmem:[%s494 + $0x3c] sm:$0xf] %v2339
      %v2372 = vadd.f32 %v2230, %v2233
      %v2373 = vadd.f32 %v2372, %v2238
      %v2374 = vadd.f32 %v2373, %v2241
      %v2375 = vadd.f32 %v2374, %v2246
      %v2376 = vadd.f32 %v2375, %v2249
      %v2377 = vadd.f32 %v2376, %v2254
      %v2378 = vadd.f32 %v2377, %v2257
      %v2379 = vadd.f32 %v2378, %v2262
      %v2380 = vadd.f32 %v2379, %v2265
      %v2381 = vadd.f32 %v2380, %v2270
      %v2382 = vadd.f32 %v2381, %v2273
      %v2383 = vadd.f32 %v2382, %v2278
      %v2384 = vadd.f32 %v2383, %v2281
      %v2385 = vadd.f32 %v2384, %v2286
      %v2386 = vadd.f32 %v2385, %v2289
      %v2387 = vrot.slane %v2386, 4
      %v2388 = vadd.f32 %v2386, %v2387
      %v2389 = vrot.slane %v2388, 2
      %v2390 = vadd.f32 %v2388, %v2389
      %v2391 = vrot.slane %v2390, 1
      %v2392 = vadd.f32 %v2390, %v2391
      %2393 = vst [vmem:[%s502] sm:$0x1] %v2392
      %v2394 = vmul.f32 %v2230, %v2230
      %v2395 = vmul.f32 %v2233, %v2233
      %v2396 = vmul.f32 %v2238, %v2238
      %v2397 = vmul.f32 %v2241, %v2241
      %v2398 = vmul.f32 %v2246, %v2246
      %v2399 = vmul.f32 %v2249, %v2249
      %v2400 = vmul.f32 %v2254, %v2254
      %v2401 = vmul.f32 %v2257, %v2257
      %v2402 = vmul.f32 %v2262, %v2262
      %v2403 = vmul.f32 %v2265, %v2265
      %v2404 = vmul.f32 %v2270, %v2270
      %v2405 = vmul.f32 %v2273, %v2273
      %v2406 = vmul.f32 %v2278, %v2278
      %v2407 = vmul.f32 %v2281, %v2281
      %v2408 = vmul.f32 %v2286, %v2286
      %v2409 = vmul.f32 %v2289, %v2289
      %v2410 = vadd.f32 %v2394, %v2395
      %v2411 = vadd.f32 %v2410, %v2396
      %v2412 = vadd.f32 %v2411, %v2397
      %v2413 = vadd.f32 %v2412, %v2398
      %v2414 = vadd.f32 %v2413, %v2399
      %v2415 = vadd.f32 %v2414, %v2400
      %v2416 = vadd.f32 %v2415, %v2401
      %v2417 = vadd.f32 %v2416, %v2402
      %v2418 = vadd.f32 %v2417, %v2403
      %v2419 = vadd.f32 %v2418, %v2404
      %v2420 = vadd.f32 %v2419, %v2405
      %v2421 = vadd.f32 %v2420, %v2406
      %v2422 = vadd.f32 %v2421, %v2407
      %v2423 = vadd.f32 %v2422, %v2408
      %v2424 = vadd.f32 %v2423, %v2409
      %v2425 = vrot.slane %v2424, 4
      %v2426 = vadd.f32 %v2424, %v2425
      %v2427 = vrot.slane %v2426, 2
      %v2428 = vadd.f32 %v2426, %v2427
      %v2429 = vrot.slane %v2428, 1
      %v2430 = vadd.f32 %v2428, %v2429
      %2431 = vst [vmem:[%s509] sm:$0x1] %v2430
      %s2432 = smul.u32 16, %s25
      %p2433 = scmp.lt.s32.totalorder %s24, 1
      %s2434 = scalar_select %p2433, %s24, 1
      %p2435 = scmp.lt.s32.totalorder %s2432, 31
      %s2436 = scalar_select %p2435, %s2432, 31
      %s2437 = smul.addr %s2434, 32
      %s2438 = sadd.s32 %s2436, %s2437
      %s2439 = smul.addr %s2438, 4
      %s2440 = scalar_lea.vmem %s6, %s2439
      %p2441 = scmp.lt.s32.totalorder %s24, 1
      %s2442 = scalar_select %p2441, %s24, 1
      %p2443 = scmp.lt.s32.totalorder %s25, 1
      %s2444 = scalar_select %p2443, %s25, 1
      %s2445 = smul.addr %s2442, 2
      %s2446 = sadd.s32 %s2444, %s2445
      %s2447 = scalar_lea.vmem %s7, %s2446
      %p2448 = scmp.lt.s32.totalorder %s24, 1
      %s2449 = scalar_select %p2448, %s24, 1
      %p2450 = scmp.lt.s32.totalorder %s25, 1
      %s2451 = scalar_select %p2450, %s25, 1
      %s2452 = smul.addr %s2449, 2
      %s2453 = sadd.s32 %s2451, %s2452
      %s2454 = scalar_lea.vmem %s8, %s2453
      // Predicated region
      $region45: #{basic_block_forward.2} parent=43 // pred_check
        %p2455 = pneg %p215
      $region46: #{basic_block_forward.2} parent=43 // pred_check_branch
        %2457 = sbr.rel (%p2455) target = $region48
      $region47: #{basic_block_forward.2} parent=43 // pred_region
        %s2458 = smul.u32 16, %s25
      $region48: #{basic_block_forward.2} parent=43 // pred_fallthru
        _
      // Predicated region
      $region49: #{basic_block_forward.2} parent=43 // pred_check
        %p2459 = pneg %p243
      $region50: #{basic_block_forward.2} parent=43 // pred_check_branch
        %2461 = sbr.rel (%p2459) target = $region52
      $region51: #{basic_block_forward.2} parent=43 // pred_region
        _
      $region52: #{basic_block_forward.2} parent=43 // pred_fallthru
        _
      // Predicated region
      $region53: #{basic_block_forward.2} parent=43 // pred_check
        %p2462 = pneg %p271
      $region54: #{basic_block_forward.2} parent=43 // pred_check_branch
        %2464 = sbr.rel (%p2462) target = $region56
      $region55: #{basic_block_forward.2} parent=43 // pred_region
        _
      $region56: #{basic_block_forward.2} parent=43 // pred_fallthru
        _
    $region44: #{basic_block_forward.2} parent=5 // pred_fallthru
      _
    %p2465 = scmp.le.s32.totalorder 2, %s15
    // Predicated region
    $region57: #{basic_block_forward.2} parent=5 // pred_check
      %p2466 = pneg %p2465
    $region58: #{basic_block_forward.2} parent=5 // pred_check_branch
      %2468 = sbr.rel (%p2466) target = $region60
    $region59: #{basic_block_forward.2} parent=5 // pred_region
      %s2469 = ssub.s32 %s15, 2
      // Predicated region
      $region61: #{basic_block_forward.2} parent=59 // pred_check
        %p2470 = pneg %p221
      $region62: #{basic_block_forward.2} parent=59 // pred_check_branch
        %2472 = sbr.rel (%p2470) target = $region64
      $region63: #{basic_block_forward.2} parent=59 // pred_region
        %s2473 = smul.u32 16, %s27
        %p2474 = scmp.lt.s32.totalorder %s26, 1
        %s2475 = scalar_select %p2474, %s26, 1
        %p2476 = scmp.lt.s32.totalorder %s2473, 31
        %s2477 = scalar_select %p2476, %s2473, 31
        %s2478 = smul.addr %s2475, 32
        %s2479 = sadd.s32 %s2477, %s2478
        %s2480 = smul.addr %s2479, 4
        %s2481 = scalar_lea.vmem %s6, %s2480
      $region64: #{basic_block_forward.2} parent=59 // pred_fallthru
        _
      // Predicated region
      $region65: #{basic_block_forward.2} parent=59 // pred_check
        %p2482 = pneg %p249
      $region66: #{basic_block_forward.2} parent=59 // pred_check_branch
        %2484 = sbr.rel (%p2482) target = $region68
      $region67: #{basic_block_forward.2} parent=59 // pred_region
        %p2485 = scmp.lt.s32.totalorder %s26, 1
        %s2486 = scalar_select %p2485, %s26, 1
        %p2487 = scmp.lt.s32.totalorder %s27, 1
        %s2488 = scalar_select %p2487, %s27, 1
        %s2489 = smul.addr %s2486, 2
        %s2490 = sadd.s32 %s2488, %s2489
        %s2491 = scalar_lea.vmem %s7, %s2490
      $region68: #{basic_block_forward.2} parent=59 // pred_fallthru
        _
      // Predicated region
      $region69: #{basic_block_forward.2} parent=59 // pred_check
        %p2492 = pneg %p277
      $region70: #{basic_block_forward.2} parent=59 // pred_check_branch
        %2494 = sbr.rel (%p2492) target = $region72
      $region71: #{basic_block_forward.2} parent=59 // pred_region
        %p2495 = scmp.lt.s32.totalorder %s26, 1
        %s2496 = scalar_select %p2495, %s26, 1
        %p2497 = scmp.lt.s32.totalorder %s27, 1
        %s2498 = scalar_select %p2497, %s27, 1
        %s2499 = smul.addr %s2496, 2
        %s2500 = sadd.s32 %s2498, %s2499
        %s2501 = scalar_lea.vmem %s8, %s2500
      $region72: #{basic_block_forward.2} parent=59 // pred_fallthru
        _
    $region60: #{basic_block_forward.2} parent=5 // pred_fallthru
      _
  $region6: #{basic_block_forward.2} parent=0 // loop_footer
    %s19 = sadd.s32 1, %s15
  $region7: #{basic_block_forward.2} parent=0 // loop_footer_branch
    %14 = sbr.rel target = $region3
  $region8: #{basic_block_forward.2} parent=0 // loop_exit
    _

// kernel: basic_block_forward.3
$region0: #{basic_block_forward.3}
  #allocation0 [shape = 'u32[]', space=smem, size = 0x4, offset = 0x4, fixed_abs, tag = 'smem constant byte address 0x4 - core index']
  #allocation1 [shape = 'u32[144,128]{1,0:T(1,128)}', space=vmem, size = 0x12000, scoped, tag = 'internal scratch']
  %s0 = inlined_call_operand.vmem [shape: bf16[2,256,128], index: 0, kind: input, shape index: {}, may-alias: {0,1,2}]
  %s1 = inlined_call_operand.vmem [shape: bf16[2,256,128], index: 1, kind: input, shape index: {}, may-alias: {0,1,2}]
  %s2 = inlined_call_operand.vmem [shape: bf16[2,256,128], index: 2, kind: input, shape index: {}, may-alias: {0,1,2}]
  %s3 = inlined_call_operand.vmem [shape: bf16[2,256,128], index: 3, kind: input, shape index: {}]
  %s4 = inlined_call_operand.vmem [shape: f32[1,128], index: 4, kind: input, shape index: {}]
  %s5 = inlined_call_operand.vmem [shape: f32[1,128], index: 5, kind: input, shape index: {}]
  %s6 = inlined_call_operand.vmem [shape: bf16[1152,128], index: 6, kind: input, shape index: {}]
  %s7 = inlined_call_operand.vmem [shape: bf16[128,128], index: 7, kind: input, shape index: {}]
  %s8 = inlined_call_operand.vmem [shape: f32[2,256,128], index: 8, kind: output, shape index: {}]
  %s9 = sld [smem:[#allocation0]]
  $region65: #{basic_block_forward.3} parent=0
    _
  %s11 = ssub.s32 1, %s9
  %s12 = scalar_select 0, %s11, %s9
  loop: start=0, step=1, limit=6
  $region2: #{basic_block_forward.3} parent=0 // loop_pre_header
    _
  $region3: #{basic_block_forward.3} parent=0 // loop_header
    %s14 = sphi 0, %s18
    %p15 = scmp.ge.s32.totalorder %s14, 6
    %s21 = sphi 0, %s33
    %s22 = sphi 0, %s29
    %s23 = sphi 0, %s21
    %s24 = sphi 0, %s22
    %s25 = sphi 0, %s23
    %s26 = sphi 0, %s24
    %s38 = sphi 0, %s40
    %s41 = sphi 0, %s38
    %s42 = sphi 0, %s41
    %s58 = sphi 0, %s42
    %s74 = sphi 0, %s76
    %s77 = sphi 0, %s74
    %s78 = sphi 0, %s77
    %s94 = sphi 0, %s78
    %s110 = sphi 0, %s112
    %s113 = sphi 0, %s110
    %s114 = sphi 0, %s113
    %s130 = sphi 0, %s114
    %s138 = sphi 0, %s140
    %s141 = sphi 0, %s138
    %s142 = sphi 0, %s141
    %s158 = sphi 0, %s142
    %s162 = sphi 0, %s162
    %s164 = sphi 0, %s162
    %s165 = sphi 0, %s164
    %s179 = sphi 0, %s165
    %s183 = sphi 0, %s183
    %s185 = sphi 0, %s183
    %s186 = sphi 0, %s185
    %s200 = sphi 0, %s186
    %s204 = sphi 0, %s204
    %s206 = sphi 0, %s204
    %s207 = sphi 0, %s206
    %s221 = sphi 0, %s207
    %s225 = sphi 0, %s225
    %s227 = sphi 0, %s225
    %s228 = sphi 0, %s227
    %s242 = sphi 0, %s228
    %s250 = sphi 0, %s252
    %s253 = sphi 0, %s250
    %s254 = sphi 0, %s253
    %s270 = sphi 0, %s254
  $region4: #{basic_block_forward.3} parent=0 // loop_header_branch
    %17 = sbr.rel (%p15) target = $region8
  $region5: #{basic_block_forward.3} parent=0 // loop_body
    %s19 = ssub.s32 %s14, 1
    %s20 = ssub.s32 %s14, 2
    %s27 = sadd.s32 1, %s22
    %p28 = scmp.ge.s32.totalorder %s27, 2
    %s29 = scalar_select %p28, 0, %s27
    %s30 = sadd.s32 1, %s21
    %s31 = scalar_select %p28, %s30, %s21
    %p32 = scmp.ge.s32.totalorder %s31, 2
    %s33 = scalar_select %p32, 0, %s31
    %s34 = ssub.s32 %s21, %s33
    %s35 = ssub.s32 %s22, %s29
    %s36 = sor.u32 %s34, %s35
    %p37 = scmp.eq.s32.totalorder %s36, 0
    %s39 = sadd.s32 %s38, 1
    %s40 = scalar_select %p37, %s38, %s39
    %p43 = pneg %p37
    %p44 = scmp.eq.s32.totalorder %s14, 3
    %p45 = por %p43, %p44
    %p46 = scmp.ne.s32.totalorder %s38, %s41
    %p47 = scmp.eq.s32.totalorder %s14, 0
    %p48 = por %p46, %p47
    %p49 = scmp.ne.s32.totalorder %s38, %s41
    %p50 = scmp.eq.s32.totalorder %s19, 3
    %p51 = por %p49, %p50
    %p52 = scmp.ne.s32.totalorder %s41, %s42
    %p53 = scmp.eq.s32.totalorder %s19, 0
    %p54 = por %p52, %p53
    %p55 = scmp.ne.s32.totalorder %s41, %s42
    %p56 = scmp.eq.s32.totalorder %s20, 3
    %p57 = por %p55, %p56
    %p59 = scmp.ne.s32.totalorder %s42, %s58
    %p60 = scmp.eq.s32.totalorder %s20, 0
    %p61 = por %p59, %p60
    %s62 = smul.u32 %s22, 8
    %s63 = ssub.s32 %s62, 1
    %p64 = scmp.gt.s32.totalorder %s63, 0
    %s65 = scalar_select %p64, %s63, 0
    %s66 = smul.u32 %s29, 8
    %s67 = ssub.s32 %s66, 1
    %p68 = scmp.gt.s32.totalorder %s67, 0
    %s69 = scalar_select %p68, %s67, 0
    %s70 = ssub.s32 %s21, %s33
    %s71 = ssub.s32 %s65, %s69
    %s72 = sor.u32 %s70, %s71
    %p73 = scmp.eq.s32.totalorder %s72, 0
    %s75 = sadd.s32 %s74, 1
    %s76 = scalar_select %p73, %s74, %s75
    %p79 = pneg %p73
    %p80 = scmp.eq.s32.totalorder %s14, 3
    %p81 = por %p79, %p80
    %p82 = scmp.ne.s32.totalorder %s74, %s77
    %p83 = scmp.eq.s32.totalorder %s14, 0
    %p84 = por %p82, %p83
    %p85 = scmp.ne.s32.totalorder %s74, %s77
    %p86 = scmp.eq.s32.totalorder %s19, 3
    %p87 = por %p85, %p86
    %p88 = scmp.ne.s32.totalorder %s77, %s78
    %p89 = scmp.eq.s32.totalorder %s19, 0
    %p90 = por %p88, %p89
    %p91 = scmp.ne.s32.totalorder %s77, %s78
    %p92 = scmp.eq.s32.totalorder %s20, 3
    %p93 = por %p91, %p92
    %p95 = scmp.ne.s32.totalorder %s78, %s94
    %p96 = scmp.eq.s32.totalorder %s20, 0
    %p97 = por %p95, %p96
    %s98 = sadd.s32 %s22, 1
    %s99 = smul.u32 %s98, 8
    %p100 = scmp.lt.s32.totalorder %s99, 15
    %s101 = scalar_select %p100, %s99, 15
    %s102 = sadd.s32 %s29, 1
    %s103 = smul.u32 %s102, 8
    %p104 = scmp.lt.s32.totalorder %s103, 15
    %s105 = scalar_select %p104, %s103, 15
    %s106 = ssub.s32 %s21, %s33
    %s107 = ssub.s32 %s101, %s105
    %s108 = sor.u32 %s106, %s107
    %p109 = scmp.eq.s32.totalorder %s108, 0
    %s111 = sadd.s32 %s110, 1
    %s112 = scalar_select %p109, %s110, %s111
    %p115 = pneg %p109
    %p116 = scmp.eq.s32.totalorder %s14, 3
    %p117 = por %p115, %p116
    %p118 = scmp.ne.s32.totalorder %s110, %s113
    %p119 = scmp.eq.s32.totalorder %s14, 0
    %p120 = por %p118, %p119
    %p121 = scmp.ne.s32.totalorder %s110, %s113
    %p122 = scmp.eq.s32.totalorder %s19, 3
    %p123 = por %p121, %p122
    %p124 = scmp.ne.s32.totalorder %s113, %s114
    %p125 = scmp.eq.s32.totalorder %s19, 0
    %p126 = por %p124, %p125
    %p127 = scmp.ne.s32.totalorder %s113, %s114
    %p128 = scmp.eq.s32.totalorder %s20, 3
    %p129 = por %p127, %p128
    %p131 = scmp.ne.s32.totalorder %s114, %s130
    %p132 = scmp.eq.s32.totalorder %s20, 0
    %p133 = por %p131, %p132
    %s134 = ssub.s32 %s21, %s33
    %s135 = ssub.s32 %s22, %s29
    %s136 = sor.u32 %s134, %s135
    %p137 = scmp.eq.s32.totalorder %s136, 0
    %s139 = sadd.s32 %s138, 1
    %s140 = scalar_select %p137, %s138, %s139
    %p143 = pneg %p137
    %p144 = scmp.eq.s32.totalorder %s14, 3
    %p145 = por %p143, %p144
    %p146 = scmp.ne.s32.totalorder %s138, %s141
    %p147 = scmp.eq.s32.totalorder %s14, 0
    %p148 = por %p146, %p147
    %p149 = scmp.ne.s32.totalorder %s138, %s141
    %p150 = scmp.eq.s32.totalorder %s19, 3
    %p151 = por %p149, %p150
    %p152 = scmp.ne.s32.totalorder %s141, %s142
    %p153 = scmp.eq.s32.totalorder %s19, 0
    %p154 = por %p152, %p153
    %p155 = scmp.ne.s32.totalorder %s141, %s142
    %p156 = scmp.eq.s32.totalorder %s20, 3
    %p157 = por %p155, %p156
    %p159 = scmp.ne.s32.totalorder %s142, %s158
    %p160 = scmp.eq.s32.totalorder %s20, 0
    %p161 = por %p159, %p160
    %s163 = sadd.s32 %s162, 1
    %p166 = scmp.eq.s32.totalorder %s14, 3
    %p167 = scmp.ne.s32.totalorder %s162, %s164
    %p168 = scmp.eq.s32.totalorder %s14, 0
    %p169 = por %p167, %p168
    %p170 = scmp.ne.s32.totalorder %s162, %s164
    %p171 = scmp.eq.s32.totalorder %s19, 3
    %p172 = por %p170, %p171
    %p173 = scmp.ne.s32.totalorder %s164, %s165
    %p174 = scmp.eq.s32.totalorder %s19, 0
    %p175 = por %p173, %p174
    %p176 = scmp.ne.s32.totalorder %s164, %s165
    %p177 = scmp.eq.s32.totalorder %s20, 3
    %p178 = por %p176, %p177
    %p180 = scmp.ne.s32.totalorder %s165, %s179
    %p181 = scmp.eq.s32.totalorder %s20, 0
    %p182 = por %p180, %p181
    %s184 = sadd.s32 %s183, 1
    %p187 = scmp.eq.s32.totalorder %s14, 3
    %p188 = scmp.ne.s32.totalorder %s183, %s185
    %p189 = scmp.eq.s32.totalorder %s14, 0
    %p190 = por %p188, %p189
    %p191 = scmp.ne.s32.totalorder %s183, %s185
    %p192 = scmp.eq.s32.totalorder %s19, 3
    %p193 = por %p191, %p192
    %p194 = scmp.ne.s32.totalorder %s185, %s186
    %p195 = scmp.eq.s32.totalorder %s19, 0
    %p196 = por %p194, %p195
    %p197 = scmp.ne.s32.totalorder %s185, %s186
    %p198 = scmp.eq.s32.totalorder %s20, 3
    %p199 = por %p197, %p198
    %p201 = scmp.ne.s32.totalorder %s186, %s200
    %p202 = scmp.eq.s32.totalorder %s20, 0
    %p203 = por %p201, %p202
    %s205 = sadd.s32 %s204, 1
    %p208 = scmp.eq.s32.totalorder %s14, 3
    %p209 = scmp.ne.s32.totalorder %s204, %s206
    %p210 = scmp.eq.s32.totalorder %s14, 0
    %p211 = por %p209, %p210
    %p212 = scmp.ne.s32.totalorder %s204, %s206
    %p213 = scmp.eq.s32.totalorder %s19, 3
    %p214 = por %p212, %p213
    %p215 = scmp.ne.s32.totalorder %s206, %s207
    %p216 = scmp.eq.s32.totalorder %s19, 0
    %p217 = por %p215, %p216
    %p218 = scmp.ne.s32.totalorder %s206, %s207
    %p219 = scmp.eq.s32.totalorder %s20, 3
    %p220 = por %p218, %p219
    %p222 = scmp.ne.s32.totalorder %s207, %s221
    %p223 = scmp.eq.s32.totalorder %s20, 0
    %p224 = por %p222, %p223
    %s226 = sadd.s32 %s225, 1
    %p229 = scmp.eq.s32.totalorder %s14, 3
    %p230 = scmp.ne.s32.totalorder %s225, %s227
    %p231 = scmp.eq.s32.totalorder %s14, 0
    %p232 = por %p230, %p231
    %p233 = scmp.ne.s32.totalorder %s225, %s227
    %p234 = scmp.eq.s32.totalorder %s19, 3
    %p235 = por %p233, %p234
    %p236 = scmp.ne.s32.totalorder %s227, %s228
    %p237 = scmp.eq.s32.totalorder %s19, 0
    %p238 = por %p236, %p237
    %p239 = scmp.ne.s32.totalorder %s227, %s228
    %p240 = scmp.eq.s32.totalorder %s20, 3
    %p241 = por %p239, %p240
    %p243 = scmp.ne.s32.totalorder %s228, %s242
    %p244 = scmp.eq.s32.totalorder %s20, 0
    %p245 = por %p243, %p244
    %s246 = ssub.s32 %s21, %s33
    %s247 = ssub.s32 %s22, %s29
    %s248 = sor.u32 %s246, %s247
    %p249 = scmp.eq.s32.totalorder %s248, 0
    %s251 = sadd.s32 %s250, 1
    %s252 = scalar_select %p249, %s250, %s251
    %p255 = pneg %p249
    %p256 = scmp.eq.s32.totalorder %s14, 3
    %p257 = por %p255, %p256
    %p258 = scmp.ne.s32.totalorder %s250, %s253
    %p259 = scmp.eq.s32.totalorder %s14, 0
    %p260 = por %p258, %p259
    %p261 = scmp.ne.s32.totalorder %s250, %s253
    %p262 = scmp.eq.s32.totalorder %s19, 3
    %p263 = por %p261, %p262
    %p264 = scmp.ne.s32.totalorder %s253, %s254
    %p265 = scmp.eq.s32.totalorder %s19, 0
    %p266 = por %p264, %p265
    %p267 = scmp.ne.s32.totalorder %s253, %s254
    %p268 = scmp.eq.s32.totalorder %s20, 3
    %p269 = por %p267, %p268
    %p271 = scmp.ne.s32.totalorder %s254, %s270
    %p272 = scmp.eq.s32.totalorder %s20, 0
    %p273 = por %p271, %p272
    %p274 = scmp.le.s32.totalorder 1, %s14
    %p275 = scmp.lt.s32.totalorder %s14, 5
    %p276 = pnand %p274, %p275
    %p277 = pneg %p276
    // Predicated region
    $region9: #{basic_block_forward.3} parent=5 // pred_check
      _
    $region10: #{basic_block_forward.3} parent=5 // pred_check_branch
      %279 = sbr.rel (%p276) target = $region12
    $region11: #{basic_block_forward.3} parent=5 // pred_region
      %s280 = ssub.s32 %s14, 1
      // Predicated region
      $region13: #{basic_block_forward.3} parent=11 // pred_check
        %p281 = pneg %p175
      $region14: #{basic_block_forward.3} parent=11 // pred_check_branch
        %283 = sbr.rel (%p281) target = $region16
      $region15: #{basic_block_forward.3} parent=11 // pred_region
        _
      $region16: #{basic_block_forward.3} parent=11 // pred_fallthru
        _
      // Predicated region
      $region17: #{basic_block_forward.3} parent=11 // pred_check
        %p284 = pneg %p196
      $region18: #{basic_block_forward.3} parent=11 // pred_check_branch
        %286 = sbr.rel (%p284) target = $region20
      $region19: #{basic_block_forward.3} parent=11 // pred_region
        _
      $region20: #{basic_block_forward.3} parent=11 // pred_fallthru
        _
      // Predicated region
      $region21: #{basic_block_forward.3} parent=11 // pred_check
        %p287 = pneg %p217
      $region22: #{basic_block_forward.3} parent=11 // pred_check_branch
        %289 = sbr.rel (%p287) target = $region24
      $region23: #{basic_block_forward.3} parent=11 // pred_region
        _
      $region24: #{basic_block_forward.3} parent=11 // pred_fallthru
        _
      // Predicated region
      $region25: #{basic_block_forward.3} parent=11 // pred_check
        %p290 = pneg %p238
      $region26: #{basic_block_forward.3} parent=11 // pred_check_branch
        %292 = sbr.rel (%p290) target = $region28
      $region27: #{basic_block_forward.3} parent=11 // pred_region
        _
      $region28: #{basic_block_forward.3} parent=11 // pred_fallthru
        _
    $region12: #{basic_block_forward.3} parent=5 // pred_fallthru
      _
    %p293 = scmp.lt.s32.totalorder %s14, 4
    // Predicated region
    $region29: #{basic_block_forward.3} parent=5 // pred_check
      %p294 = pneg %p293
    $region30: #{basic_block_forward.3} parent=5 // pred_check_branch
      %296 = sbr.rel (%p294) target = $region32
    $region31: #{basic_block_forward.3} parent=5 // pred_region
      // Predicated region
      $region33: #{basic_block_forward.3} parent=31 // pred_check
        %p297 = pneg %p48
      $region34: #{basic_block_forward.3} parent=31 // pred_check_branch
        %299 = sbr.rel (%p297) target = $region36
      $region35: #{basic_block_forward.3} parent=31 // pred_region
        %s300 = smul.u32 16, %s22
        %p301 = scmp.lt.s32.totalorder %s21, 1
        %s302 = scalar_select %p301, %s21, 1
        %p303 = scmp.lt.s32.totalorder %s300, 31
        %s304 = scalar_select %p303, %s300, 31
        %s305 = smul.addr %s302, 32
        %s306 = sadd.s32 %s304, %s305
        %s307 = smul.addr %s306, 4
        %s308 = scalar_lea.vmem %s0, %s307
        %s309 = smul.u32 16, %s22
      $region36: #{basic_block_forward.3} parent=31 // pred_fallthru
        _
      // Predicated region
      $region37: #{basic_block_forward.3} parent=31 // pred_check
        %p310 = pneg %p84
      $region38: #{basic_block_forward.3} parent=31 // pred_check_branch
        %312 = sbr.rel (%p310) target = $region40
      $region39: #{basic_block_forward.3} parent=31 // pred_region
        %s313 = smul.u32 %s22, 8
        %s314 = ssub.s32 %s313, 1
        %p315 = scmp.gt.s32.totalorder %s314, 0
        %s316 = scalar_select %p315, %s314, 0
        %s317 = smul.u32 2, %s316
        %p318 = scmp.lt.s32.totalorder %s21, 1
        %s319 = scalar_select %p318, %s21, 1
        %p320 = scmp.lt.s32.totalorder %s317, 31
        %s321 = scalar_select %p320, %s317, 31
        %s322 = smul.addr %s319, 32
        %s323 = sadd.s32 %s321, %s322
        %s324 = smul.addr %s323, 4
        %s325 = scalar_lea.vmem %s1, %s324
        %s326 = smul.u32 %s22, 8
        %s327 = ssub.s32 %s326, 1
        %p328 = scmp.gt.s32.totalorder %s327, 0
        %s329 = scalar_select %p328, %s327, 0
        %s330 = smul.u32 2, %s329
      $region40: #{basic_block_forward.3} parent=31 // pred_fallthru
        _
      // Predicated region
      $region41: #{basic_block_forward.3} parent=31 // pred_check
        %p331 = pneg %p120
      $region42: #{basic_block_forward.3} parent=31 // pred_check_branch
        %333 = sbr.rel (%p331) target = $region44
      $region43: #{basic_block_forward.3} parent=31 // pred_region
        %s334 = sadd.s32 %s22, 1
        %s335 = smul.u32 %s334, 8
        %p336 = scmp.lt.s32.totalorder %s335, 15
        %s337 = scalar_select %p336, %s335, 15
        %s338 = smul.u32 2, %s337
        %p339 = scmp.lt.s32.totalorder %s21, 1
        %s340 = scalar_select %p339, %s21, 1
        %p341 = scmp.lt.s32.totalorder %s338, 31
        %s342 = scalar_select %p341, %s338, 31
        %s343 = smul.addr %s340, 32
        %s344 = sadd.s32 %s342, %s343
        %s345 = smul.addr %s344, 4
        %s346 = scalar_lea.vmem %s2, %s345
        %s347 = sadd.s32 %s22, 1
        %s348 = smul.u32 %s347, 8
        %p349 = scmp.lt.s32.totalorder %s348, 15
        %s350 = scalar_select %p349, %s348, 15
        %s351 = smul.u32 2, %s350
      $region44: #{basic_block_forward.3} parent=31 // pred_fallthru
        _
      // Predicated region
      $region45: #{basic_block_forward.3} parent=31 // pred_check
        %p352 = pneg %p148
      $region46: #{basic_block_forward.3} parent=31 // pred_check_branch
        %354 = sbr.rel (%p352) target = $region48
      $region47: #{basic_block_forward.3} parent=31 // pred_region
        %s355 = smul.u32 16, %s22
        %p356 = scmp.lt.s32.totalorder %s21, 1
        %s357 = scalar_select %p356, %s21, 1
        %p358 = scmp.lt.s32.totalorder %s355, 31
        %s359 = scalar_select %p358, %s355, 31
        %s360 = smul.addr %s357, 32
        %s361 = sadd.s32 %s359, %s360
        %s362 = smul.addr %s361, 4
        %s363 = scalar_lea.vmem %s3, %s362
        %s364 = smul.u32 16, %s22
      $region48: #{basic_block_forward.3} parent=31 // pred_fallthru
        _
    $region32: #{basic_block_forward.3} parent=5 // pred_fallthru
      _
    %p365 = scmp.le.s32.totalorder 1, %s14
    %p366 = scmp.lt.s32.totalorder %s14, 5
    %p367 = pnand %p365, %p366
    %p368 = pneg %p367
    // Predicated region
    $region49: #{basic_block_forward.3} parent=5 // pred_check
      _
    $region50: #{basic_block_forward.3} parent=5 // pred_check_branch
      %370 = sbr.rel (%p367) target = $region52
    $region51: #{basic_block_forward.3} parent=5 // pred_region
      %s371 = ssub.s32 %s14, 1
      %s372 = smul.u32 16, %s24
      %p373 = scmp.lt.s32.totalorder %s23, 1
      %s374 = scalar_select %p373, %s23, 1
      %p375 = scmp.lt.s32.totalorder %s372, 31
      %s376 = scalar_select %p375, %s372, 31
      %s377 = smul.addr %s374, 32
      %s378 = sadd.s32 %s376, %s377
      %s379 = smul.addr %s378, 4
      %s380 = scalar_lea.vmem %s0, %s379
      %p381 = pneg %p54
      %p382 = pneg %p51
      %s383 = smul.u32 %s24, 8
      %s384 = ssub.s32 %s383, 1
      %p385 = scmp.gt.s32.totalorder %s384, 0
      %s386 = scalar_select %p385, %s384, 0
      %s387 = smul.u32 2, %s386
      %p388 = scmp.lt.s32.totalorder %s23, 1
      %s389 = scalar_select %p388, %s23, 1
      %p390 = scmp.lt.s32.totalorder %s387, 31
      %s391 = scalar_select %p390, %s387, 31
      %s392 = smul.addr %s389, 32
      %s393 = sadd.s32 %s391, %s392
      %s394 = smul.addr %s393, 4
      %s395 = scalar_lea.vmem %s1, %s394
      %p396 = pneg %p90
      %p397 = pneg %p87
      %s398 = sadd.s32 %s24, 1
      %s399 = smul.u32 %s398, 8
      %p400 = scmp.lt.s32.totalorder %s399, 15
      %s401 = scalar_select %p400, %s399, 15
      %s402 = smul.u32 2, %s401
      %p403 = scmp.lt.s32.totalorder %s23, 1
      %s404 = scalar_select %p403, %s23, 1
      %p405 = scmp.lt.s32.totalorder %s402, 31
      %s406 = scalar_select %p405, %s402, 31
      %s407 = smul.addr %s404, 32
      %s408 = sadd.s32 %s406, %s407
      %s409 = smul.addr %s408, 4
      %s410 = scalar_lea.vmem %s2, %s409
      %p411 = pneg %p126
      %p412 = pneg %p123
      %s413 = smul.u32 16, %s24
      %p414 = scmp.lt.s32.totalorder %s23, 1
      %s415 = scalar_select %p414, %s23, 1
      %p416 = scmp.lt.s32.totalorder %s413, 31
      %s417 = scalar_select %p416, %s413, 31
      %s418 = smul.addr %s415, 32
      %s419 = sadd.s32 %s417, %s418
      %s420 = smul.addr %s419, 4
      %s421 = scalar_lea.vmem %s3, %s420
      %p422 = pneg %p154
      %p423 = pneg %p151
      %p424 = pneg %p175
      %p425 = pneg %p172
      %p426 = pneg %p196
      %p427 = pneg %p193
      %p428 = pneg %p217
      %p429 = pneg %p214
      %p430 = pneg %p238
      %p431 = pneg %p235
      %p432 = pneg %p266
      %p433 = pneg %p263
      %s434 = smul.u32 16, %s24
      %p435 = scmp.lt.s32.totalorder %s23, 1
      %s436 = scalar_select %p435, %s23, 1
      %p437 = scmp.lt.s32.totalorder %s434, 31
      %s438 = scalar_select %p437, %s434, 31
      %s439 = smul.addr %s436, 32
      %s440 = sadd.s32 %s438, %s439
      %s441 = smul.addr %s440, 8
      %s442 = scalar_lea.vmem %s8, %s441
      %s443 = smul.u32 16, %s24
      %p444 = scmp.lt.s32.totalorder %s23, 1
      %s445 = scalar_select %p444, %s23, 1
      %p446 = scmp.lt.s32.totalorder %s443, 31
      %s447 = scalar_select %p446, %s443, 31
      %s448 = smul.addr %s445, 32
      %s449 = sadd.s32 %s447, %s448
      %s450 = smul.addr %s449, 4
      %s451 = scalar_lea.vmem %s0, %s450
      %s452 = smul.u32 16, %s24
      %s453 = smul.u32 %s24, 8
      %s454 = ssub.s32 %s453, 1
      %p455 = scmp.gt.s32.totalorder %s454, 0
      %s456 = scalar_select %p455, %s454, 0
      %s457 = smul.u32 2, %s456
      %p458 = scmp.lt.s32.totalorder %s23, 1
      %s459 = scalar_select %p458, %s23, 1
      %p460 = scmp.lt.s32.totalorder %s457, 31
      %s461 = scalar_select %p460, %s457, 31
      %s462 = smul.addr %s459, 32
      %s463 = sadd.s32 %s461, %s462
      %s464 = smul.addr %s463, 4
      %s465 = scalar_lea.vmem %s1, %s464
      %s466 = smul.u32 %s24, 8
      %s467 = ssub.s32 %s466, 1
      %p468 = scmp.gt.s32.totalorder %s467, 0
      %s469 = scalar_select %p468, %s467, 0
      %s470 = smul.u32 2, %s469
      %s471 = sadd.s32 %s24, 1
      %s472 = smul.u32 %s471, 8
      %p473 = scmp.lt.s32.totalorder %s472, 15
      %s474 = scalar_select %p473, %s472, 15
      %s475 = smul.u32 2, %s474
      %p476 = scmp.lt.s32.totalorder %s23, 1
      %s477 = scalar_select %p476, %s23, 1
      %p478 = scmp.lt.s32.totalorder %s475, 31
      %s479 = scalar_select %p478, %s475, 31
      %s480 = smul.addr %s477, 32
      %s481 = sadd.s32 %s479, %s480
      %s482 = smul.addr %s481, 4
      %s483 = scalar_lea.vmem %s2, %s482
      %s484 = sadd.s32 %s24, 1
      %s485 = smul.u32 %s484, 8
      %p486 = scmp.lt.s32.totalorder %s485, 15
      %s487 = scalar_select %p486, %s485, 15
      %s488 = smul.u32 2, %s487
      %s489 = smul.u32 16, %s24
      %p490 = scmp.lt.s32.totalorder %s23, 1
      %s491 = scalar_select %p490, %s23, 1
      %p492 = scmp.lt.s32.totalorder %s489, 31
      %s493 = scalar_select %p492, %s489, 31
      %s494 = smul.addr %s491, 32
      %s495 = sadd.s32 %s493, %s494
      %s496 = smul.addr %s495, 4
      %s497 = scalar_lea.vmem %s3, %s496
      %s498 = smul.u32 16, %s24
      %s499 = smul.u32 16, %s24
      %p500 = scmp.lt.s32.totalorder %s23, 1
      %s501 = scalar_select %p500, %s23, 1
      %p502 = scmp.lt.s32.totalorder %s499, 31
      %s503 = scalar_select %p502, %s499, 31
      %s504 = smul.addr %s501, 32
      %s505 = sadd.s32 %s503, %s504
      %s506 = smul.addr %s505, 8
      %s507 = scalar_lea.vmem %s8, %s506
      %s508 = smul.u32 16, %s24
      %v510 = vld [vmem:[%s4] sm:$0x1]
      %v511 = vld [vmem:[%s5] sm:$0x1]
      %v512 = vld [vmem:[%s451] sm:$0xf]
      %v513 = vld [vmem:[%s451 + $0x4] sm:$0xf]
      %v514 = vld [vmem:[%s451 + $0x8] sm:$0xf]
      %v515 = vld [vmem:[%s451 + $0xc] sm:$0xf]
      %v516 = vld [vmem:[%s451 + $0x10] sm:$0xf]
      %v517 = vld [vmem:[%s451 + $0x14] sm:$0xf]
      %v518 = vld [vmem:[%s451 + $0x18] sm:$0xf]
      %v519 = vld [vmem:[%s451 + $0x1c] sm:$0xf]
      %v520 = vld [vmem:[%s451 + $0x20] sm:$0xf]
      %v521 = vld [vmem:[%s451 + $0x24] sm:$0xf]
      %v522 = vld [vmem:[%s451 + $0x28] sm:$0xf]
      %v523 = vld [vmem:[%s451 + $0x2c] sm:$0xf]
      %v524 = vld [vmem:[%s451 + $0x30] sm:$0xf]
      %v525 = vld [vmem:[%s451 + $0x34] sm:$0xf]
      %v526 = vld [vmem:[%s451 + $0x38] sm:$0xf]
      %v527 = vld [vmem:[%s451 + $0x3c] sm:$0xf]
      %v528 = vunpack.c.l.bf16 %v512
      %v529 = vunpack.c.l.bf16 %v513
      %v530 = vunpack.c.l.bf16 %v514
      %v531 = vunpack.c.l.bf16 %v515
      %v532 = vunpack.c.l.bf16 %v516
      %v533 = vunpack.c.l.bf16 %v517
      %v534 = vunpack.c.l.bf16 %v518
      %v535 = vunpack.c.l.bf16 %v519
      %v536 = vunpack.c.l.bf16 %v520
      %v537 = vunpack.c.l.bf16 %v521
      %v538 = vunpack.c.l.bf16 %v522
      %v539 = vunpack.c.l.bf16 %v523
      %v540 = vunpack.c.l.bf16 %v524
      %v541 = vunpack.c.l.bf16 %v525
      %v542 = vunpack.c.l.bf16 %v526
      %v543 = vunpack.c.l.bf16 %v527
      %v545 = vlaneseq
      %v546 = vshrl.u32 %v545, 7
      %v547 = vsub.s32 0, %v546
      %v548 = vrot.slane %v510, %v547
      %v550 = vmul.f32 %v528, %v548
      %v551 = vmul.f32 %v529, %v548
      %v552 = vmul.f32 %v530, %v548
      %v553 = vmul.f32 %v531, %v548
      %v554 = vmul.f32 %v532, %v548
      %v555 = vmul.f32 %v533, %v548
      %v556 = vmul.f32 %v534, %v548
      %v557 = vmul.f32 %v535, %v548
      %v558 = vmul.f32 %v536, %v548
      %v559 = vmul.f32 %v537, %v548
      %v560 = vmul.f32 %v538, %v548
      %v561 = vmul.f32 %v539, %v548
      %v562 = vmul.f32 %v540, %v548
      %v563 = vmul.f32 %v541, %v548
      %v564 = vmul.f32 %v542, %v548
      %v565 = vmul.f32 %v543, %v548
      %v567 = vlaneseq
      %v568 = vshrl.u32 %v567, 7
      %v569 = vsub.s32 0, %v568
      %v570 = vrot.slane %v511, %v569
      %v572 = vadd.f32 %v550, %v570
      %v573 = vadd.f32 %v551, %v570
      %v574 = vadd.f32 %v552, %v570
      %v575 = vadd.f32 %v553, %v570
      %v576 = vadd.f32 %v554, %v570
      %v577 = vadd.f32 %v555, %v570
      %v578 = vadd.f32 %v556, %v570
      %v579 = vadd.f32 %v557, %v570
      %v580 = vadd.f32 %v558, %v570
      %v581 = vadd.f32 %v559, %v570
      %v582 = vadd.f32 %v560, %v570
      %v583 = vadd.f32 %v561, %v570
      %v584 = vadd.f32 %v562, %v570
      %v585 = vadd.f32 %v563, %v570
      %v586 = vadd.f32 %v564, %v570
      %v587 = vadd.f32 %v565, %v570
      %v588 = vmax.f32 %v572, 0.0
      %v589 = vmax.f32 %v573, 0.0
      %v590 = vmax.f32 %v574, 0.0
      %v591 = vmax.f32 %v575, 0.0
      %v592 = vmax.f32 %v576, 0.0
      %v593 = vmax.f32 %v577, 0.0
      %v594 = vmax.f32 %v578, 0.0
      %v595 = vmax.f32 %v579, 0.0
      %v596 = vmax.f32 %v580, 0.0
      %v597 = vmax.f32 %v581, 0.0
      %v598 = vmax.f32 %v582, 0.0
      %v599 = vmax.f32 %v583, 0.0
      %v600 = vmax.f32 %v584, 0.0
      %v601 = vmax.f32 %v585, 0.0
      %v602 = vmax.f32 %v586, 0.0
      %v603 = vmax.f32 %v587, 0.0
      %v604 = vld [vmem:[%s465] sm:$0xf]
      %v605 = vld [vmem:[%s465 + $0x4] sm:$0xf]
      %v606 = vunpack.c.l.bf16 %v604
      %v607 = vunpack.c.l.bf16 %v605
      %v608 = vmul.f32 %v606, %v548
      %v609 = vmul.f32 %v607, %v548
      %v610 = vadd.f32 %v608, %v570
      %v611 = vadd.f32 %v609, %v570
      %v612 = vmax.f32 %v610, 0.0
      %v613 = vmax.f32 %v611, 0.0
      %p614 = scmp.eq.s32.totalorder %s24, 0
      %s615 = scalar_select %p614, 0.0, 1.0
      %v616 = vstv %s615
      %v617 = vmul.f32 %v612, %v616
      %v618 = vmul.f32 %v613, %v616
      %v619 = vld [vmem:[%s483] sm:$0xf]
      %v620 = vld [vmem:[%s483 + $0x4] sm:$0xf]
      %v621 = vunpack.c.l.bf16 %v619
      %v622 = vunpack.c.l.bf16 %v620
      %v623 = vmul.f32 %v621, %v548
      %v624 = vmul.f32 %v622, %v548
      %v625 = vadd.f32 %v623, %v570
      %v626 = vadd.f32 %v624, %v570
      %v627 = vmax.f32 %v625, 0.0
      %v628 = vmax.f32 %v626, 0.0
      %p629 = scmp.eq.s32.totalorder %s24, 1
      %s630 = scalar_select %p629, 0.0, 1.0
      %v631 = vstv %s630
      %v632 = vmul.f32 %v627, %v631
      %v633 = vmul.f32 %v628, %v631
      %v634 = vld [vmem:[%s497] sm:$0xf]
      %v635 = vld [vmem:[%s497 + $0x4] sm:$0xf]
      %v636 = vld [vmem:[%s497 + $0x8] sm:$0xf]
      %v637 = vld [vmem:[%s497 + $0xc] sm:$0xf]
      %v638 = vld [vmem:[%s497 + $0x10] sm:$0xf]
      %v639 = vld [vmem:[%s497 + $0x14] sm:$0xf]
      %v640 = vld [vmem:[%s497 + $0x18] sm:$0xf]
      %v641 = vld [vmem:[%s497 + $0x1c] sm:$0xf]
      %v642 = vld [vmem:[%s497 + $0x20] sm:$0xf]
      %v643 = vld [vmem:[%s497 + $0x24] sm:$0xf]
      %v644 = vld [vmem:[%s497 + $0x28] sm:$0xf]
      %v645 = vld [vmem:[%s497 + $0x2c] sm:$0xf]
      %v646 = vld [vmem:[%s497 + $0x30] sm:$0xf]
      %v647 = vld [vmem:[%s497 + $0x34] sm:$0xf]
      %v648 = vld [vmem:[%s497 + $0x38] sm:$0xf]
      %v649 = vld [vmem:[%s497 + $0x3c] sm:$0xf]
      %v650 = vld [vmem:[%s7] sm:$0xf]
      %v651 = vld [vmem:[%s7 + $0x4] sm:$0xf]
      %v652 = vld [vmem:[%s7 + $0x8] sm:$0xf]
      %v653 = vld [vmem:[%s7 + $0xc] sm:$0xf]
      %v654 = vld [vmem:[%s7 + $0x10] sm:$0xf]
      %v655 = vld [vmem:[%s7 + $0x14] sm:$0xf]
      %v656 = vld [vmem:[%s7 + $0x18] sm:$0xf]
      %v657 = vld [vmem:[%s7 + $0x1c] sm:$0xf]
      %v658 = vld [vmem:[%s7 + $0x20] sm:$0xf]
      %v659 = vld [vmem:[%s7 + $0x24] sm:$0xf]
      %v660 = vld [vmem:[%s7 + $0x28] sm:$0xf]
      %v661 = vld [vmem:[%s7 + $0x2c] sm:$0xf]
      %v662 = vld [vmem:[%s7 + $0x30] sm:$0xf]
      %v663 = vld [vmem:[%s7 + $0x34] sm:$0xf]
      %v664 = vld [vmem:[%s7 + $0x38] sm:$0xf]
      %v665 = vld [vmem:[%s7 + $0x3c] sm:$0xf]
      %v682 = vunpack.c.l.b16 %v634
      %v683 = vunpack.c.l.b16 %v635
      %v684 = vunpack.c.l.b16 %v636
      %v685 = vunpack.c.l.b16 %v637
      %v686 = vunpack.c.l.b16 %v638
      %v687 = vunpack.c.l.b16 %v639
      %v688 = vunpack.c.l.b16 %v640
      %v689 = vunpack.c.l.b16 %v641
      %v690 = vunpack.c.l.b16 %v642
      %v691 = vunpack.c.l.b16 %v643
      %v692 = vunpack.c.l.b16 %v644
      %v693 = vunpack.c.l.b16 %v645
      %v694 = vunpack.c.l.b16 %v646
      %v695 = vunpack.c.l.b16 %v647
      %v696 = vunpack.c.l.b16 %v648
      %v697 = vunpack.c.l.b16 %v649
      %v698 = vpack.c.b16 %v683, %v682
      %v699 = vpack.c.b16 %v685, %v684
      %v700 = vpack.c.b16 %v687, %v686
      %v701 = vpack.c.b16 %v689, %v688
      %v702 = vpack.c.b16 %v691, %v690
      %v703 = vpack.c.b16 %v693, %v692
      %v704 = vpack.c.b16 %v695, %v694
      %v705 = vpack.c.b16 %v697, %v696
      %v730 = vunpack.c.l.b16 %v650
      %v731 = vunpack.c.l.b16 %v651
      %v732 = vunpack.c.l.b16 %v652
      %v733 = vunpack.c.l.b16 %v653
      %v734 = vunpack.c.l.b16 %v654
      %v735 = vunpack.c.l.b16 %v655
      %v736 = vunpack.c.l.b16 %v656
      %v737 = vunpack.c.l.b16 %v657
      %v738 = vunpack.c.l.b16 %v658
      %v739 = vunpack.c.l.b16 %v659
      %v740 = vunpack.c.l.b16 %v660
      %v741 = vunpack.c.l.b16 %v661
      %v742 = vunpack.c.l.b16 %v662
      %v743 = vunpack.c.l.b16 %v663
      %v744 = vunpack.c.l.b16 %v664
      %v745 = vunpack.c.l.b16 %v665
      %v746 = vpack.c.b16 %v731, %v730
      %v747 = vpack.c.b16 %v733, %v732
      %v748 = vpack.c.b16 %v735, %v734
      %v749 = vpack.c.b16 %v737, %v736
      %v750 = vpack.c.b16 %v739, %v738
      %v751 = vpack.c.b16 %v741, %v740
      %v752 = vpack.c.b16 %v743, %v742
      %v753 = vpack.c.b16 %v745, %v744
      %762 = vmatprep.subr.bf16.mxu0 0
      %763 = vmatpush1.bf16.msra.mxu0 %v753
      %764 = vmatprep.subr.bf16.mxu0 0
      %765 = vmatpush1.bf16.msra.mxu0 %v752
      %766 = vmatprep.subr.bf16.mxu0 0
      %767 = vmatpush1.bf16.msra.mxu0 %v751
      %768 = vmatprep.subr.bf16.mxu0 0
      %769 = vmatpush1.bf16.msra.mxu0 %v750
      %770 = vmatprep.subr.bf16.mxu0 0
      %771 = vmatpush1.bf16.msra.mxu0 %v749
      %772 = vmatprep.subr.bf16.mxu0 0
      %773 = vmatpush1.bf16.msra.mxu0 %v748
      %774 = vmatprep.subr.bf16.mxu0 0
      %775 = vmatpush1.bf16.msra.mxu0 %v747
      %776 = vmatprep.subr.bf16.mxu0 0
      %777 = vmatpush1.bf16.msra.mxu0 %v746
      %778 = vmatprep.subr.bf16.mxu0 0
      %779 = vmatpush2.bf16.msra.mxu0 0
      %780 = vmatprep.subr.bf16.mxu0 0
      %781 = vmatpush2.bf16.msra.mxu0 0
      %782 = vmatprep.subr.bf16.mxu0 0
      %783 = vmatpush2.bf16.msra.mxu0 0
      %784 = vmatprep.subr.bf16.mxu0 0
      %785 = vmatpush2.bf16.msra.mxu0 0
      %786 = vmatprep.subr.bf16.mxu0 0
      %787 = vmatpush2.bf16.msra.mxu0 0
      %788 = vmatprep.subr.bf16.mxu0 0
      %789 = vmatpush2.bf16.msra.mxu0 0
      %790 = vmatprep.subr.bf16.mxu0 0
      %791 = vmatpush2.bf16.msra.mxu0 0
      %792 = vmatprep.subr.bf16.mxu0 0
      %793 = vmatpush2.bf16.msra.mxu0 0
      %794 = vmatprep.mubr.bf16.mxu0 0
      %795 = vmatmul.mubr.bf16.gmra.mxu0 %v698
      %v796 = vpop.f32.mrf.mxu0
      %v797 = vadd.f32 0.0, %v796
      %v798 = vpop.f32.mrf.mxu0
      %v799 = vpop.f32.mrf.mxu0
      %v800 = vadd.f32 0.0, %v799
      %v801 = vpop.f32.mrf.mxu0
      %802 = vmatprep.mubr.bf16.mxu0 0
      %803 = vmatmul.mubr.bf16.gmra.mxu0 %v699
      %v804 = vpop.f32.mrf.mxu0
      %v805 = vadd.f32 0.0, %v804
      %v806 = vpop.f32.mrf.mxu0
      %v807 = vpop.f32.mrf.mxu0
      %v808 = vadd.f32 0.0, %v807
      %v809 = vpop.f32.mrf.mxu0
      %810 = vmatprep.mubr.bf16.mxu0 0
      %811 = vmatmul.mubr.bf16.gmra.mxu0 %v700
      %v812 = vpop.f32.mrf.mxu0
      %v813 = vadd.f32 0.0, %v812
      %v814 = vpop.f32.mrf.mxu0
      %v815 = vpop.f32.mrf.mxu0
      %v816 = vadd.f32 0.0, %v815
      %v817 = vpop.f32.mrf.mxu0
      %818 = vmatprep.mubr.bf16.mxu0 0
      %819 = vmatmul.mubr.bf16.gmra.mxu0 %v701
      %v820 = vpop.f32.mrf.mxu0
      %v821 = vadd.f32 0.0, %v820
      %v822 = vpop.f32.mrf.mxu0
      %v823 = vpop.f32.mrf.mxu0
      %v824 = vadd.f32 0.0, %v823
      %v825 = vpop.f32.mrf.mxu0
      %826 = vmatprep.mubr.bf16.mxu0 0
      %827 = vmatmul.mubr.bf16.gmra.mxu0 %v702
      %v828 = vpop.f32.mrf.mxu0
      %v829 = vadd.f32 0.0, %v828
      %v830 = vpop.f32.mrf.mxu0
      %v831 = vpop.f32.mrf.mxu0
      %v832 = vadd.f32 0.0, %v831
      %v833 = vpop.f32.mrf.mxu0
      %834 = vmatprep.mubr.bf16.mxu0 0
      %835 = vmatmul.mubr.bf16.gmra.mxu0 %v703
      %v836 = vpop.f32.mrf.mxu0
      %v837 = vadd.f32 0.0, %v836
      %v838 = vpop.f32.mrf.mxu0
      %v839 = vpop.f32.mrf.mxu0
      %v840 = vadd.f32 0.0, %v839
      %v841 = vpop.f32.mrf.mxu0
      %842 = vmatprep.mubr.bf16.mxu0 0
      %843 = vmatmul.mubr.bf16.gmra.mxu0 %v704
      %v844 = vpop.f32.mrf.mxu0
      %v845 = vadd.f32 0.0, %v844
      %v846 = vpop.f32.mrf.mxu0
      %v847 = vpop.f32.mrf.mxu0
      %v848 = vadd.f32 0.0, %v847
      %v849 = vpop.f32.mrf.mxu0
      %850 = vmatprep.mubr.bf16.mxu0 0
      %851 = vmatmul.mubr.bf16.gmra.mxu0 %v705
      %v852 = vpop.f32.mrf.mxu0
      %v853 = vadd.f32 0.0, %v852
      %v854 = vpop.f32.mrf.mxu0
      %v855 = vpop.f32.mrf.mxu0
      %v856 = vadd.f32 0.0, %v855
      %v857 = vpop.f32.mrf.mxu0
      %858 = vdwg.mxu0
      %v859 = vld [vmem:[%s6] sm:$0xf]
      %v860 = vld [vmem:[%s6 + $0x4] sm:$0xf]
      %v861 = vld [vmem:[%s6 + $0x8] sm:$0xf]
      %v862 = vld [vmem:[%s6 + $0xc] sm:$0xf]
      %v863 = vld [vmem:[%s6 + $0x10] sm:$0xf]
      %v864 = vld [vmem:[%s6 + $0x14] sm:$0xf]
      %v865 = vld [vmem:[%s6 + $0x18] sm:$0xf]
      %v866 = vld [vmem:[%s6 + $0x1c] sm:$0xf]
      %v867 = vld [vmem:[%s6 + $0x20] sm:$0xf]
      %v868 = vld [vmem:[%s6 + $0x24] sm:$0xf]
      %v869 = vld [vmem:[%s6 + $0x28] sm:$0xf]
      %v870 = vld [vmem:[%s6 + $0x2c] sm:$0xf]
      %v871 = vld [vmem:[%s6 + $0x30] sm:$0xf]
      %v872 = vld [vmem:[%s6 + $0x34] sm:$0xf]
      %v873 = vld [vmem:[%s6 + $0x38] sm:$0xf]
      %v874 = vld [vmem:[%s6 + $0x3c] sm:$0xf]
      %v875 = vld [vmem:[%s6 + $0x40] sm:$0xf]
      %v876 = vld [vmem:[%s6 + $0x44] sm:$0xf]
      %v877 = vld [vmem:[%s6 + $0x48] sm:$0xf]
      %v878 = vld [vmem:[%s6 + $0x4c] sm:$0xf]
      %v879 = vld [vmem:[%s6 + $0x50] sm:$0xf]
      %v880 = vld [vmem:[%s6 + $0x54] sm:$0xf]
      %v881 = vld [vmem:[%s6 + $0x58] sm:$0xf]
      %v882 = vld [vmem:[%s6 + $0x5c] sm:$0xf]
      %v883 = vld [vmem:[%s6 + $0x60] sm:$0xf]
      %v884 = vld [vmem:[%s6 + $0x64] sm:$0xf]
      %v885 = vld [vmem:[%s6 + $0x68] sm:$0xf]
      %v886 = vld [vmem:[%s6 + $0x6c] sm:$0xf]
      %v887 = vld [vmem:[%s6 + $0x70] sm:$0xf]
      %v888 = vld [vmem:[%s6 + $0x74] sm:$0xf]
      %v889 = vld [vmem:[%s6 + $0x78] sm:$0xf]
      %v890 = vld [vmem:[%s6 + $0x7c] sm:$0xf]
      %v891 = vld [vmem:[%s6 + $0x80] sm:$0xf]
      %v892 = vld [vmem:[%s6 + $0x84] sm:$0xf]
      %v893 = vld [vmem:[%s6 + $0x88] sm:$0xf]
      %v894 = vld [vmem:[%s6 + $0x8c] sm:$0xf]
      %v895 = vld [vmem:[%s6 + $0x90] sm:$0xf]
      %v896 = vld [vmem:[%s6 + $0x94] sm:$0xf]
      %v897 = vld [vmem:[%s6 + $0x98] sm:$0xf]
      %v898 = vld [vmem:[%s6 + $0x9c] sm:$0xf]
      %v899 = vld [vmem:[%s6 + $0xa0] sm:$0xf]
      %v900 = vld [vmem:[%s6 + $0xa4] sm:$0xf]
      %v901 = vld [vmem:[%s6 + $0xa8] sm:$0xf]
      %v902 = vld [vmem:[%s6 + $0xac] sm:$0xf]
      %v903 = vld [vmem:[%s6 + $0xb0] sm:$0xf]
      %v904 = vld [vmem:[%s6 + $0xb4] sm:$0xf]
      %v905 = vld [vmem:[%s6 + $0xb8] sm:$0xf]
      %v906 = vld [vmem:[%s6 + $0xbc] sm:$0xf]
      %v907 = vld [vmem:[%s6 + $0xc0] sm:$0xf]
      %v908 = vld [vmem:[%s6 + $0xc4] sm:$0xf]
      %v909 = vld [vmem:[%s6 + $0xc8] sm:$0xf]
      %v910 = vld [vmem:[%s6 + $0xcc] sm:$0xf]
      %v911 = vld [vmem:[%s6 + $0xd0] sm:$0xf]
      %v912 = vld [vmem:[%s6 + $0xd4] sm:$0xf]
      %v913 = vld [vmem:[%s6 + $0xd8] sm:$0xf]
      %v914 = vld [vmem:[%s6 + $0xdc] sm:$0xf]
      %v915 = vld [vmem:[%s6 + $0xe0] sm:$0xf]
      %v916 = vld [vmem:[%s6 + $0xe4] sm:$0xf]
      %v917 = vld [vmem:[%s6 + $0xe8] sm:$0xf]
      %v918 = vld [vmem:[%s6 + $0xec] sm:$0xf]
      %v919 = vld [vmem:[%s6 + $0xf0] sm:$0xf]
      %v920 = vld [vmem:[%s6 + $0xf4] sm:$0xf]
      %v921 = vld [vmem:[%s6 + $0xf8] sm:$0xf]
      %v922 = vld [vmem:[%s6 + $0xfc] sm:$0xf]
      %v923 = vld [vmem:[%s6 + $0x100] sm:$0xf]
      %v924 = vld [vmem:[%s6 + $0x104] sm:$0xf]
      %v925 = vld [vmem:[%s6 + $0x108] sm:$0xf]
      %v926 = vld [vmem:[%s6 + $0x10c] sm:$0xf]
      %v927 = vld [vmem:[%s6 + $0x110] sm:$0xf]
      %v928 = vld [vmem:[%s6 + $0x114] sm:$0xf]
      %v929 = vld [vmem:[%s6 + $0x118] sm:$0xf]
      %v930 = vld [vmem:[%s6 + $0x11c] sm:$0xf]
      %v931 = vld [vmem:[%s6 + $0x120] sm:$0xf]
      %v932 = vld [vmem:[%s6 + $0x124] sm:$0xf]
      %v933 = vld [vmem:[%s6 + $0x128] sm:$0xf]
      %v934 = vld [vmem:[%s6 + $0x12c] sm:$0xf]
      %v935 = vld [vmem:[%s6 + $0x130] sm:$0xf]
      %v936 = vld [vmem:[%s6 + $0x134] sm:$0xf]
      %v937 = vld [vmem:[%s6 + $0x138] sm:$0xf]
      %v938 = vld [vmem:[%s6 + $0x13c] sm:$0xf]
      %v939 = vld [vmem:[%s6 + $0x140] sm:$0xf]
      %v940 = vld [vmem:[%s6 + $0x144] sm:$0xf]
      %v941 = vld [vmem:[%s6 + $0x148] sm:$0xf]
      %v942 = vld [vmem:[%s6 + $0x14c] sm:$0xf]
      %v943 = vld [vmem:[%s6 + $0x150] sm:$0xf]
      %v944 = vld [vmem:[%s6 + $0x154] sm:$0xf]
      %v945 = vld [vmem:[%s6 + $0x158] sm:$0xf]
      %v946 = vld [vmem:[%s6 + $0x15c] sm:$0xf]
      %v947 = vld [vmem:[%s6 + $0x160] sm:$0xf]
      %v948 = vld [vmem:[%s6 + $0x164] sm:$0xf]
      %v949 = vld [vmem:[%s6 + $0x168] sm:$0xf]
      %v950 = vld [vmem:[%s6 + $0x16c] sm:$0xf]
      %v951 = vld [vmem:[%s6 + $0x170] sm:$0xf]
      %v952 = vld [vmem:[%s6 + $0x174] sm:$0xf]
      %v953 = vld [vmem:[%s6 + $0x178] sm:$0xf]
      %v954 = vld [vmem:[%s6 + $0x17c] sm:$0xf]
      %v955 = vld [vmem:[%s6 + $0x180] sm:$0xf]
      %v956 = vld [vmem:[%s6 + $0x184] sm:$0xf]
      %v957 = vld [vmem:[%s6 + $0x188] sm:$0xf]
      %v958 = vld [vmem:[%s6 + $0x18c] sm:$0xf]
      %v959 = vld [vmem:[%s6 + $0x190] sm:$0xf]
      %v960 = vld [vmem:[%s6 + $0x194] sm:$0xf]
      %v961 = vld [vmem:[%s6 + $0x198] sm:$0xf]
      %v962 = vld [vmem:[%s6 + $0x19c] sm:$0xf]
      %v963 = vld [vmem:[%s6 + $0x1a0] sm:$0xf]
      %v964 = vld [vmem:[%s6 + $0x1a4] sm:$0xf]
      %v965 = vld [vmem:[%s6 + $0x1a8] sm:$0xf]
      %v966 = vld [vmem:[%s6 + $0x1ac] sm:$0xf]
      %v967 = vld [vmem:[%s6 + $0x1b0] sm:$0xf]
      %v968 = vld [vmem:[%s6 + $0x1b4] sm:$0xf]
      %v969 = vld [vmem:[%s6 + $0x1b8] sm:$0xf]
      %v970 = vld [vmem:[%s6 + $0x1bc] sm:$0xf]
      %v971 = vld [vmem:[%s6 + $0x1c0] sm:$0xf]
      %v972 = vld [vmem:[%s6 + $0x1c4] sm:$0xf]
      %v973 = vld [vmem:[%s6 + $0x1c8] sm:$0xf]
      %v974 = vld [vmem:[%s6 + $0x1cc] sm:$0xf]
      %v975 = vld [vmem:[%s6 + $0x1d0] sm:$0xf]
      %v976 = vld [vmem:[%s6 + $0x1d4] sm:$0xf]
      %v977 = vld [vmem:[%s6 + $0x1d8] sm:$0xf]
      %v978 = vld [vmem:[%s6 + $0x1dc] sm:$0xf]
      %v979 = vld [vmem:[%s6 + $0x1e0] sm:$0xf]
      %v980 = vld [vmem:[%s6 + $0x1e4] sm:$0xf]
      %v981 = vld [vmem:[%s6 + $0x1e8] sm:$0xf]
      %v982 = vld [vmem:[%s6 + $0x1ec] sm:$0xf]
      %v983 = vld [vmem:[%s6 + $0x1f0] sm:$0xf]
      %v984 = vld [vmem:[%s6 + $0x1f4] sm:$0xf]
      %v985 = vld [vmem:[%s6 + $0x1f8] sm:$0xf]
      %v986 = vld [vmem:[%s6 + $0x1fc] sm:$0xf]
      %v987 = vld [vmem:[%s6 + $0x200] sm:$0xf]
      %v988 = vld [vmem:[%s6 + $0x204] sm:$0xf]
      %v989 = vld [vmem:[%s6 + $0x208] sm:$0xf]
      %v990 = vld [vmem:[%s6 + $0x20c] sm:$0xf]
      %v991 = vld [vmem:[%s6 + $0x210] sm:$0xf]
      %v992 = vld [vmem:[%s6 + $0x214] sm:$0xf]
      %v993 = vld [vmem:[%s6 + $0x218] sm:$0xf]
      %v994 = vld [vmem:[%s6 + $0x21c] sm:$0xf]
      %v995 = vld [vmem:[%s6 + $0x220] sm:$0xf]
      %v996 = vld [vmem:[%s6 + $0x224] sm:$0xf]
      %v997 = vld [vmem:[%s6 + $0x228] sm:$0xf]
      %v998 = vld [vmem:[%s6 + $0x22c] sm:$0xf]
      %v999 = vld [vmem:[%s6 + $0x230] sm:$0xf]
      %v1000 = vld [vmem:[%s6 + $0x234] sm:$0xf]
      %v1001 = vld [vmem:[%s6 + $0x238] sm:$0xf]
      %v1002 = vld [vmem:[%s6 + $0x23c] sm:$0xf]
      %v1003 = vlaneseq
      %v1004 = vshrl.u32 %v1003, 7
      %v1005 = vadd.s32 %v1004, 8
      %v1006 = vadd.s32 %v1004, 16
      %v1007 = vadd.s32 %v1004, 24
      %v1008 = vadd.s32 %v1004, 32
      %v1009 = vadd.s32 %v1004, 40
      %v1010 = vadd.s32 %v1004, 48
      %v1011 = vadd.s32 %v1004, 56
      %v1012 = vadd.s32 %v1004, 64
      %v1013 = vadd.s32 %v1004, 72
      %v1014 = vadd.s32 %v1004, 80
      %v1015 = vadd.s32 %v1004, 88
      %v1016 = vadd.s32 %v1004, 96
      %v1017 = vadd.s32 %v1004, 104
      %v1018 = vadd.s32 %v1004, 112
      %v1019 = vadd.s32 %v1004, 120
      %v1020 = vadd.s32 %v1004, 128
      %v1021 = vadd.s32 %v1004, 136
      %v1022 = vadd.s32 %v1004, 144
      %v1023 = vadd.s32 %v1004, 152
      %vm1024 = vcmp.lt.s32.totalorder %v1004, 0
      %v1025 = vsub.s32 0, %v1004
      %v1026 = vsel %vm1024, %v1025, %v1004
      %v1027 = vshrl.u32 %v1026, 4
      %v1028 = vand.u32 %v1026, 15
      %v1029 = vsub.s32 0, %v1028
      %v1030 = vsel %vm1024, %v1029, %v1028
      %vm1031 = vcmp.lt.s32.totalorder %v1005, 0
      %v1032 = vsub.s32 0, %v1005
      %v1033 = vsel %vm1031, %v1032, %v1005
      %v1034 = vshrl.u32 %v1033, 4
      %v1035 = vand.u32 %v1033, 15
      %v1036 = vsub.s32 0, %v1035
      %v1037 = vsel %vm1031, %v1036, %v1035
      %vm1038 = vcmp.lt.s32.totalorder %v1006, 0
      %v1039 = vsub.s32 0, %v1006
      %v1040 = vsel %vm1038, %v1039, %v1006
      %v1041 = vshrl.u32 %v1040, 4
      %v1042 = vand.u32 %v1040, 15
      %v1043 = vsub.s32 0, %v1042
      %v1044 = vsel %vm1038, %v1043, %v1042
      %vm1045 = vcmp.lt.s32.totalorder %v1007, 0
      %v1046 = vsub.s32 0, %v1007
      %v1047 = vsel %vm1045, %v1046, %v1007
      %v1048 = vshrl.u32 %v1047, 4
      %v1049 = vand.u32 %v1047, 15
      %v1050 = vsub.s32 0, %v1049
      %v1051 = vsel %vm1045, %v1050, %v1049
      %vm1052 = vcmp.lt.s32.totalorder %v1008, 0
      %v1053 = vsub.s32 0, %v1008
      %v1054 = vsel %vm1052, %v1053, %v1008
      %v1055 = vshrl.u32 %v1054, 4
      %v1056 = vand.u32 %v1054, 15
      %v1057 = vsub.s32 0, %v1056
      %v1058 = vsel %vm1052, %v1057, %v1056
      %vm1059 = vcmp.lt.s32.totalorder %v1009, 0
      %v1060 = vsub.s32 0, %v1009
      %v1061 = vsel %vm1059, %v1060, %v1009
      %v1062 = vshrl.u32 %v1061, 4
      %v1063 = vand.u32 %v1061, 15
      %v1064 = vsub.s32 0, %v1063
      %v1065 = vsel %vm1059, %v1064, %v1063
      %vm1066 = vcmp.lt.s32.totalorder %v1010, 0
      %v1067 = vsub.s32 0, %v1010
      %v1068 = vsel %vm1066, %v1067, %v1010
      %v1069 = vshrl.u32 %v1068, 4
      %v1070 = vand.u32 %v1068, 15
      %v1071 = vsub.s32 0, %v1070
      %v1072 = vsel %vm1066, %v1071, %v1070
      %vm1073 = vcmp.lt.s32.totalorder %v1011, 0
      %v1074 = vsub.s32 0, %v1011
      %v1075 = vsel %vm1073, %v1074, %v1011
      %v1076 = vshrl.u32 %v1075, 4
      %v1077 = vand.u32 %v1075, 15
      %v1078 = vsub.s32 0, %v1077
      %v1079 = vsel %vm1073, %v1078, %v1077
      %vm1080 = vcmp.lt.s32.totalorder %v1012, 0
      %v1081 = vsub.s32 0, %v1012
      %v1082 = vsel %vm1080, %v1081, %v1012
      %v1083 = vshrl.u32 %v1082, 4
      %v1084 = vand.u32 %v1082, 15
      %v1085 = vsub.s32 0, %v1084
      %v1086 = vsel %vm1080, %v1085, %v1084
      %vm1087 = vcmp.lt.s32.totalorder %v1013, 0
      %v1088 = vsub.s32 0, %v1013
      %v1089 = vsel %vm1087, %v1088, %v1013
      %v1090 = vshrl.u32 %v1089, 4
      %v1091 = vand.u32 %v1089, 15
      %v1092 = vsub.s32 0, %v1091
      %v1093 = vsel %vm1087, %v1092, %v1091
      %vm1094 = vcmp.lt.s32.totalorder %v1014, 0
      %v1095 = vsub.s32 0, %v1014
      %v1096 = vsel %vm1094, %v1095, %v1014
      %v1097 = vshrl.u32 %v1096, 4
      %v1098 = vand.u32 %v1096, 15
      %v1099 = vsub.s32 0, %v1098
      %v1100 = vsel %vm1094, %v1099, %v1098
      %vm1101 = vcmp.lt.s32.totalorder %v1015, 0
      %v1102 = vsub.s32 0, %v1015
      %v1103 = vsel %vm1101, %v1102, %v1015
      %v1104 = vshrl.u32 %v1103, 4
      %v1105 = vand.u32 %v1103, 15
      %v1106 = vsub.s32 0, %v1105
      %v1107 = vsel %vm1101, %v1106, %v1105
      %vm1108 = vcmp.lt.s32.totalorder %v1016, 0
      %v1109 = vsub.s32 0, %v1016
      %v1110 = vsel %vm1108, %v1109, %v1016
      %v1111 = vshrl.u32 %v1110, 4
      %v1112 = vand.u32 %v1110, 15
      %v1113 = vsub.s32 0, %v1112
      %v1114 = vsel %vm1108, %v1113, %v1112
      %vm1115 = vcmp.lt.s32.totalorder %v1017, 0
      %v1116 = vsub.s32 0, %v1017
      %v1117 = vsel %vm1115, %v1116, %v1017
      %v1118 = vshrl.u32 %v1117, 4
      %v1119 = vand.u32 %v1117, 15
      %v1120 = vsub.s32 0, %v1119
      %v1121 = vsel %vm1115, %v1120, %v1119
      %vm1122 = vcmp.lt.s32.totalorder %v1018, 0
      %v1123 = vsub.s32 0, %v1018
      %v1124 = vsel %vm1122, %v1123, %v1018
      %v1125 = vshrl.u32 %v1124, 4
      %v1126 = vand.u32 %v1124, 15
      %v1127 = vsub.s32 0, %v1126
      %v1128 = vsel %vm1122, %v1127, %v1126
      %vm1129 = vcmp.lt.s32.totalorder %v1019, 0
      %v1130 = vsub.s32 0, %v1019
      %v1131 = vsel %vm1129, %v1130, %v1019
      %v1132 = vshrl.u32 %v1131, 4
      %v1133 = vand.u32 %v1131, 15
      %v1134 = vsub.s32 0, %v1133
      %v1135 = vsel %vm1129, %v1134, %v1133
      %vm1136 = vcmp.lt.s32.totalorder %v1020, 0
      %v1137 = vsub.s32 0, %v1020
      %v1138 = vsel %vm1136, %v1137, %v1020
      %v1139 = vshrl.u32 %v1138, 4
      %v1140 = vand.u32 %v1138, 15
      %v1141 = vsub.s32 0, %v1140
      %v1142 = vsel %vm1136, %v1141, %v1140
      %vm1143 = vcmp.lt.s32.totalorder %v1021, 0
      %v1144 = vsub.s32 0, %v1021
      %v1145 = vsel %vm1143, %v1144, %v1021
      %v1146 = vshrl.u32 %v1145, 4
      %v1147 = vand.u32 %v1145, 15
      %v1148 = vsub.s32 0, %v1147
      %v1149 = vsel %vm1143, %v1148, %v1147
      %vm1150 = vcmp.lt.s32.totalorder %v1022, 0
      %v1151 = vsub.s32 0, %v1022
      %v1152 = vsel %vm1150, %v1151, %v1022
      %v1153 = vshrl.u32 %v1152, 4
      %v1154 = vand.u32 %v1152, 15
      %v1155 = vsub.s32 0, %v1154
      %v1156 = vsel %vm1150, %v1155, %v1154
      %vm1157 = vcmp.lt.s32.totalorder %v1023, 0
      %v1158 = vsub.s32 0, %v1023
      %v1159 = vsel %vm1157, %v1158, %v1023
      %v1160 = vshrl.u32 %v1159, 4
      %v1161 = vand.u32 %v1159, 15
      %v1162 = vsub.s32 0, %v1161
      %v1163 = vsel %vm1157, %v1162, %v1161
      %vm1164 = vcmp.ne.s32.totalorder %v1030, 0
      %vm1165 = vcmp.ne.s32.totalorder %v1037, 0
      %vm1166 = vcmp.ne.s32.totalorder %v1044, 0
      %vm1167 = vcmp.ne.s32.totalorder %v1051, 0
      %vm1168 = vcmp.ne.s32.totalorder %v1058, 0
      %vm1169 = vcmp.ne.s32.totalorder %v1065, 0
      %vm1170 = vcmp.ne.s32.totalorder %v1072, 0
      %vm1171 = vcmp.ne.s32.totalorder %v1079, 0
      %vm1172 = vcmp.ne.s32.totalorder %v1086, 0
      %vm1173 = vcmp.ne.s32.totalorder %v1093, 0
      %vm1174 = vcmp.ne.s32.totalorder %v1100, 0
      %vm1175 = vcmp.ne.s32.totalorder %v1107, 0
      %vm1176 = vcmp.ne.s32.totalorder %v1114, 0
      %vm1177 = vcmp.ne.s32.totalorder %v1121, 0
      %vm1178 = vcmp.ne.s32.totalorder %v1128, 0
      %vm1179 = vcmp.ne.s32.totalorder %v1135, 0
      %vm1180 = vcmp.ne.s32.totalorder %v1142, 0
      %vm1181 = vcmp.ne.s32.totalorder %v1149, 0
      %vm1182 = vcmp.ne.s32.totalorder %v1156, 0
      %vm1183 = vcmp.ne.s32.totalorder %v1163, 0
      %vm1184 = vcmp.lt.s32.totalorder %v1030, 0
      %vm1185 = vcmp.lt.s32.totalorder %v1037, 0
      %vm1186 = vcmp.lt.s32.totalorder %v1044, 0
      %vm1187 = vcmp.lt.s32.totalorder %v1051, 0
      %vm1188 = vcmp.lt.s32.totalorder %v1058, 0
      %vm1189 = vcmp.lt.s32.totalorder %v1065, 0
      %vm1190 = vcmp.lt.s32.totalorder %v1072, 0
      %vm1191 = vcmp.lt.s32.totalorder %v1079, 0
      %vm1192 = vcmp.lt.s32.totalorder %v1086, 0
      %vm1193 = vcmp.lt.s32.totalorder %v1093, 0
      %vm1194 = vcmp.lt.s32.totalorder %v1100, 0
      %vm1195 = vcmp.lt.s32.totalorder %v1107, 0
      %vm1196 = vcmp.lt.s32.totalorder %v1114, 0
      %vm1197 = vcmp.lt.s32.totalorder %v1121, 0
      %vm1198 = vcmp.lt.s32.totalorder %v1128, 0
      %vm1199 = vcmp.lt.s32.totalorder %v1135, 0
      %vm1200 = vcmp.lt.s32.totalorder %v1142, 0
      %vm1201 = vcmp.lt.s32.totalorder %v1149, 0
      %vm1202 = vcmp.lt.s32.totalorder %v1156, 0
      %vm1203 = vcmp.lt.s32.totalorder %v1163, 0
      %vm1204 = vmand %vm1184, %vm1164
      %vm1205 = vmand %vm1185, %vm1165
      %vm1206 = vmand %vm1186, %vm1166
      %vm1207 = vmand %vm1187, %vm1167
      %vm1208 = vmand %vm1188, %vm1168
      %vm1209 = vmand %vm1189, %vm1169
      %vm1210 = vmand %vm1190, %vm1170
      %vm1211 = vmand %vm1191, %vm1171
      %vm1212 = vmand %vm1192, %vm1172
      %vm1213 = vmand %vm1193, %vm1173
      %vm1214 = vmand %vm1194, %vm1174
      %vm1215 = vmand %vm1195, %vm1175
      %vm1216 = vmand %vm1196, %vm1176
      %vm1217 = vmand %vm1197, %vm1177
      %vm1218 = vmand %vm1198, %vm1178
      %vm1219 = vmand %vm1199, %vm1179
      %vm1220 = vmand %vm1200, %vm1180
      %vm1221 = vmand %vm1201, %vm1181
      %vm1222 = vmand %vm1202, %vm1182
      %vm1223 = vmand %vm1203, %vm1183
      %v1224 = vadd.s32 %v1030, 16
      %v1225 = vadd.s32 %v1037, 16
      %v1226 = vadd.s32 %v1044, 16
      %v1227 = vadd.s32 %v1051, 16
      %v1228 = vadd.s32 %v1058, 16
      %v1229 = vadd.s32 %v1065, 16
      %v1230 = vadd.s32 %v1072, 16
      %v1231 = vadd.s32 %v1079, 16
      %v1232 = vadd.s32 %v1086, 16
      %v1233 = vadd.s32 %v1093, 16
      %v1234 = vadd.s32 %v1100, 16
      %v1235 = vadd.s32 %v1107, 16
      %v1236 = vadd.s32 %v1114, 16
      %v1237 = vadd.s32 %v1121, 16
      %v1238 = vadd.s32 %v1128, 16
      %v1239 = vadd.s32 %v1135, 16
      %v1240 = vadd.s32 %v1142, 16
      %v1241 = vadd.s32 %v1149, 16
      %v1242 = vadd.s32 %v1156, 16
      %v1243 = vadd.s32 %v1163, 16
      %v1244 = vsel %vm1204, %v1224, %v1030
      %v1245 = vsel %vm1205, %v1225, %v1037
      %v1246 = vsel %vm1206, %v1226, %v1044
      %v1247 = vsel %vm1207, %v1227, %v1051
      %v1248 = vsel %vm1208, %v1228, %v1058
      %v1249 = vsel %vm1209, %v1229, %v1065
      %v1250 = vsel %vm1210, %v1230, %v1072
      %v1251 = vsel %vm1211, %v1231, %v1079
      %v1252 = vsel %vm1212, %v1232, %v1086
      %v1253 = vsel %vm1213, %v1233, %v1093
      %v1254 = vsel %vm1214, %v1234, %v1100
      %v1255 = vsel %vm1215, %v1235, %v1107
      %v1256 = vsel %vm1216, %v1236, %v1114
      %v1257 = vsel %vm1217, %v1237, %v1121
      %v1258 = vsel %vm1218, %v1238, %v1128
      %v1259 = vsel %vm1219, %v1239, %v1135
      %v1260 = vsel %vm1220, %v1240, %v1142
      %v1261 = vsel %vm1221, %v1241, %v1149
      %v1262 = vsel %vm1222, %v1242, %v1156
      %v1263 = vsel %vm1223, %v1243, %v1163
      %vm1264 = vcmp.eq.s32.totalorder %v1244, 0
      %vm1265 = vcmp.eq.s32.totalorder %v1245, 0
      %vm1266 = vcmp.eq.s32.totalorder %v1246, 0
      %vm1267 = vcmp.eq.s32.totalorder %v1247, 0
      %vm1268 = vcmp.eq.s32.totalorder %v1248, 0
      %vm1269 = vcmp.eq.s32.totalorder %v1249, 0
      %vm1270 = vcmp.eq.s32.totalorder %v1250, 0
      %vm1271 = vcmp.eq.s32.totalorder %v1251, 0
      %vm1272 = vcmp.eq.s32.totalorder %v1252, 0
      %vm1273 = vcmp.eq.s32.totalorder %v1253, 0
      %vm1274 = vcmp.eq.s32.totalorder %v1254, 0
      %vm1275 = vcmp.eq.s32.totalorder %v1255, 0
      %vm1276 = vcmp.eq.s32.totalorder %v1256, 0
      %vm1277 = vcmp.eq.s32.totalorder %v1257, 0
      %vm1278 = vcmp.eq.s32.totalorder %v1258, 0
      %vm1279 = vcmp.eq.s32.totalorder %v1259, 0
      %vm1280 = vcmp.eq.s32.totalorder %v1260, 0
      %vm1281 = vcmp.eq.s32.totalorder %v1261, 0
      %vm1282 = vcmp.eq.s32.totalorder %v1262, 0
      %vm1283 = vcmp.eq.s32.totalorder %v1263, 0
      %v1284 = vsel %vm1264, 1, 0
      %v1285 = vsel %vm1265, 1, 0
      %v1286 = vsel %vm1266, 1, 0
      %v1287 = vsel %vm1267, 1, 0
      %v1288 = vsel %vm1268, 1, 0
      %v1289 = vsel %vm1269, 1, 0
      %v1290 = vsel %vm1270, 1, 0
      %v1291 = vsel %vm1271, 1, 0
      %v1292 = vsel %vm1272, 1, 0
      %v1293 = vsel %vm1273, 1, 0
      %v1294 = vsel %vm1274, 1, 0
      %v1295 = vsel %vm1275, 1, 0
      %v1296 = vsel %vm1276, 1, 0
      %v1297 = vsel %vm1277, 1, 0
      %v1298 = vsel %vm1278, 1, 0
      %v1299 = vsel %vm1279, 1, 0
      %v1300 = vsel %vm1280, 1, 0
      %v1301 = vsel %vm1281, 1, 0
      %v1302 = vsel %vm1282, 1, 0
      %v1303 = vsel %vm1283, 1, 0
      %vm1304 = vcmp.eq.s32.totalorder %v1284, 1
      %vm1305 = vcmp.eq.s32.totalorder %v1285, 1
      %vm1306 = vcmp.eq.s32.totalorder %v1286, 1
      %vm1307 = vcmp.eq.s32.totalorder %v1287, 1
      %vm1308 = vcmp.eq.s32.totalorder %v1288, 1
      %vm1309 = vcmp.eq.s32.totalorder %v1289, 1
      %vm1310 = vcmp.eq.s32.totalorder %v1290, 1
      %vm1311 = vcmp.eq.s32.totalorder %v1291, 1
      %vm1312 = vcmp.eq.s32.totalorder %v1292, 1
      %vm1313 = vcmp.eq.s32.totalorder %v1293, 1
      %vm1314 = vcmp.eq.s32.totalorder %v1294, 1
      %vm1315 = vcmp.eq.s32.totalorder %v1295, 1
      %vm1316 = vcmp.eq.s32.totalorder %v1296, 1
      %vm1317 = vcmp.eq.s32.totalorder %v1297, 1
      %vm1318 = vcmp.eq.s32.totalorder %v1298, 1
      %vm1319 = vcmp.eq.s32.totalorder %v1299, 1
      %vm1320 = vcmp.eq.s32.totalorder %v1300, 1
      %vm1321 = vcmp.eq.s32.totalorder %v1301, 1
      %vm1322 = vcmp.eq.s32.totalorder %v1302, 1
      %vm1323 = vcmp.eq.s32.totalorder %v1303, 1
      %vm1345 = vcmask 1040384
      %v1346 = vrot.slane 0.0, 7
      %v1347 = vrot.slane %v617, 7
      %v1348 = vsel %vm1345, %v1346, %v1347
      %v1349 = vrot.slane %v618, 7
      %v1350 = vsel %vm1345, %v1347, %v1349
      %v1351 = vrot.slane %v588, 7
      %v1352 = vsel %vm1345, %v1349, %v1351
      %v1353 = vrot.slane %v589, 7
      %v1354 = vsel %vm1345, %v1351, %v1353
      %v1355 = vrot.slane %v590, 7
      %v1356 = vsel %vm1345, %v1353, %v1355
      %v1357 = vrot.slane %v591, 7
      %v1358 = vsel %vm1345, %v1355, %v1357
      %v1359 = vrot.slane %v592, 7
      %v1360 = vsel %vm1345, %v1357, %v1359
      %v1361 = vrot.slane %v593, 7
      %v1362 = vsel %vm1345, %v1359, %v1361
      %v1363 = vrot.slane %v594, 7
      %v1364 = vsel %vm1345, %v1361, %v1363
      %v1365 = vrot.slane %v595, 7
      %v1366 = vsel %vm1345, %v1363, %v1365
      %v1367 = vrot.slane %v596, 7
      %v1368 = vsel %vm1345, %v1365, %v1367
      %v1369 = vrot.slane %v597, 7
      %v1370 = vsel %vm1345, %v1367, %v1369
      %v1371 = vrot.slane %v598, 7
      %v1372 = vsel %vm1345, %v1369, %v1371
      %v1373 = vrot.slane %v599, 7
      %v1374 = vsel %vm1345, %v1371, %v1373
      %v1375 = vrot.slane %v600, 7
      %v1376 = vsel %vm1345, %v1373, %v1375
      %v1377 = vrot.slane %v601, 7
      %v1378 = vsel %vm1345, %v1375, %v1377
      %v1379 = vrot.slane %v602, 7
      %v1380 = vsel %vm1345, %v1377, %v1379
      %v1381 = vrot.slane %v603, 7
      %v1382 = vsel %vm1345, %v1379, %v1381
      %v1383 = vrot.slane %v632, 7
      %v1384 = vsel %vm1345, %v1381, %v1383
      %v1385 = vrot.slane %v633, 7
      %v1386 = vsel %vm1345, %v1383, %v1385
      %v1407 = vsel %vm1304, 0.0, %v1348
      %v1408 = vsel %vm1305, 0.0, %v1350
      %v1409 = vsel %vm1306, 0.0, %v1352
      %v1410 = vsel %vm1307, 0.0, %v1354
      %v1411 = vsel %vm1308, 0.0, %v1356
      %v1412 = vsel %vm1309, 0.0, %v1358
      %v1413 = vsel %vm1310, 0.0, %v1360
      %v1414 = vsel %vm1311, 0.0, %v1362
      %v1415 = vsel %vm1312, 0.0, %v1364
      %v1416 = vsel %vm1313, 0.0, %v1366
      %v1417 = vsel %vm1314, 0.0, %v1368
      %v1418 = vsel %vm1315, 0.0, %v1370
      %v1419 = vsel %vm1316, 0.0, %v1372
      %v1420 = vsel %vm1317, 0.0, %v1374
      %v1421 = vsel %vm1318, 0.0, %v1376
      %v1422 = vsel %vm1319, 0.0, %v1378
      %v1423 = vsel %vm1320, 0.0, %v1380
      %v1424 = vsel %vm1321, 0.0, %v1382
      %v1425 = vsel %vm1322, 0.0, %v1384
      %v1426 = vsel %vm1323, 0.0, %v1386
      %vm1427 = vcmp.eq.s32.totalorder %v1244, 15
      %vm1428 = vcmp.eq.s32.totalorder %v1245, 15
      %vm1429 = vcmp.eq.s32.totalorder %v1246, 15
      %vm1430 = vcmp.eq.s32.totalorder %v1247, 15
      %vm1431 = vcmp.eq.s32.totalorder %v1248, 15
      %vm1432 = vcmp.eq.s32.totalorder %v1249, 15
      %vm1433 = vcmp.eq.s32.totalorder %v1250, 15
      %vm1434 = vcmp.eq.s32.totalorder %v1251, 15
      %vm1435 = vcmp.eq.s32.totalorder %v1252, 15
      %vm1436 = vcmp.eq.s32.totalorder %v1253, 15
      %vm1437 = vcmp.eq.s32.totalorder %v1254, 15
      %vm1438 = vcmp.eq.s32.totalorder %v1255, 15
      %vm1439 = vcmp.eq.s32.totalorder %v1256, 15
      %vm1440 = vcmp.eq.s32.totalorder %v1257, 15
      %vm1441 = vcmp.eq.s32.totalorder %v1258, 15
      %vm1442 = vcmp.eq.s32.totalorder %v1259, 15
      %vm1443 = vcmp.eq.s32.totalorder %v1260, 15
      %vm1444 = vcmp.eq.s32.totalorder %v1261, 15
      %vm1445 = vcmp.eq.s32.totalorder %v1262, 15
      %vm1446 = vcmp.eq.s32.totalorder %v1263, 15
      %v1447 = vsel %vm1427, 1, 0
      %v1448 = vsel %vm1428, 1, 0
      %v1449 = vsel %vm1429, 1, 0
      %v1450 = vsel %vm1430, 1, 0
      %v1451 = vsel %vm1431, 1, 0
      %v1452 = vsel %vm1432, 1, 0
      %v1453 = vsel %vm1433, 1, 0
      %v1454 = vsel %vm1434, 1, 0
      %v1455 = vsel %vm1435, 1, 0
      %v1456 = vsel %vm1436, 1, 0
      %v1457 = vsel %vm1437, 1, 0
      %v1458 = vsel %vm1438, 1, 0
      %v1459 = vsel %vm1439, 1, 0
      %v1460 = vsel %vm1440, 1, 0
      %v1461 = vsel %vm1441, 1, 0
      %v1462 = vsel %vm1442, 1, 0
      %v1463 = vsel %vm1443, 1, 0
      %v1464 = vsel %vm1444, 1, 0
      %v1465 = vsel %vm1445, 1, 0
      %v1466 = vsel %vm1446, 1, 0
      %vm1467 = vcmp.eq.s32.totalorder %v1447, 1
      %vm1468 = vcmp.eq.s32.totalorder %v1448, 1
      %vm1469 = vcmp.eq.s32.totalorder %v1449, 1
      %vm1470 = vcmp.eq.s32.totalorder %v1450, 1
      %vm1471 = vcmp.eq.s32.totalorder %v1451, 1
      %vm1472 = vcmp.eq.s32.totalorder %v1452, 1
      %vm1473 = vcmp.eq.s32.totalorder %v1453, 1
      %vm1474 = vcmp.eq.s32.totalorder %v1454, 1
      %vm1475 = vcmp.eq.s32.totalorder %v1455, 1
      %vm1476 = vcmp.eq.s32.totalorder %v1456, 1
      %vm1477 = vcmp.eq.s32.totalorder %v1457, 1
      %vm1478 = vcmp.eq.s32.totalorder %v1458, 1
      %vm1479 = vcmp.eq.s32.totalorder %v1459, 1
      %vm1480 = vcmp.eq.s32.totalorder %v1460, 1
      %vm1481 = vcmp.eq.s32.totalorder %v1461, 1
      %vm1482 = vcmp.eq.s32.totalorder %v1462, 1
      %vm1483 = vcmp.eq.s32.totalorder %v1463, 1
      %vm1484 = vcmp.eq.s32.totalorder %v1464, 1
      %vm1485 = vcmp.eq.s32.totalorder %v1465, 1
      %vm1486 = vcmp.eq.s32.totalorder %v1466, 1
      %vm1487 = vcmask 1046528
      %v1488 = vrot.slane %v617, 1
      %v1489 = vrot.slane %v618, 1
      %v1490 = vsel %vm1487, %v1488, %v1489
      %v1491 = vrot.slane %v588, 1
      %v1492 = vsel %vm1487, %v1489, %v1491
      %v1493 = vrot.slane %v589, 1
      %v1494 = vsel %vm1487, %v1491, %v1493
      %v1495 = vrot.slane %v590, 1
      %v1496 = vsel %vm1487, %v1493, %v1495
      %v1497 = vrot.slane %v591, 1
      %v1498 = vsel %vm1487, %v1495, %v1497
      %v1499 = vrot.slane %v592, 1
      %v1500 = vsel %vm1487, %v1497, %v1499
      %v1501 = vrot.slane %v593, 1
      %v1502 = vsel %vm1487, %v1499, %v1501
      %v1503 = vrot.slane %v594, 1
      %v1504 = vsel %vm1487, %v1501, %v1503
      %v1505 = vrot.slane %v595, 1
      %v1506 = vsel %vm1487, %v1503, %v1505
      %v1507 = vrot.slane %v596, 1
      %v1508 = vsel %vm1487, %v1505, %v1507
      %v1509 = vrot.slane %v597, 1
      %v1510 = vsel %vm1487, %v1507, %v1509
      %v1511 = vrot.slane %v598, 1
      %v1512 = vsel %vm1487, %v1509, %v1511
      %v1513 = vrot.slane %v599, 1
      %v1514 = vsel %vm1487, %v1511, %v1513
      %v1515 = vrot.slane %v600, 1
      %v1516 = vsel %vm1487, %v1513, %v1515
      %v1517 = vrot.slane %v601, 1
      %v1518 = vsel %vm1487, %v1515, %v1517
      %v1519 = vrot.slane %v602, 1
      %v1520 = vsel %vm1487, %v1517, %v1519
      %v1521 = vrot.slane %v603, 1
      %v1522 = vsel %vm1487, %v1519, %v1521
      %v1523 = vrot.slane %v632, 1
      %v1524 = vsel %vm1487, %v1521, %v1523
      %v1525 = vrot.slane %v633, 1
      %v1526 = vsel %vm1487, %v1523, %v1525
      %v1527 = vrot.slane 0.0, 1
      %v1528 = vsel %vm1487, %v1525, %v1527
      %v1549 = vsel %vm1467, 0.0, %v1490
      %v1550 = vsel %vm1468, 0.0, %v1492
      %v1551 = vsel %vm1469, 0.0, %v1494
      %v1552 = vsel %vm1470, 0.0, %v1496
      %v1553 = vsel %vm1471, 0.0, %v1498
      %v1554 = vsel %vm1472, 0.0, %v1500
      %v1555 = vsel %vm1473, 0.0, %v1502
      %v1556 = vsel %vm1474, 0.0, %v1504
      %v1557 = vsel %vm1475, 0.0, %v1506
      %v1558 = vsel %vm1476, 0.0, %v1508
      %v1559 = vsel %vm1477, 0.0, %v1510
      %v1560 = vsel %vm1478, 0.0, %v1512
      %v1561 = vsel %vm1479, 0.0, %v1514
      %v1562 = vsel %vm1480, 0.0, %v1516
      %v1563 = vsel %vm1481, 0.0, %v1518
      %v1564 = vsel %vm1482, 0.0, %v1520
      %v1565 = vsel %vm1483, 0.0, %v1522
      %v1566 = vsel %vm1484, 0.0, %v1524
      %v1567 = vsel %vm1485, 0.0, %v1526
      %v1568 = vsel %vm1486, 0.0, %v1528
      %v1569 = vpack.c.bf16 %v1408, %v1407
      %v1570 = vpack.c.bf16 %v618, %v617
      %v1571 = vpack.c.bf16 %v1550, %v1549
      %v1572 = vpack.c.bf16 %v1410, %v1409
      %v1573 = vpack.c.bf16 %v589, %v588
      %v1574 = vpack.c.bf16 %v1552, %v1551
      %v1575 = vpack.c.bf16 %v1412, %v1411
      %v1576 = vpack.c.bf16 %v591, %v590
      %v1577 = vpack.c.bf16 %v1554, %v1553
      %v1578 = vpack.c.bf16 %v1414, %v1413
      %v1579 = vpack.c.bf16 %v593, %v592
      %v1580 = vpack.c.bf16 %v1556, %v1555
      %v1581 = vpack.c.bf16 %v1416, %v1415
      %v1582 = vpack.c.bf16 %v595, %v594
      %v1583 = vpack.c.bf16 %v1558, %v1557
      %v1584 = vpack.c.bf16 %v1418, %v1417
      %v1585 = vpack.c.bf16 %v597, %v596
      %v1586 = vpack.c.bf16 %v1560, %v1559
      %v1587 = vpack.c.bf16 %v1420, %v1419
      %v1588 = vpack.c.bf16 %v599, %v598
      %v1589 = vpack.c.bf16 %v1562, %v1561
      %v1590 = vpack.c.bf16 %v1422, %v1421
      %v1591 = vpack.c.bf16 %v601, %v600
      %v1592 = vpack.c.bf16 %v1564, %v1563
      %v1593 = vpack.c.bf16 %v1424, %v1423
      %v1594 = vpack.c.bf16 %v603, %v602
      %v1595 = vpack.c.bf16 %v1566, %v1565
      %v1596 = vpack.c.bf16 %v1426, %v1425
      %v1597 = vpack.c.bf16 %v633, %v632
      %v1598 = vpack.c.bf16 %v1568, %v1567
      %v1743 = vunpack.c.l.b16 %v859
      %v1744 = vunpack.c.l.b16 %v860
      %v1745 = vunpack.c.l.b16 %v861
      %v1746 = vunpack.c.l.b16 %v862
      %v1747 = vunpack.c.l.b16 %v863
      %v1748 = vunpack.c.l.b16 %v864
      %v1749 = vunpack.c.l.b16 %v865
      %v1750 = vunpack.c.l.b16 %v866
      %v1751 = vunpack.c.l.b16 %v867
      %v1752 = vunpack.c.l.b16 %v868
      %v1753 = vunpack.c.l.b16 %v869
      %v1754 = vunpack.c.l.b16 %v870
      %v1755 = vunpack.c.l.b16 %v871
      %v1756 = vunpack.c.l.b16 %v872
      %v1757 = vunpack.c.l.b16 %v873
      %v1758 = vunpack.c.l.b16 %v874
      %v1759 = vunpack.c.l.b16 %v875
      %v1760 = vunpack.c.l.b16 %v876
      %v1761 = vunpack.c.l.b16 %v877
      %v1762 = vunpack.c.l.b16 %v878
      %v1763 = vunpack.c.l.b16 %v879
      %v1764 = vunpack.c.l.b16 %v880
      %v1765 = vunpack.c.l.b16 %v881
      %v1766 = vunpack.c.l.b16 %v882
      %v1767 = vunpack.c.l.b16 %v883
      %v1768 = vunpack.c.l.b16 %v884
      %v1769 = vunpack.c.l.b16 %v885
      %v1770 = vunpack.c.l.b16 %v886
      %v1771 = vunpack.c.l.b16 %v887
      %v1772 = vunpack.c.l.b16 %v888
      %v1773 = vunpack.c.l.b16 %v889
      %v1774 = vunpack.c.l.b16 %v890
      %v1775 = vunpack.c.l.b16 %v891
      %v1776 = vunpack.c.l.b16 %v892
      %v1777 = vunpack.c.l.b16 %v893
      %v1778 = vunpack.c.l.b16 %v894
      %v1779 = vunpack.c.l.b16 %v895
      %v1780 = vunpack.c.l.b16 %v896
      %v1781 = vunpack.c.l.b16 %v897
      %v1782 = vunpack.c.l.b16 %v898
      %v1783 = vunpack.c.l.b16 %v899
      %v1784 = vunpack.c.l.b16 %v900
      %v1785 = vunpack.c.l.b16 %v901
      %v1786 = vunpack.c.l.b16 %v902
      %v1787 = vunpack.c.l.b16 %v903
      %v1788 = vunpack.c.l.b16 %v904
      %v1789 = vunpack.c.l.b16 %v905
      %v1790 = vunpack.c.l.b16 %v906
      %v1791 = vunpack.c.l.b16 %v907
      %v1792 = vunpack.c.l.b16 %v908
      %v1793 = vunpack.c.l.b16 %v909
      %v1794 = vunpack.c.l.b16 %v910
      %v1795 = vunpack.c.l.b16 %v911
      %v1796 = vunpack.c.l.b16 %v912
      %v1797 = vunpack.c.l.b16 %v913
      %v1798 = vunpack.c.l.b16 %v914
      %v1799 = vunpack.c.l.b16 %v915
      %v1800 = vunpack.c.l.b16 %v916
      %v1801 = vunpack.c.l.b16 %v917
      %v1802 = vunpack.c.l.b16 %v918
      %v1803 = vunpack.c.l.b16 %v919
      %v1804 = vunpack.c.l.b16 %v920
      %v1805 = vunpack.c.l.b16 %v921
      %v1806 = vunpack.c.l.b16 %v922
      %v1807 = vunpack.c.l.b16 %v923
      %v1808 = vunpack.c.l.b16 %v924
      %v1809 = vunpack.c.l.b16 %v925
      %v1810 = vunpack.c.l.b16 %v926
      %v1811 = vunpack.c.l.b16 %v927
      %v1812 = vunpack.c.l.b16 %v928
      %v1813 = vunpack.c.l.b16 %v929
      %v1814 = vunpack.c.l.b16 %v930
      %v1815 = vunpack.c.l.b16 %v931
      %v1816 = vunpack.c.l.b16 %v932
      %v1817 = vunpack.c.l.b16 %v933
      %v1818 = vunpack.c.l.b16 %v934
      %v1819 = vunpack.c.l.b16 %v935
      %v1820 = vunpack.c.l.b16 %v936
      %v1821 = vunpack.c.l.b16 %v937
      %v1822 = vunpack.c.l.b16 %v938
      %v1823 = vunpack.c.l.b16 %v939
      %v1824 = vunpack.c.l.b16 %v940
      %v1825 = vunpack.c.l.b16 %v941
      %v1826 = vunpack.c.l.b16 %v942
      %v1827 = vunpack.c.l.b16 %v943
      %v1828 = vunpack.c.l.b16 %v944
      %v1829 = vunpack.c.l.b16 %v945
      %v1830 = vunpack.c.l.b16 %v946
      %v1831 = vunpack.c.l.b16 %v947
      %v1832 = vunpack.c.l.b16 %v948
      %v1833 = vunpack.c.l.b16 %v949
      %v1834 = vunpack.c.l.b16 %v950
      %v1835 = vunpack.c.l.b16 %v951
      %v1836 = vunpack.c.l.b16 %v952
      %v1837 = vunpack.c.l.b16 %v953
      %v1838 = vunpack.c.l.b16 %v954
      %v1839 = vunpack.c.l.b16 %v955
      %v1840 = vunpack.c.l.b16 %v956
      %v1841 = vunpack.c.l.b16 %v957
      %v1842 = vunpack.c.l.b16 %v958
      %v1843 = vunpack.c.l.b16 %v959
      %v1844 = vunpack.c.l.b16 %v960
      %v1845 = vunpack.c.l.b16 %v961
      %v1846 = vunpack.c.l.b16 %v962
      %v1847 = vunpack.c.l.b16 %v963
      %v1848 = vunpack.c.l.b16 %v964
      %v1849 = vunpack.c.l.b16 %v965
      %v1850 = vunpack.c.l.b16 %v966
      %v1851 = vunpack.c.l.b16 %v967
      %v1852 = vunpack.c.l.b16 %v968
      %v1853 = vunpack.c.l.b16 %v969
      %v1854 = vunpack.c.l.b16 %v970
      %v1855 = vunpack.c.l.b16 %v971
      %v1856 = vunpack.c.l.b16 %v972
      %v1857 = vunpack.c.l.b16 %v973
      %v1858 = vunpack.c.l.b16 %v974
      %v1859 = vunpack.c.l.b16 %v975
      %v1860 = vunpack.c.l.b16 %v976
      %v1861 = vunpack.c.l.b16 %v977
      %v1862 = vunpack.c.l.b16 %v978
      %v1863 = vunpack.c.l.b16 %v979
      %v1864 = vunpack.c.l.b16 %v980
      %v1865 = vunpack.c.l.b16 %v981
      %v1866 = vunpack.c.l.b16 %v982
      %v1867 = vunpack.c.l.b16 %v983
      %v1868 = vunpack.c.l.b16 %v984
      %v1869 = vunpack.c.l.b16 %v985
      %v1870 = vunpack.c.l.b16 %v986
      %v1871 = vunpack.c.l.b16 %v987
      %v1872 = vunpack.c.l.b16 %v988
      %v1873 = vunpack.c.l.b16 %v989
      %v1874 = vunpack.c.l.b16 %v990
      %v1875 = vunpack.c.l.b16 %v991
      %v1876 = vunpack.c.l.b16 %v992
      %v1877 = vunpack.c.l.b16 %v993
      %v1878 = vunpack.c.l.b16 %v994
      %v1879 = vunpack.c.l.b16 %v995
      %v1880 = vunpack.c.l.b16 %v996
      %v1881 = vunpack.c.l.b16 %v997
      %v1882 = vunpack.c.l.b16 %v998
      %v1883 = vunpack.c.l.b16 %v999
      %v1884 = vunpack.c.l.b16 %v1000
      %v1885 = vunpack.c.l.b16 %v1001
      %v1886 = vunpack.c.l.b16 %v1002
      %v1887 = vpack.c.b16 %v1744, %v1743
      %v1888 = vpack.c.b16 %v1746, %v1745
      %v1889 = vpack.c.b16 %v1748, %v1747
      %v1890 = vpack.c.b16 %v1750, %v1749
      %v1891 = vpack.c.b16 %v1752, %v1751
      %v1892 = vpack.c.b16 %v1754, %v1753
      %v1893 = vpack.c.b16 %v1756, %v1755
      %v1894 = vpack.c.b16 %v1758, %v1757
      %v1895 = vpack.c.b16 %v1760, %v1759
      %v1896 = vpack.c.b16 %v1762, %v1761
      %v1897 = vpack.c.b16 %v1764, %v1763
      %v1898 = vpack.c.b16 %v1766, %v1765
      %v1899 = vpack.c.b16 %v1768, %v1767
      %v1900 = vpack.c.b16 %v1770, %v1769
      %v1901 = vpack.c.b16 %v1772, %v1771
      %v1902 = vpack.c.b16 %v1774, %v1773
      %v1903 = vpack.c.b16 %v1776, %v1775
      %v1904 = vpack.c.b16 %v1778, %v1777
      %v1905 = vpack.c.b16 %v1780, %v1779
      %v1906 = vpack.c.b16 %v1782, %v1781
      %v1907 = vpack.c.b16 %v1784, %v1783
      %v1908 = vpack.c.b16 %v1786, %v1785
      %v1909 = vpack.c.b16 %v1788, %v1787
      %v1910 = vpack.c.b16 %v1790, %v1789
      %v1911 = vpack.c.b16 %v1792, %v1791
      %v1912 = vpack.c.b16 %v1794, %v1793
      %v1913 = vpack.c.b16 %v1796, %v1795
      %v1914 = vpack.c.b16 %v1798, %v1797
      %v1915 = vpack.c.b16 %v1800, %v1799
      %v1916 = vpack.c.b16 %v1802, %v1801
      %v1917 = vpack.c.b16 %v1804, %v1803
      %v1918 = vpack.c.b16 %v1806, %v1805
      %v1919 = vpack.c.b16 %v1808, %v1807
      %v1920 = vpack.c.b16 %v1810, %v1809
      %v1921 = vpack.c.b16 %v1812, %v1811
      %v1922 = vpack.c.b16 %v1814, %v1813
      %v1923 = vpack.c.b16 %v1816, %v1815
      %v1924 = vpack.c.b16 %v1818, %v1817
      %v1925 = vpack.c.b16 %v1820, %v1819
      %v1926 = vpack.c.b16 %v1822, %v1821
      %v1927 = vpack.c.b16 %v1824, %v1823
      %v1928 = vpack.c.b16 %v1826, %v1825
      %v1929 = vpack.c.b16 %v1828, %v1827
      %v1930 = vpack.c.b16 %v1830, %v1829
      %v1931 = vpack.c.b16 %v1832, %v1831
      %v1932 = vpack.c.b16 %v1834, %v1833
      %v1933 = vpack.c.b16 %v1836, %v1835
      %v1934 = vpack.c.b16 %v1838, %v1837
      %v1935 = vpack.c.b16 %v1840, %v1839
      %v1936 = vpack.c.b16 %v1842, %v1841
      %v1937 = vpack.c.b16 %v1844, %v1843
      %v1938 = vpack.c.b16 %v1846, %v1845
      %v1939 = vpack.c.b16 %v1848, %v1847
      %v1940 = vpack.c.b16 %v1850, %v1849
      %v1941 = vpack.c.b16 %v1852, %v1851
      %v1942 = vpack.c.b16 %v1854, %v1853
      %v1943 = vpack.c.b16 %v1856, %v1855
      %v1944 = vpack.c.b16 %v1858, %v1857
      %v1945 = vpack.c.b16 %v1860, %v1859
      %v1946 = vpack.c.b16 %v1862, %v1861
      %v1947 = vpack.c.b16 %v1864, %v1863
      %v1948 = vpack.c.b16 %v1866, %v1865
      %v1949 = vpack.c.b16 %v1868, %v1867
      %v1950 = vpack.c.b16 %v1870, %v1869
      %v1951 = vpack.c.b16 %v1872, %v1871
      %v1952 = vpack.c.b16 %v1874, %v1873
      %v1953 = vpack.c.b16 %v1876, %v1875
      %v1954 = vpack.c.b16 %v1878, %v1877
      %v1955 = vpack.c.b16 %v1880, %v1879
      %v1956 = vpack.c.b16 %v1882, %v1881
      %v1957 = vpack.c.b16 %v1884, %v1883
      %v1958 = vpack.c.b16 %v1886, %v1885
      %2031 = vmatprep.subr.bf16.mxu0 0
      %2032 = vmatpush1.bf16.msra.mxu0 %v1894
      %2033 = vmatprep.subr.bf16.mxu0 0
      %2034 = vmatpush1.bf16.msra.mxu0 %v1893
      %2035 = vmatprep.subr.bf16.mxu0 0
      %2036 = vmatpush1.bf16.msra.mxu0 %v1892
      %2037 = vmatprep.subr.bf16.mxu0 0
      %2038 = vmatpush1.bf16.msra.mxu0 %v1891
      %2039 = vmatprep.subr.bf16.mxu0 0
      %2040 = vmatpush1.bf16.msra.mxu0 %v1890
      %2041 = vmatprep.subr.bf16.mxu0 0
      %2042 = vmatpush1.bf16.msra.mxu0 %v1889
      %2043 = vmatprep.subr.bf16.mxu0 0
      %2044 = vmatpush1.bf16.msra.mxu0 %v1888
      %2045 = vmatprep.subr.bf16.mxu0 0
      %2046 = vmatpush1.bf16.msra.mxu0 %v1887
      %2047 = vmatprep.subr.bf16.mxu0 0
      %2048 = vmatpush2.bf16.msra.mxu0 %v1902
      %2049 = vmatprep.subr.bf16.mxu0 0
      %2050 = vmatpush2.bf16.msra.mxu0 %v1901
      %2051 = vmatprep.subr.bf16.mxu0 0
      %2052 = vmatpush2.bf16.msra.mxu0 %v1900
      %2053 = vmatprep.subr.bf16.mxu0 0
      %2054 = vmatpush2.bf16.msra.mxu0 %v1899
      %2055 = vmatprep.subr.bf16.mxu0 0
      %2056 = vmatpush2.bf16.msra.mxu0 %v1898
      %2057 = vmatprep.subr.bf16.mxu0 0
      %2058 = vmatpush2.bf16.msra.mxu0 %v1897
      %2059 = vmatprep.subr.bf16.mxu0 0
      %2060 = vmatpush2.bf16.msra.mxu0 %v1896
      %2061 = vmatprep.subr.bf16.mxu0 0
      %2062 = vmatpush2.bf16.msra.mxu0 %v1895
      %2063 = vmatprep.mubr.bf16.mxu0 %v1570
      %2064 = vmatmul.mubr.bf16.gmra.mxu0 %v1569
      %v2065 = vpop.f32.mrf.mxu0
      %v2066 = vadd.f32 %v797, %v2065
      %v2067 = vpop.f32.mrf.mxu0
      %v2068 = vpop.f32.mrf.mxu0
      %v2069 = vadd.f32 %v800, %v2068
      %v2070 = vpop.f32.mrf.mxu0
      %2071 = vmatprep.mubr.bf16.mxu0 %v1573
      %2072 = vmatmul.mubr.bf16.gmra.mxu0 %v1572
      %v2073 = vpop.f32.mrf.mxu0
      %v2074 = vadd.f32 %v805, %v2073
      %v2075 = vpop.f32.mrf.mxu0
      %v2076 = vpop.f32.mrf.mxu0
      %v2077 = vadd.f32 %v808, %v2076
      %v2078 = vpop.f32.mrf.mxu0
      %2079 = vmatprep.mubr.bf16.mxu0 %v1576
      %2080 = vmatmul.mubr.bf16.gmra.mxu0 %v1575
      %v2081 = vpop.f32.mrf.mxu0
      %v2082 = vadd.f32 %v813, %v2081
      %v2083 = vpop.f32.mrf.mxu0
      %v2084 = vpop.f32.mrf.mxu0
      %v2085 = vadd.f32 %v816, %v2084
      %v2086 = vpop.f32.mrf.mxu0
      %2087 = vmatprep.mubr.bf16.mxu0 %v1579
      %2088 = vmatmul.mubr.bf16.gmra.mxu0 %v1578
      %v2089 = vpop.f32.mrf.mxu0
      %v2090 = vadd.f32 %v821, %v2089
      %v2091 = vpop.f32.mrf.mxu0
      %v2092 = vpop.f32.mrf.mxu0
      %v2093 = vadd.f32 %v824, %v2092
      %v2094 = vpop.f32.mrf.mxu0
      %2095 = vmatprep.mubr.bf16.mxu0 %v1582
      %2096 = vmatmul.mubr.bf16.gmra.mxu0 %v1581
      %v2097 = vpop.f32.mrf.mxu0
      %v2098 = vadd.f32 %v829, %v2097
      %v2099 = vpop.f32.mrf.mxu0
      %v2100 = vpop.f32.mrf.mxu0
      %v2101 = vadd.f32 %v832, %v2100
      %v2102 = vpop.f32.mrf.mxu0
      %2103 = vmatprep.mubr.bf16.mxu0 %v1585
      %2104 = vmatmul.mubr.bf16.gmra.mxu0 %v1584
      %v2105 = vpop.f32.mrf.mxu0
      %v2106 = vadd.f32 %v837, %v2105
      %v2107 = vpop.f32.mrf.mxu0
      %v2108 = vpop.f32.mrf.mxu0
      %v2109 = vadd.f32 %v840, %v2108
      %v2110 = vpop.f32.mrf.mxu0
      %2111 = vmatprep.mubr.bf16.mxu0 %v1588
      %2112 = vmatmul.mubr.bf16.gmra.mxu0 %v1587
      %v2113 = vpop.f32.mrf.mxu0
      %v2114 = vadd.f32 %v845, %v2113
      %v2115 = vpop.f32.mrf.mxu0
      %v2116 = vpop.f32.mrf.mxu0
      %v2117 = vadd.f32 %v848, %v2116
      %v2118 = vpop.f32.mrf.mxu0
      %2119 = vmatprep.mubr.bf16.mxu0 %v1591
      %2120 = vmatmul.mubr.bf16.gmra.mxu0 %v1590
      %v2121 = vpop.f32.mrf.mxu0
      %v2122 = vadd.f32 %v853, %v2121
      %v2123 = vpop.f32.mrf.mxu0
      %v2124 = vpop.f32.mrf.mxu0
      %v2125 = vadd.f32 %v856, %v2124
      %v2126 = vpop.f32.mrf.mxu0
      %2127 = vdwg.mxu0
      %2128 = vmatprep.subr.bf16.mxu0 0
      %2129 = vmatpush1.bf16.msra.mxu0 %v1910
      %2130 = vmatprep.subr.bf16.mxu0 0
      %2131 = vmatpush1.bf16.msra.mxu0 %v1909
      %2132 = vmatprep.subr.bf16.mxu0 0
      %2133 = vmatpush1.bf16.msra.mxu0 %v1908
      %2134 = vmatprep.subr.bf16.mxu0 0
      %2135 = vmatpush1.bf16.msra.mxu0 %v1907
      %2136 = vmatprep.subr.bf16.mxu0 0
      %2137 = vmatpush1.bf16.msra.mxu0 %v1906
      %2138 = vmatprep.subr.bf16.mxu0 0
      %2139 = vmatpush1.bf16.msra.mxu0 %v1905
      %2140 = vmatprep.subr.bf16.mxu0 0
      %2141 = vmatpush1.bf16.msra.mxu0 %v1904
      %2142 = vmatprep.subr.bf16.mxu0 0
      %2143 = vmatpush1.bf16.msra.mxu0 %v1903
      %2144 = vmatprep.subr.bf16.mxu0 0
      %2145 = vmatpush2.bf16.msra.mxu0 %v1918
      %2146 = vmatprep.subr.bf16.mxu0 0
      %2147 = vmatpush2.bf16.msra.mxu0 %v1917
      %2148 = vmatprep.subr.bf16.mxu0 0
      %2149 = vmatpush2.bf16.msra.mxu0 %v1916
      %2150 = vmatprep.subr.bf16.mxu0 0
      %2151 = vmatpush2.bf16.msra.mxu0 %v1915
      %2152 = vmatprep.subr.bf16.mxu0 0
      %2153 = vmatpush2.bf16.msra.mxu0 %v1914
      %2154 = vmatprep.subr.bf16.mxu0 0
      %2155 = vmatpush2.bf16.msra.mxu0 %v1913
      %2156 = vmatprep.subr.bf16.mxu0 0
      %2157 = vmatpush2.bf16.msra.mxu0 %v1912
      %2158 = vmatprep.subr.bf16.mxu0 0
      %2159 = vmatpush2.bf16.msra.mxu0 %v1911
      %2160 = vmatprep.mubr.bf16.mxu0 %v1572
      %2161 = vmatmul.mubr.bf16.gmra.mxu0 %v1571
      %v2162 = vpop.f32.mrf.mxu0
      %v2163 = vadd.f32 %v2066, %v2162
      %v2164 = vpop.f32.mrf.mxu0
      %v2165 = vpop.f32.mrf.mxu0
      %v2166 = vadd.f32 %v2069, %v2165
      %v2167 = vpop.f32.mrf.mxu0
      %2168 = vmatprep.mubr.bf16.mxu0 %v1575
      %2169 = vmatmul.mubr.bf16.gmra.mxu0 %v1574
      %v2170 = vpop.f32.mrf.mxu0
      %v2171 = vadd.f32 %v2074, %v2170
      %v2172 = vpop.f32.mrf.mxu0
      %v2173 = vpop.f32.mrf.mxu0
      %v2174 = vadd.f32 %v2077, %v2173
      %v2175 = vpop.f32.mrf.mxu0
      %2176 = vmatprep.mubr.bf16.mxu0 %v1578
      %2177 = vmatmul.mubr.bf16.gmra.mxu0 %v1577
      %v2178 = vpop.f32.mrf.mxu0
      %v2179 = vadd.f32 %v2082, %v2178
      %v2180 = vpop.f32.mrf.mxu0
      %v2181 = vpop.f32.mrf.mxu0
      %v2182 = vadd.f32 %v2085, %v2181
      %v2183 = vpop.f32.mrf.mxu0
      %2184 = vmatprep.mubr.bf16.mxu0 %v1581
      %2185 = vmatmul.mubr.bf16.gmra.mxu0 %v1580
      %v2186 = vpop.f32.mrf.mxu0
      %v2187 = vadd.f32 %v2090, %v2186
      %v2188 = vpop.f32.mrf.mxu0
      %v2189 = vpop.f32.mrf.mxu0
      %v2190 = vadd.f32 %v2093, %v2189
      %v2191 = vpop.f32.mrf.mxu0
      %2192 = vmatprep.mubr.bf16.mxu0 %v1584
      %2193 = vmatmul.mubr.bf16.gmra.mxu0 %v1583
      %v2194 = vpop.f32.mrf.mxu0
      %v2195 = vadd.f32 %v2098, %v2194
      %v2196 = vpop.f32.mrf.mxu0
      %v2197 = vpop.f32.mrf.mxu0
      %v2198 = vadd.f32 %v2101, %v2197
      %v2199 = vpop.f32.mrf.mxu0
      %2200 = vmatprep.mubr.bf16.mxu0 %v1587
      %2201 = vmatmul.mubr.bf16.gmra.mxu0 %v1586
      %v2202 = vpop.f32.mrf.mxu0
      %v2203 = vadd.f32 %v2106, %v2202
      %v2204 = vpop.f32.mrf.mxu0
      %v2205 = vpop.f32.mrf.mxu0
      %v2206 = vadd.f32 %v2109, %v2205
      %v2207 = vpop.f32.mrf.mxu0
      %2208 = vmatprep.mubr.bf16.mxu0 %v1590
      %2209 = vmatmul.mubr.bf16.gmra.mxu0 %v1589
      %v2210 = vpop.f32.mrf.mxu0
      %v2211 = vadd.f32 %v2114, %v2210
      %v2212 = vpop.f32.mrf.mxu0
      %v2213 = vpop.f32.mrf.mxu0
      %v2214 = vadd.f32 %v2117, %v2213
      %v2215 = vpop.f32.mrf.mxu0
      %2216 = vmatprep.mubr.bf16.mxu0 %v1593
      %2217 = vmatmul.mubr.bf16.gmra.mxu0 %v1592
      %v2218 = vpop.f32.mrf.mxu0
      %v2219 = vadd.f32 %v2122, %v2218
      %v2220 = vpop.f32.mrf.mxu0
      %v2221 = vpop.f32.mrf.mxu0
      %v2222 = vadd.f32 %v2125, %v2221
      %v2223 = vpop.f32.mrf.mxu0
      %2224 = vdwg.mxu0
      %2225 = vmatprep.subr.bf16.mxu0 0
      %2226 = vmatpush1.bf16.msra.mxu0 %v1926
      %2227 = vmatprep.subr.bf16.mxu0 0
      %2228 = vmatpush1.bf16.msra.mxu0 %v1925
      %2229 = vmatprep.subr.bf16.mxu0 0
      %2230 = vmatpush1.bf16.msra.mxu0 %v1924
      %2231 = vmatprep.subr.bf16.mxu0 0
      %2232 = vmatpush1.bf16.msra.mxu0 %v1923
      %2233 = vmatprep.subr.bf16.mxu0 0
      %2234 = vmatpush1.bf16.msra.mxu0 %v1922
      %2235 = vmatprep.subr.bf16.mxu0 0
      %2236 = vmatpush1.bf16.msra.mxu0 %v1921
      %2237 = vmatprep.subr.bf16.mxu0 0
      %2238 = vmatpush1.bf16.msra.mxu0 %v1920
      %2239 = vmatprep.subr.bf16.mxu0 0
      %2240 = vmatpush1.bf16.msra.mxu0 %v1919
      %2241 = vmatprep.subr.bf16.mxu0 0
      %2242 = vmatpush2.bf16.msra.mxu0 %v1934
      %2243 = vmatprep.subr.bf16.mxu0 0
      %2244 = vmatpush2.bf16.msra.mxu0 %v1933
      %2245 = vmatprep.subr.bf16.mxu0 0
      %2246 = vmatpush2.bf16.msra.mxu0 %v1932
      %2247 = vmatprep.subr.bf16.mxu0 0
      %2248 = vmatpush2.bf16.msra.mxu0 %v1931
      %2249 = vmatprep.subr.bf16.mxu0 0
      %2250 = vmatpush2.bf16.msra.mxu0 %v1930
      %2251 = vmatprep.subr.bf16.mxu0 0
      %2252 = vmatpush2.bf16.msra.mxu0 %v1929
      %2253 = vmatprep.subr.bf16.mxu0 0
      %2254 = vmatpush2.bf16.msra.mxu0 %v1928
      %2255 = vmatprep.subr.bf16.mxu0 0
      %2256 = vmatpush2.bf16.msra.mxu0 %v1927
      %2257 = vmatprep.mubr.bf16.mxu0 %v1574
      %2258 = vmatmul.mubr.bf16.gmra.mxu0 %v1573
      %v2259 = vpop.f32.mrf.mxu0
      %v2260 = vadd.f32 %v2163, %v2259
      %v2261 = vpop.f32.mrf.mxu0
      %v2262 = vpop.f32.mrf.mxu0
      %v2263 = vadd.f32 %v2166, %v2262
      %v2264 = vpop.f32.mrf.mxu0
      %2265 = vmatprep.mubr.bf16.mxu0 %v1577
      %2266 = vmatmul.mubr.bf16.gmra.mxu0 %v1576
      %v2267 = vpop.f32.mrf.mxu0
      %v2268 = vadd.f32 %v2171, %v2267
      %v2269 = vpop.f32.mrf.mxu0
      %v2270 = vpop.f32.mrf.mxu0
      %v2271 = vadd.f32 %v2174, %v2270
      %v2272 = vpop.f32.mrf.mxu0
      %2273 = vmatprep.mubr.bf16.mxu0 %v1580
      %2274 = vmatmul.mubr.bf16.gmra.mxu0 %v1579
      %v2275 = vpop.f32.mrf.mxu0
      %v2276 = vadd.f32 %v2179, %v2275
      %v2277 = vpop.f32.mrf.mxu0
      %v2278 = vpop.f32.mrf.mxu0
      %v2279 = vadd.f32 %v2182, %v2278
      %v2280 = vpop.f32.mrf.mxu0
      %2281 = vmatprep.mubr.bf16.mxu0 %v1583
      %2282 = vmatmul.mubr.bf16.gmra.mxu0 %v1582
      %v2283 = vpop.f32.mrf.mxu0
      %v2284 = vadd.f32 %v2187, %v2283
      %v2285 = vpop.f32.mrf.mxu0
      %v2286 = vpop.f32.mrf.mxu0
      %v2287 = vadd.f32 %v2190, %v2286
      %v2288 = vpop.f32.mrf.mxu0
      %2289 = vmatprep.mubr.bf16.mxu0 %v1586
      %2290 = vmatmul.mubr.bf16.gmra.mxu0 %v1585
      %v2291 = vpop.f32.mrf.mxu0
      %v2292 = vadd.f32 %v2195, %v2291
      %v2293 = vpop.f32.mrf.mxu0
      %v2294 = vpop.f32.mrf.mxu0
      %v2295 = vadd.f32 %v2198, %v2294
      %v2296 = vpop.f32.mrf.mxu0
      %2297 = vmatprep.mubr.bf16.mxu0 %v1589
      %2298 = vmatmul.mubr.bf16.gmra.mxu0 %v1588
      %v2299 = vpop.f32.mrf.mxu0
      %v2300 = vadd.f32 %v2203, %v2299
      %v2301 = vpop.f32.mrf.mxu0
      %v2302 = vpop.f32.mrf.mxu0
      %v2303 = vadd.f32 %v2206, %v2302
      %v2304 = vpop.f32.mrf.mxu0
      %2305 = vmatprep.mubr.bf16.mxu0 %v1592
      %2306 = vmatmul.mubr.bf16.gmra.mxu0 %v1591
      %v2307 = vpop.f32.mrf.mxu0
      %v2308 = vadd.f32 %v2211, %v2307
      %v2309 = vpop.f32.mrf.mxu0
      %v2310 = vpop.f32.mrf.mxu0
      %v2311 = vadd.f32 %v2214, %v2310
      %v2312 = vpop.f32.mrf.mxu0
      %2313 = vmatprep.mubr.bf16.mxu0 %v1595
      %2314 = vmatmul.mubr.bf16.gmra.mxu0 %v1594
      %v2315 = vpop.f32.mrf.mxu0
      %v2316 = vadd.f32 %v2219, %v2315
      %v2317 = vpop.f32.mrf.mxu0
      %v2318 = vpop.f32.mrf.mxu0
      %v2319 = vadd.f32 %v2222, %v2318
      %v2320 = vpop.f32.mrf.mxu0
      %2321 = vdwg.mxu0
      %2322 = vmatprep.subr.bf16.mxu0 0
      %2323 = vmatpush1.bf16.msra.mxu0 %v1942
      %2324 = vmatprep.subr.bf16.mxu0 0
      %2325 = vmatpush1.bf16.msra.mxu0 %v1941
      %2326 = vmatprep.subr.bf16.mxu0 0
      %2327 = vmatpush1.bf16.msra.mxu0 %v1940
      %2328 = vmatprep.subr.bf16.mxu0 0
      %2329 = vmatpush1.bf16.msra.mxu0 %v1939
      %2330 = vmatprep.subr.bf16.mxu0 0
      %2331 = vmatpush1.bf16.msra.mxu0 %v1938
      %2332 = vmatprep.subr.bf16.mxu0 0
      %2333 = vmatpush1.bf16.msra.mxu0 %v1937
      %2334 = vmatprep.subr.bf16.mxu0 0
      %2335 = vmatpush1.bf16.msra.mxu0 %v1936
      %2336 = vmatprep.subr.bf16.mxu0 0
      %2337 = vmatpush1.bf16.msra.mxu0 %v1935
      %2338 = vmatprep.subr.bf16.mxu0 0
      %2339 = vmatpush2.bf16.msra.mxu0 %v1950
      %2340 = vmatprep.subr.bf16.mxu0 0
      %2341 = vmatpush2.bf16.msra.mxu0 %v1949
      %2342 = vmatprep.subr.bf16.mxu0 0
      %2343 = vmatpush2.bf16.msra.mxu0 %v1948
      %2344 = vmatprep.subr.bf16.mxu0 0
      %2345 = vmatpush2.bf16.msra.mxu0 %v1947
      %2346 = vmatprep.subr.bf16.mxu0 0
      %2347 = vmatpush2.bf16.msra.mxu0 %v1946
      %2348 = vmatprep.subr.bf16.mxu0 0
      %2349 = vmatpush2.bf16.msra.mxu0 %v1945
      %2350 = vmatprep.subr.bf16.mxu0 0
      %2351 = vmatpush2.bf16.msra.mxu0 %v1944
      %2352 = vmatprep.subr.bf16.mxu0 0
      %2353 = vmatpush2.bf16.msra.mxu0 %v1943
      %2354 = vmatprep.mubr.bf16.mxu0 %v1576
      %2355 = vmatmul.mubr.bf16.gmra.mxu0 %v1575
      %v2356 = vpop.f32.mrf.mxu0
      %v2357 = vadd.f32 %v2260, %v2356
      %v2358 = vpop.f32.mrf.mxu0
      %v2359 = vpop.f32.mrf.mxu0
      %v2360 = vadd.f32 %v2263, %v2359
      %v2361 = vpop.f32.mrf.mxu0
      %2362 = vmatprep.mubr.bf16.mxu0 %v1579
      %2363 = vmatmul.mubr.bf16.gmra.mxu0 %v1578
      %v2364 = vpop.f32.mrf.mxu0
      %v2365 = vadd.f32 %v2268, %v2364
      %v2366 = vpop.f32.mrf.mxu0
      %v2367 = vpop.f32.mrf.mxu0
      %v2368 = vadd.f32 %v2271, %v2367
      %v2369 = vpop.f32.mrf.mxu0
      %2370 = vmatprep.mubr.bf16.mxu0 %v1582
      %2371 = vmatmul.mubr.bf16.gmra.mxu0 %v1581
      %v2372 = vpop.f32.mrf.mxu0
      %v2373 = vadd.f32 %v2276, %v2372
      %v2374 = vpop.f32.mrf.mxu0
      %v2375 = vpop.f32.mrf.mxu0
      %v2376 = vadd.f32 %v2279, %v2375
      %v2377 = vpop.f32.mrf.mxu0
      %2378 = vmatprep.mubr.bf16.mxu0 %v1585
      %2379 = vmatmul.mubr.bf16.gmra.mxu0 %v1584
      %v2380 = vpop.f32.mrf.mxu0
      %v2381 = vadd.f32 %v2284, %v2380
      %v2382 = vpop.f32.mrf.mxu0
      %v2383 = vpop.f32.mrf.mxu0
      %v2384 = vadd.f32 %v2287, %v2383
      %v2385 = vpop.f32.mrf.mxu0
      %2386 = vmatprep.mubr.bf16.mxu0 %v1588
      %2387 = vmatmul.mubr.bf16.gmra.mxu0 %v1587
      %v2388 = vpop.f32.mrf.mxu0
      %v2389 = vadd.f32 %v2292, %v2388
      %v2390 = vpop.f32.mrf.mxu0
      %v2391 = vpop.f32.mrf.mxu0
      %v2392 = vadd.f32 %v2295, %v2391
      %v2393 = vpop.f32.mrf.mxu0
      %2394 = vmatprep.mubr.bf16.mxu0 %v1591
      %2395 = vmatmul.mubr.bf16.gmra.mxu0 %v1590
      %v2396 = vpop.f32.mrf.mxu0
      %v2397 = vadd.f32 %v2300, %v2396
      %v2398 = vpop.f32.mrf.mxu0
      %v2399 = vpop.f32.mrf.mxu0
      %v2400 = vadd.f32 %v2303, %v2399
      %v2401 = vpop.f32.mrf.mxu0
      %2402 = vmatprep.mubr.bf16.mxu0 %v1594
      %2403 = vmatmul.mubr.bf16.gmra.mxu0 %v1593
      %v2404 = vpop.f32.mrf.mxu0
      %v2405 = vadd.f32 %v2308, %v2404
      %v2406 = vpop.f32.mrf.mxu0
      %v2407 = vpop.f32.mrf.mxu0
      %v2408 = vadd.f32 %v2311, %v2407
      %v2409 = vpop.f32.mrf.mxu0
      %2410 = vmatprep.mubr.bf16.mxu0 %v1597
      %2411 = vmatmul.mubr.bf16.gmra.mxu0 %v1596
      %v2412 = vpop.f32.mrf.mxu0
      %v2413 = vadd.f32 %v2316, %v2412
      %v2414 = vpop.f32.mrf.mxu0
      %v2415 = vpop.f32.mrf.mxu0
      %v2416 = vadd.f32 %v2319, %v2415
      %v2417 = vpop.f32.mrf.mxu0
      %2418 = vdwg.mxu0
      %2419 = vmatprep.subr.bf16.mxu0 0
      %2420 = vmatpush1.bf16.msra.mxu0 %v1958
      %2421 = vmatprep.subr.bf16.mxu0 0
      %2422 = vmatpush1.bf16.msra.mxu0 %v1957
      %2423 = vmatprep.subr.bf16.mxu0 0
      %2424 = vmatpush1.bf16.msra.mxu0 %v1956
      %2425 = vmatprep.subr.bf16.mxu0 0
      %2426 = vmatpush1.bf16.msra.mxu0 %v1955
      %2427 = vmatprep.subr.bf16.mxu0 0
      %2428 = vmatpush1.bf16.msra.mxu0 %v1954
      %2429 = vmatprep.subr.bf16.mxu0 0
      %2430 = vmatpush1.bf16.msra.mxu0 %v1953
      %2431 = vmatprep.subr.bf16.mxu0 0
      %2432 = vmatpush1.bf16.msra.mxu0 %v1952
      %2433 = vmatprep.subr.bf16.mxu0 0
      %2434 = vmatpush1.bf16.msra.mxu0 %v1951
      %2435 = vmatprep.subr.bf16.mxu0 0
      %2436 = vmatpush2.bf16.msra.mxu0 0
      %2437 = vmatprep.subr.bf16.mxu0 0
      %2438 = vmatpush2.bf16.msra.mxu0 0
      %2439 = vmatprep.subr.bf16.mxu0 0
      %2440 = vmatpush2.bf16.msra.mxu0 0
      %2441 = vmatprep.subr.bf16.mxu0 0
      %2442 = vmatpush2.bf16.msra.mxu0 0
      %2443 = vmatprep.subr.bf16.mxu0 0
      %2444 = vmatpush2.bf16.msra.mxu0 0
      %2445 = vmatprep.subr.bf16.mxu0 0
      %2446 = vmatpush2.bf16.msra.mxu0 0
      %2447 = vmatprep.subr.bf16.mxu0 0
      %2448 = vmatpush2.bf16.msra.mxu0 0
      %2449 = vmatprep.subr.bf16.mxu0 0
      %2450 = vmatpush2.bf16.msra.mxu0 0
      %2451 = vmatprep.mubr.bf16.mxu0 0
      %2452 = vmatmul.mubr.bf16.gmra.mxu0 %v1577
      %v2453 = vpop.f32.mrf.mxu0
      %v2454 = vadd.f32 %v2357, %v2453
      %v2455 = vpop.f32.mrf.mxu0
      %v2456 = vpop.f32.mrf.mxu0
      %v2457 = vadd.f32 %v2360, %v2456
      %v2458 = vpop.f32.mrf.mxu0
      %2459 = vmatprep.mubr.bf16.mxu0 0
      %2460 = vmatmul.mubr.bf16.gmra.mxu0 %v1580
      %v2461 = vpop.f32.mrf.mxu0
      %v2462 = vadd.f32 %v2365, %v2461
      %v2463 = vpop.f32.mrf.mxu0
      %v2464 = vpop.f32.mrf.mxu0
      %v2465 = vadd.f32 %v2368, %v2464
      %v2466 = vpop.f32.mrf.mxu0
      %2467 = vmatprep.mubr.bf16.mxu0 0
      %2468 = vmatmul.mubr.bf16.gmra.mxu0 %v1583
      %v2469 = vpop.f32.mrf.mxu0
      %v2470 = vadd.f32 %v2373, %v2469
      %v2471 = vpop.f32.mrf.mxu0
      %v2472 = vpop.f32.mrf.mxu0
      %v2473 = vadd.f32 %v2376, %v2472
      %v2474 = vpop.f32.mrf.mxu0
      %2475 = vmatprep.mubr.bf16.mxu0 0
      %2476 = vmatmul.mubr.bf16.gmra.mxu0 %v1586
      %v2477 = vpop.f32.mrf.mxu0
      %v2478 = vadd.f32 %v2381, %v2477
      %v2479 = vpop.f32.mrf.mxu0
      %v2480 = vpop.f32.mrf.mxu0
      %v2481 = vadd.f32 %v2384, %v2480
      %v2482 = vpop.f32.mrf.mxu0
      %2483 = vmatprep.mubr.bf16.mxu0 0
      %2484 = vmatmul.mubr.bf16.gmra.mxu0 %v1589
      %v2485 = vpop.f32.mrf.mxu0
      %v2486 = vadd.f32 %v2389, %v2485
      %v2487 = vpop.f32.mrf.mxu0
      %v2488 = vpop.f32.mrf.mxu0
      %v2489 = vadd.f32 %v2392, %v2488
      %v2490 = vpop.f32.mrf.mxu0
      %2491 = vmatprep.mubr.bf16.mxu0 0
      %2492 = vmatmul.mubr.bf16.gmra.mxu0 %v1592
      %v2493 = vpop.f32.mrf.mxu0
      %v2494 = vadd.f32 %v2397, %v2493
      %v2495 = vpop.f32.mrf.mxu0
      %v2496 = vpop.f32.mrf.mxu0
      %v2497 = vadd.f32 %v2400, %v2496
      %v2498 = vpop.f32.mrf.mxu0
      %2499 = vmatprep.mubr.bf16.mxu0 0
      %2500 = vmatmul.mubr.bf16.gmra.mxu0 %v1595
      %v2501 = vpop.f32.mrf.mxu0
      %v2502 = vadd.f32 %v2405, %v2501
      %v2503 = vpop.f32.mrf.mxu0
      %v2504 = vpop.f32.mrf.mxu0
      %v2505 = vadd.f32 %v2408, %v2504
      %v2506 = vpop.f32.mrf.mxu0
      %2507 = vmatprep.mubr.bf16.mxu0 0
      %2508 = vmatmul.mubr.bf16.gmra.mxu0 %v1598
      %v2509 = vpop.f32.mrf.mxu0
      %v2510 = vadd.f32 %v2413, %v2509
      %v2511 = vpop.f32.mrf.mxu0
      %v2512 = vpop.f32.mrf.mxu0
      %v2513 = vadd.f32 %v2416, %v2512
      %v2514 = vpop.f32.mrf.mxu0
      %2515 = vdwg.mxu0
      %2516 = vst [vmem:[%s507] sm:$0xff] %v2454
      %2517 = vst [vmem:[%s507 + $0x8] sm:$0xff] %v2457
      %2518 = vst [vmem:[%s507 + $0x10] sm:$0xff] %v2462
      %2519 = vst [vmem:[%s507 + $0x18] sm:$0xff] %v2465
      %2520 = vst [vmem:[%s507 + $0x20] sm:$0xff] %v2470
      %2521 = vst [vmem:[%s507 + $0x28] sm:$0xff] %v2473
      %2522 = vst [vmem:[%s507 + $0x30] sm:$0xff] %v2478
      %2523 = vst [vmem:[%s507 + $0x38] sm:$0xff] %v2481
      %2524 = vst [vmem:[%s507 + $0x40] sm:$0xff] %v2486
      %2525 = vst [vmem:[%s507 + $0x48] sm:$0xff] %v2489
      %2526 = vst [vmem:[%s507 + $0x50] sm:$0xff] %v2494
      %2527 = vst [vmem:[%s507 + $0x58] sm:$0xff] %v2497
      %2528 = vst [vmem:[%s507 + $0x60] sm:$0xff] %v2502
      %2529 = vst [vmem:[%s507 + $0x68] sm:$0xff] %v2505
      %2530 = vst [vmem:[%s507 + $0x70] sm:$0xff] %v2510
      %2531 = vst [vmem:[%s507 + $0x78] sm:$0xff] %v2513
      %s2532 = smul.u32 16, %s24
      %p2533 = scmp.lt.s32.totalorder %s23, 1
      %s2534 = scalar_select %p2533, %s23, 1
      %p2535 = scmp.lt.s32.totalorder %s2532, 31
      %s2536 = scalar_select %p2535, %s2532, 31
      %s2537 = smul.addr %s2534, 32
      %s2538 = sadd.s32 %s2536, %s2537
      %s2539 = smul.addr %s2538, 8
      %s2540 = scalar_lea.vmem %s8, %s2539
      // Predicated region
      $region53: #{basic_block_forward.3} parent=51 // pred_check
        %p2541 = pneg %p263
      $region54: #{basic_block_forward.3} parent=51 // pred_check_branch
        %2543 = sbr.rel (%p2541) target = $region56
      $region55: #{basic_block_forward.3} parent=51 // pred_region
        %s2544 = smul.u32 16, %s24
      $region56: #{basic_block_forward.3} parent=51 // pred_fallthru
        _
    $region52: #{basic_block_forward.3} parent=5 // pred_fallthru
      _
    %p2545 = scmp.le.s32.totalorder 2, %s14
    // Predicated region
    $region57: #{basic_block_forward.3} parent=5 // pred_check
      %p2546 = pneg %p2545
    $region58: #{basic_block_forward.3} parent=5 // pred_check_branch
      %2548 = sbr.rel (%p2546) target = $region60
    $region59: #{basic_block_forward.3} parent=5 // pred_region
      %s2549 = ssub.s32 %s14, 2
      // Predicated region
      $region61: #{basic_block_forward.3} parent=59 // pred_check
        %p2550 = pneg %p269
      $region62: #{basic_block_forward.3} parent=59 // pred_check_branch
        %2552 = sbr.rel (%p2550) target = $region64
      $region63: #{basic_block_forward.3} parent=59 // pred_region
        %s2553 = smul.u32 16, %s26
        %p2554 = scmp.lt.s32.totalorder %s25, 1
        %s2555 = scalar_select %p2554, %s25, 1
        %p2556 = scmp.lt.s32.totalorder %s2553, 31
        %s2557 = scalar_select %p2556, %s2553, 31
        %s2558 = smul.addr %s2555, 32
        %s2559 = sadd.s32 %s2557, %s2558
        %s2560 = smul.addr %s2559, 8
        %s2561 = scalar_lea.vmem %s8, %s2560
      $region64: #{basic_block_forward.3} parent=59 // pred_fallthru
        _
    $region60: #{basic_block_forward.3} parent=5 // pred_fallthru
      _
  $region6: #{basic_block_forward.3} parent=0 // loop_footer
    %s18 = sadd.s32 1, %s14
  $region7: #{basic_block_forward.3} parent=0 // loop_footer_branch
    %13 = sbr.rel target = $region3
  $region8: #{basic_block_forward.3} parent=0 // loop_exit
    _

</llo_original>
